<compile_context>
chip_gen: v7x
topology: tpu7x:2x2x1
jax: 0.10.0
libtpu: 0.0.40
codegen_flags: <defaults>
</compile_context>

<pallas_src>
import jax
import jax.numpy as jnp
from jax import lax
from jax.experimental import pallas as pl
from jax.experimental.pallas import tpu as pltpu

BN_EPS = 1e-5
LANE = 128
VMEM_LIMIT = 32 * 1024 * 1024   # explicit, safe on v5e/v6e/v7x


def _round_up(x, m):
    return ((x + m - 1) // m) * m


def make_conv_stats_kernel(th, w, cin, coutp):
    """Pass 1: 3x3 conv on one (th, w) spatial tile + per-tile channel sum / sumsq."""
    r = th * w

    def kernel(x_ref, w_ref, y_ref, stats_ref):
        # x_ref:     (1, th+2, w+2, cin)  bf16 slab (1-pixel halo included)
        # w_ref:     (9, cin, coutp)      bf16, tap-major (dy*3 + dx)
        # y_ref:     (1, r, coutp)        f32 pre-BN conv output
        # stats_ref: (1, 2, coutp)        f32 per-tile [sum, sum_of_squares]
        acc = None
        for k in range(9):                      # static unroll of the 3x3 taps
            dy, dx = k // 3, k % 3
            xs = x_ref[0, dy:dy + th, dx:dx + w, :].reshape(r, cin)
            part = jnp.dot(xs, w_ref[k], preferred_element_type=jnp.float32)
            acc = part if acc is None else acc + part
        y_ref[0] = acc
        stats_ref[0, 0:1, :] = jnp.sum(acc, axis=0, keepdims=True)
        stats_ref[0, 1:2, :] = jnp.sum(acc * acc, axis=0, keepdims=True)

    return kernel


def bn_relu_kernel(y_ref, scale_ref, shift_ref, out_ref):
    # y_ref/out_ref: (1, r, coutp); scale/shift: (1, coutp) hoisted per-channel terms.
    out_ref[0] = jnp.maximum(y_ref[0] * scale_ref[...] + shift_ref[...], 0.0)


def conv3x3_bn_relu_nhwc(x_nhwc, weight, bias, gamma, beta, *, block_rows=1024):
    """One Conv(3x3, s=1, p=1) + BatchNorm2d(training batch stats) + ReLU. NHWC in/out."""
    del bias  # exactly cancelled by training-mode BN mean subtraction -> skip the add
    n, h, w, cin = x_nhwc.shape
    cout = weight.shape[0]
    coutp = _round_up(cout, LANE)            # lane-dense output channels

    # th output image rows per grid step (th | h), ~block_rows matmul rows per tile.
    th = max(1, min(h, block_rows // max(w, 1)))
    while h % th:
        th -= 1
    num_h = h // th
    t = n * num_h                            # grid size over M
    r = th * w                               # matmul rows per tile
    m_total = n * h * w

    # ---- cheap layout prep (replaces the 9x HBM im2col): pad + overlapping slabs ----
    xb = x_nhwc.astype(jnp.bfloat16)
    x_pad = jnp.pad(xb, ((0, 0), (1, 1), (1, 1), (0, 0)))
    slabs = jnp.stack([x_pad[:, i * th:i * th + th + 2] for i in range(num_h)], axis=1)
    slabs = slabs.reshape(t, th + 2, w + 2, cin)

    w9 = jnp.transpose(weight.astype(jnp.float32), (2, 3, 1, 0)).reshape(9, cin, cout)
    w9 = jnp.pad(w9, ((0, 0), (0, 0), (0, coutp - cout))).astype(jnp.bfloat16)

    conv_flops = 2 * m_total * 9 * cin * coutp
    y, part_stats = pl.pallas_call(
        make_conv_stats_kernel(th, w, cin, coutp),
        grid=(t,),
        in_specs=[
            pl.BlockSpec((1, th + 2, w + 2, cin), lambda i: (i, 0, 0, 0)),
            pl.BlockSpec((9, cin, coutp), lambda i: (0, 0, 0)),   # grid-invariant
        ],
        out_specs=(
            pl.BlockSpec((1, r, coutp), lambda i: (i, 0, 0)),
            pl.BlockSpec((1, 2, coutp), lambda i: (i, 0, 0)),
        ),
        out_shape=(
            jax.ShapeDtypeStruct((t, r, coutp), jnp.float32),
            jax.ShapeDtypeStruct((t, 2, coutp), jnp.float32),
        ),
        compiler_params=pltpu.CompilerParams(
            dimension_semantics=("parallel",),
            vmem_limit_bytes=VMEM_LIMIT),
        cost_estimate=pl.CostEstimate(
            flops=conv_flops, transcendentals=0,
            bytes_accessed=int(slabs.size) * 2 + int(w9.size) * 2
                           + t * r * coutp * 4 + t * 2 * coutp * 4),
    )(slabs, w9)

    # ---- tiny per-channel reduction -> hoisted scale/shift (f32, wrapper-side) ----
    stats = jnp.sum(part_stats, axis=0)                        # (2, coutp) f32
    mean = stats[0] / m_total
    var = jnp.maximum(stats[1] / m_total - mean * mean, 0.0)   # biased var (train BN)
    gamma_p = jnp.pad(gamma.astype(jnp.float32), (0, coutp - cout))
    beta_p = jnp.pad(beta.astype(jnp.float32), (0, coutp - cout))
    scale = gamma_p * lax.rsqrt(var + BN_EPS)
    shift = beta_p - mean * scale
    scale = scale.reshape(1, coutp)
    shift = shift.reshape(1, coutp)

    out = pl.pallas_call(
        bn_relu_kernel,
        grid=(t,),
        in_specs=[
            pl.BlockSpec((1, r, coutp), lambda i: (i, 0, 0)),
            pl.BlockSpec((1, coutp), lambda i: (0, 0)),
            pl.BlockSpec((1, coutp), lambda i: (0, 0)),
        ],
        out_specs=pl.BlockSpec((1, r, coutp), lambda i: (i, 0, 0)),
        out_shape=jax.ShapeDtypeStruct((t, r, coutp), jnp.float32),
        compiler_params=pltpu.CompilerParams(
            dimension_semantics=("parallel",),
            vmem_limit_bytes=VMEM_LIMIT),
        cost_estimate=pl.CostEstimate(
            flops=2 * t * r * coutp, transcendentals=0,
            bytes_accessed=2 * t * r * coutp * 4),
    )(y, scale, shift)

    out = out.reshape(n, num_h, th, w, coutp).reshape(n, h, w, coutp)
    return out[..., :cout]


def double_conv3x3(x_nchw, params1, params2, *, block_rows=1024):
    """DoubleConv3x3 forward: two (Conv3x3 + BN(train) + ReLU) blocks. NCHW in/out."""
    x = jnp.transpose(x_nchw, (0, 2, 3, 1)).astype(jnp.float32)   # NCHW -> NHWC
    x = conv3x3_bn_relu_nhwc(x, *params1, block_rows=block_rows)
    x = conv3x3_bn_relu_nhwc(x, *params2, block_rows=block_rows)
    return jnp.transpose(x, (0, 3, 1, 2))                         # NHWC -> NCHW


def reference_double_conv(x_nchw, params1, params2):
    """Pure-JAX reference (bf16 conv inputs + f32 accumulate to match kernel precision)."""
    def block(x, weight, bias, gamma, beta):
        y = lax.conv_general_dilated(
            x.astype(jnp.bfloat16), weight.astype(jnp.bfloat16),
            window_strides=(1, 1), padding=((1, 1), (1, 1)),
            dimension_numbers=("NCHW", "OIHW", "NCHW"),
            preferred_element_type=jnp.float32)
        y = y + bias.reshape(1, -1, 1, 1)
        mean = jnp.mean(y, axis=(0, 2, 3), keepdims=True)
        var = jnp.mean((y - mean) ** 2, axis=(0, 2, 3), keepdims=True)
        y = (y - mean) * lax.rsqrt(var + BN_EPS)
        y = y * gamma.reshape(1, -1, 1, 1) + beta.reshape(1, -1, 1, 1)
        return jnp.maximum(y, 0.0)

    y1 = block(x_nchw.astype(jnp.float32), *params1)
    return block(y1, *params2)


if __name__ == "__main__":
    key = jax.random.PRNGKey(0)
    ks = jax.random.split(key, 9)
    N, CIN, COUT, H, W = 2, 4, 8, 16, 16

    x = jax.random.normal(ks[0], (N, CIN, H, W), dtype=jnp.float32)

    def init_conv(kw, kb, kg, kbe, cin, cout):
        fan_in = cin * 9
        bound = 1.0 / (fan_in ** 0.5)
        weight = jax.random.uniform(kw, (cout, cin, 3, 3), minval=-bound, maxval=bound,
                                    dtype=jnp.float32)
        bias = jax.random.uniform(kb, (cout,), minval=-bound, maxval=bound,
                                  dtype=jnp.float32)
        gamma = jax.random.uniform(kg, (cout,), minval=0.5, maxval=1.5, dtype=jnp.float32)
        beta = jax.random.uniform(kbe, (cout,), minval=-0.5, maxval=0.5, dtype=jnp.float32)
        return weight, bias, gamma, beta

    p1 = init_conv(ks[1], ks[2], ks[3], ks[4], CIN, COUT)
    p2 = init_conv(ks[5], ks[6], ks[7], ks[8], COUT, COUT)

    # Small block_rows so the test exercises the multi-tile grid + halo path (TH=8).
    run = jax.jit(lambda xx, a, b: double_conv3x3(xx, a, b, block_rows=128))
    out = jax.block_until_ready(run(x, p1, p2))

    ref = jax.block_until_ready(reference_double_conv(x, p1, p2))
    assert out.shape == (N, COUT, H, W)
    # Both paths use bf16 conv inputs with f32 accumulation; remaining differences are
    # summation-order / stats-formula fp noise plus the analytically-cancelled bias.
    assert float(jnp.max(jnp.abs(out - ref))) < 5e-3
    print("KERNEL_OK")
</pallas_src>

<mosaic_0001>
module attributes {stable_mosaic.version = 11 : i64} {
  func.func @kernel(%arg0: i32, %arg1: memref<1x10x18x4xbf16, #tpu.memory_space<vmem>>, %arg2: memref<9x4x128xbf16, #tpu.memory_space<vmem>>, %arg3: memref<1x128x128xf32, #tpu.memory_space<vmem>>, %arg4: memref<1x2x128xf32, #tpu.memory_space<vmem>>) attributes {dimension_semantics = [#tpu.dimension_semantics<parallel>], iteration_bounds = array<i64: 4>, scalar_prefetch = 0 : i64, scratch_operands = 0 : i64, tpu.core_type = #tpu.core_type<tc>, window_params = [{transform_indices = @transform_0, window_bounds = array<i64: 1, 10, 18, 4>}, {pipeline_mode = #tpu.pipeline_mode<synchronous>, transform_indices = @transform_1, window_bounds = array<i64: 9, 4, 128>}, {transform_indices = @transform_2, window_bounds = array<i64: 1, 128, 128>}, {transform_indices = @transform_3, window_bounds = array<i64: 1, 2, 128>}]} {
    %c0 = arith.constant 0 : index
    %c0_0 = arith.constant 0 : index
    %c0_1 = arith.constant 0 : index
    %c0_2 = arith.constant 0 : index
    %0 = vector.load %arg1[%c0, %c0_0, %c0_1, %c0_2] : memref<1x10x18x4xbf16, #tpu.memory_space<vmem>>, vector<1x8x16x4xbf16>
    %1 = vector.shape_cast %0 : vector<1x8x16x4xbf16> to vector<8x16x4xbf16>
    %2 = vector.shape_cast %1 : vector<8x16x4xbf16> to vector<128x4xbf16>
    %c0_3 = arith.constant 0 : index
    %c0_4 = arith.constant 0 : index
    %c0_5 = arith.constant 0 : index
    %3 = vector.load %arg2[%c0_3, %c0_4, %c0_5] : memref<9x4x128xbf16, #tpu.memory_space<vmem>>, vector<1x4x128xbf16>
    %4 = vector.shape_cast %3 : vector<1x4x128xbf16> to vector<4x128xbf16>
    %cst = arith.constant dense<0.000000e+00> : vector<128x128xf32>
    %5 = tpu.matmul %2, %4, %cst {dimension_numbers = #tpu.dot_dimension_numbers<[1], [0], [0], [1], [0, 0, 1, 1], [], []>} : vector<128x4xbf16>, vector<4x128xbf16>, vector<128x128xf32> -> vector<128x128xf32>
    %c0_6 = arith.constant 0 : index
    %c0_7 = arith.constant 0 : index
    %c1 = arith.constant 1 : index
    %c0_8 = arith.constant 0 : index
    %6 = vector.load %arg1[%c0_6, %c0_7, %c1, %c0_8] : memref<1x10x18x4xbf16, #tpu.memory_space<vmem>>, vector<1x8x16x4xbf16>
    %7 = vector.shape_cast %6 : vector<1x8x16x4xbf16> to vector<8x16x4xbf16>
    %8 = vector.shape_cast %7 : vector<8x16x4xbf16> to vector<128x4xbf16>
    %c1_9 = arith.constant 1 : index
    %c0_10 = arith.constant 0 : index
    %c0_11 = arith.constant 0 : index
    %9 = vector.load %arg2[%c1_9, %c0_10, %c0_11] : memref<9x4x128xbf16, #tpu.memory_space<vmem>>, vector<1x4x128xbf16>
    %10 = vector.shape_cast %9 : vector<1x4x128xbf16> to vector<4x128xbf16>
    %cst_12 = arith.constant dense<0.000000e+00> : vector<128x128xf32>
    %11 = tpu.matmul %8, %10, %cst_12 {dimension_numbers = #tpu.dot_dimension_numbers<[1], [0], [0], [1], [0, 0, 1, 1], [], []>} : vector<128x4xbf16>, vector<4x128xbf16>, vector<128x128xf32> -> vector<128x128xf32>
    %12 = arith.addf %5, %11 : vector<128x128xf32>
    %c0_13 = arith.constant 0 : index
    %c0_14 = arith.constant 0 : index
    %c2 = arith.constant 2 : index
    %c0_15 = arith.constant 0 : index
    %13 = vector.load %arg1[%c0_13, %c0_14, %c2, %c0_15] : memref<1x10x18x4xbf16, #tpu.memory_space<vmem>>, vector<1x8x16x4xbf16>
    %14 = vector.shape_cast %13 : vector<1x8x16x4xbf16> to vector<8x16x4xbf16>
    %15 = vector.shape_cast %14 : vector<8x16x4xbf16> to vector<128x4xbf16>
    %c2_16 = arith.constant 2 : index
    %c0_17 = arith.constant 0 : index
    %c0_18 = arith.constant 0 : index
    %16 = vector.load %arg2[%c2_16, %c0_17, %c0_18] : memref<9x4x128xbf16, #tpu.memory_space<vmem>>, vector<1x4x128xbf16>
    %17 = vector.shape_cast %16 : vector<1x4x128xbf16> to vector<4x128xbf16>
    %cst_19 = arith.constant dense<0.000000e+00> : vector<128x128xf32>
    %18 = tpu.matmul %15, %17, %cst_19 {dimension_numbers = #tpu.dot_dimension_numbers<[1], [0], [0], [1], [0, 0, 1, 1], [], []>} : vector<128x4xbf16>, vector<4x128xbf16>, vector<128x128xf32> -> vector<128x128xf32>
    %19 = arith.addf %12, %18 : vector<128x128xf32>
    %c0_20 = arith.constant 0 : index
    %c1_21 = arith.constant 1 : index
    %c0_22 = arith.constant 0 : index
    %c0_23 = arith.constant 0 : index
    %20 = vector.load %arg1[%c0_20, %c1_21, %c0_22, %c0_23] : memref<1x10x18x4xbf16, #tpu.memory_space<vmem>>, vector<1x8x16x4xbf16>
    %21 = vector.shape_cast %20 : vector<1x8x16x4xbf16> to vector<8x16x4xbf16>
    %22 = vector.shape_cast %21 : vector<8x16x4xbf16> to vector<128x4xbf16>
    %c3 = arith.constant 3 : index
    %c0_24 = arith.constant 0 : index
    %c0_25 = arith.constant 0 : index
    %23 = vector.load %arg2[%c3, %c0_24, %c0_25] : memref<9x4x128xbf16, #tpu.memory_space<vmem>>, vector<1x4x128xbf16>
    %24 = vector.shape_cast %23 : vector<1x4x128xbf16> to vector<4x128xbf16>
    %cst_26 = arith.constant dense<0.000000e+00> : vector<128x128xf32>
    %25 = tpu.matmul %22, %24, %cst_26 {dimension_numbers = #tpu.dot_dimension_numbers<[1], [0], [0], [1], [0, 0, 1, 1], [], []>} : vector<128x4xbf16>, vector<4x128xbf16>, vector<128x128xf32> -> vector<128x128xf32>
    %26 = arith.addf %19, %25 : vector<128x128xf32>
    %c0_27 = arith.constant 0 : index
    %c1_28 = arith.constant 1 : index
    %c1_29 = arith.constant 1 : index
    %c0_30 = arith.constant 0 : index
    %27 = vector.load %arg1[%c0_27, %c1_28, %c1_29, %c0_30] : memref<1x10x18x4xbf16, #tpu.memory_space<vmem>>, vector<1x8x16x4xbf16>
    %28 = vector.shape_cast %27 : vector<1x8x16x4xbf16> to vector<8x16x4xbf16>
    %29 = vector.shape_cast %28 : vector<8x16x4xbf16> to vector<128x4xbf16>
    %c4 = arith.constant 4 : index
    %c0_31 = arith.constant 0 : index
    %c0_32 = arith.constant 0 : index
    %30 = vector.load %arg2[%c4, %c0_31, %c0_32] : memref<9x4x128xbf16, #tpu.memory_space<vmem>>, vector<1x4x128xbf16>
    %31 = vector.shape_cast %30 : vector<1x4x128xbf16> to vector<4x128xbf16>
    %cst_33 = arith.constant dense<0.000000e+00> : vector<128x128xf32>
    %32 = tpu.matmul %29, %31, %cst_33 {dimension_numbers = #tpu.dot_dimension_numbers<[1], [0], [0], [1], [0, 0, 1, 1], [], []>} : vector<128x4xbf16>, vector<4x128xbf16>, vector<128x128xf32> -> vector<128x128xf32>
    %33 = arith.addf %26, %32 : vector<128x128xf32>
    %c0_34 = arith.constant 0 : index
    %c1_35 = arith.constant 1 : index
    %c2_36 = arith.constant 2 : index
    %c0_37 = arith.constant 0 : index
    %34 = vector.load %arg1[%c0_34, %c1_35, %c2_36, %c0_37] : memref<1x10x18x4xbf16, #tpu.memory_space<vmem>>, vector<1x8x16x4xbf16>
    %35 = vector.shape_cast %34 : vector<1x8x16x4xbf16> to vector<8x16x4xbf16>
    %36 = vector.shape_cast %35 : vector<8x16x4xbf16> to vector<128x4xbf16>
    %c5 = arith.constant 5 : index
    %c0_38 = arith.constant 0 : index
    %c0_39 = arith.constant 0 : index
    %37 = vector.load %arg2[%c5, %c0_38, %c0_39] : memref<9x4x128xbf16, #tpu.memory_space<vmem>>, vector<1x4x128xbf16>
    %38 = vector.shape_cast %37 : vector<1x4x128xbf16> to vector<4x128xbf16>
    %cst_40 = arith.constant dense<0.000000e+00> : vector<128x128xf32>
    %39 = tpu.matmul %36, %38, %cst_40 {dimension_numbers = #tpu.dot_dimension_numbers<[1], [0], [0], [1], [0, 0, 1, 1], [], []>} : vector<128x4xbf16>, vector<4x128xbf16>, vector<128x128xf32> -> vector<128x128xf32>
    %40 = arith.addf %33, %39 : vector<128x128xf32>
    %c0_41 = arith.constant 0 : index
    %c2_42 = arith.constant 2 : index
    %c0_43 = arith.constant 0 : index
    %c0_44 = arith.constant 0 : index
    %41 = vector.load %arg1[%c0_41, %c2_42, %c0_43, %c0_44] : memref<1x10x18x4xbf16, #tpu.memory_space<vmem>>, vector<1x8x16x4xbf16>
    %42 = vector.shape_cast %41 : vector<1x8x16x4xbf16> to vector<8x16x4xbf16>
    %43 = vector.shape_cast %42 : vector<8x16x4xbf16> to vector<128x4xbf16>
    %c6 = arith.constant 6 : index
    %c0_45 = arith.constant 0 : index
    %c0_46 = arith.constant 0 : index
    %44 = vector.load %arg2[%c6, %c0_45, %c0_46] : memref<9x4x128xbf16, #tpu.memory_space<vmem>>, vector<1x4x128xbf16>
    %45 = vector.shape_cast %44 : vector<1x4x128xbf16> to vector<4x128xbf16>
    %cst_47 = arith.constant dense<0.000000e+00> : vector<128x128xf32>
    %46 = tpu.matmul %43, %45, %cst_47 {dimension_numbers = #tpu.dot_dimension_numbers<[1], [0], [0], [1], [0, 0, 1, 1], [], []>} : vector<128x4xbf16>, vector<4x128xbf16>, vector<128x128xf32> -> vector<128x128xf32>
    %47 = arith.addf %40, %46 : vector<128x128xf32>
    %c0_48 = arith.constant 0 : index
    %c2_49 = arith.constant 2 : index
    %c1_50 = arith.constant 1 : index
    %c0_51 = arith.constant 0 : index
    %48 = vector.load %arg1[%c0_48, %c2_49, %c1_50, %c0_51] : memref<1x10x18x4xbf16, #tpu.memory_space<vmem>>, vector<1x8x16x4xbf16>
    %49 = vector.shape_cast %48 : vector<1x8x16x4xbf16> to vector<8x16x4xbf16>
    %50 = vector.shape_cast %49 : vector<8x16x4xbf16> to vector<128x4xbf16>
    %c7 = arith.constant 7 : index
    %c0_52 = arith.constant 0 : index
    %c0_53 = arith.constant 0 : index
    %51 = vector.load %arg2[%c7, %c0_52, %c0_53] : memref<9x4x128xbf16, #tpu.memory_space<vmem>>, vector<1x4x128xbf16>
    %52 = vector.shape_cast %51 : vector<1x4x128xbf16> to vector<4x128xbf16>
    %cst_54 = arith.constant dense<0.000000e+00> : vector<128x128xf32>
    %53 = tpu.matmul %50, %52, %cst_54 {dimension_numbers = #tpu.dot_dimension_numbers<[1], [0], [0], [1], [0, 0, 1, 1], [], []>} : vector<128x4xbf16>, vector<4x128xbf16>, vector<128x128xf32> -> vector<128x128xf32>
    %54 = arith.addf %47, %53 : vector<128x128xf32>
    %c0_55 = arith.constant 0 : index
    %c2_56 = arith.constant 2 : index
    %c2_57 = arith.constant 2 : index
    %c0_58 = arith.constant 0 : index
    %55 = vector.load %arg1[%c0_55, %c2_56, %c2_57, %c0_58] : memref<1x10x18x4xbf16, #tpu.memory_space<vmem>>, vector<1x8x16x4xbf16>
    %56 = vector.shape_cast %55 : vector<1x8x16x4xbf16> to vector<8x16x4xbf16>
    %57 = vector.shape_cast %56 : vector<8x16x4xbf16> to vector<128x4xbf16>
    %c8 = arith.constant 8 : index
    %c0_59 = arith.constant 0 : index
    %c0_60 = arith.constant 0 : index
    %58 = vector.load %arg2[%c8, %c0_59, %c0_60] : memref<9x4x128xbf16, #tpu.memory_space<vmem>>, vector<1x4x128xbf16>
    %59 = vector.shape_cast %58 : vector<1x4x128xbf16> to vector<4x128xbf16>
    %cst_61 = arith.constant dense<0.000000e+00> : vector<128x128xf32>
    %60 = tpu.matmul %57, %59, %cst_61 {dimension_numbers = #tpu.dot_dimension_numbers<[1], [0], [0], [1], [0, 0, 1, 1], [], []>} : vector<128x4xbf16>, vector<4x128xbf16>, vector<128x128xf32> -> vector<128x128xf32>
    %61 = arith.addf %54, %60 : vector<128x128xf32>
    %c0_62 = arith.constant 0 : index
    %c0_63 = arith.constant 0 : index
    %c0_64 = arith.constant 0 : index
    %62 = vector.load %arg3[%c0_62, %c0_63, %c0_64] : memref<1x128x128xf32, #tpu.memory_space<vmem>>, vector<1x128x128xf32>
    %63 = vector.shape_cast %62 : vector<1x128x128xf32> to vector<128x128xf32>
    %64 = vector.shape_cast %61 : vector<128x128xf32> to vector<1x128x128xf32>
    tpu.vector_store %arg3[%c0_62, %c0_63, %c0_64], %64 {strides = array<i32>} : memref<1x128x128xf32, #tpu.memory_space<vmem>>, vector<1x128x128xf32>,
    %cst_65 = arith.constant dense<0.000000e+00> : vector<128xf32>
    %65 = vector.multi_reduction <add>, %61, %cst_65 [0] : vector<128x128xf32> to vector<128xf32>
    %66 = vector.shape_cast %65 : vector<128xf32> to vector<1x128xf32>
    %c0_66 = arith.constant 0 : index
    %c0_67 = arith.constant 0 : index
    %c0_68 = arith.constant 0 : index
    %67 = vector.load %arg4[%c0_66, %c0_67, %c0_68] : memref<1x2x128xf32, #tpu.memory_space<vmem>>, vector<1x1x128xf32>
    %68 = vector.shape_cast %67 : vector<1x1x128xf32> to vector<1x128xf32>
    %69 = vector.shape_cast %66 : vector<1x128xf32> to vector<1x1x128xf32>
    tpu.vector_store %arg4[%c0_66, %c0_67, %c0_68], %69 {strides = array<i32>} : memref<1x2x128xf32, #tpu.memory_space<vmem>>, vector<1x1x128xf32>,
    %70 = arith.mulf %61, %61 : vector<128x128xf32>
    %cst_69 = arith.constant dense<0.000000e+00> : vector<128xf32>
    %71 = vector.multi_reduction <add>, %70, %cst_69 [0] : vector<128x128xf32> to vector<128xf32>
    %72 = vector.shape_cast %71 : vector<128xf32> to vector<1x128xf32>
    %c0_70 = arith.constant 0 : index
    %c1_71 = arith.constant 1 : index
    %c0_72 = arith.constant 0 : index
    %73 = vector.load %arg4[%c0_70, %c1_71, %c0_72] : memref<1x2x128xf32, #tpu.memory_space<vmem>>, vector<1x1x128xf32>
    %74 = vector.shape_cast %73 : vector<1x1x128xf32> to vector<1x128xf32>
    %75 = vector.shape_cast %72 : vector<1x128xf32> to vector<1x1x128xf32>
    tpu.vector_store %arg4[%c0_70, %c1_71, %c0_72], %75 {strides = array<i32>} : memref<1x2x128xf32, #tpu.memory_space<vmem>>, vector<1x1x128xf32>,
    return
  }
  func.func @transform_0(%arg0: i32) -> (i32, i32, i32, i32) {
    %c0_i32 = arith.constant 0 : i32
    %c0_i32_0 = arith.constant 0 : i32
    %c0_i32_1 = arith.constant 0 : i32
    %c0_i32_2 = arith.constant 0 : i32
    return %arg0, %c0_i32, %c0_i32_0, %c0_i32_1 : i32, i32, i32, i32
  }
  func.func @transform_1(%arg0: i32) -> (i32, i32, i32) {
    %c0_i32 = arith.constant 0 : i32
    %c0_i32_0 = arith.constant 0 : i32
    %c0_i32_1 = arith.constant 0 : i32
    %c0_i32_2 = arith.constant 0 : i32
    return %c0_i32, %c0_i32_0, %c0_i32_1 : i32, i32, i32
  }
  func.func @transform_2(%arg0: i32) -> (i32, i32, i32) {
    %c0_i32 = arith.constant 0 : i32
    %c0_i32_0 = arith.constant 0 : i32
    %c0_i32_1 = arith.constant 0 : i32
    return %arg0, %c0_i32, %c0_i32_0 : i32, i32, i32
  }
  func.func @transform_3(%arg0: i32) -> (i32, i32, i32) {
    %c0_i32 = arith.constant 0 : i32
    %c0_i32_0 = arith.constant 0 : i32
    %c0_i32_1 = arith.constant 0 : i32
    return %arg0, %c0_i32, %c0_i32_0 : i32, i32, i32
  }
}

module attributes {stable_mosaic.version = 11 : i64} {
  func.func @bn_relu_kernel(%arg0: i32, %arg1: memref<1x128x128xf32, #tpu.memory_space<vmem>>, %arg2: memref<1x128xf32, #tpu.memory_space<vmem>>, %arg3: memref<1x128xf32, #tpu.memory_space<vmem>>, %arg4: memref<1x128x128xf32, #tpu.memory_space<vmem>>) attributes {dimension_semantics = [#tpu.dimension_semantics<parallel>], iteration_bounds = array<i64: 4>, scalar_prefetch = 0 : i64, scratch_operands = 0 : i64, tpu.core_type = #tpu.core_type<tc>, window_params = [{transform_indices = @transform_0, window_bounds = array<i64: 1, 128, 128>}, {pipeline_mode = #tpu.pipeline_mode<synchronous>, transform_indices = @transform_1, window_bounds = array<i64: 1, 128>}, {pipeline_mode = #tpu.pipeline_mode<synchronous>, transform_indices = @transform_2, window_bounds = array<i64: 1, 128>}, {transform_indices = @transform_3, window_bounds = array<i64: 1, 128, 128>}]} {
    %c0 = arith.constant 0 : index
    %c0_0 = arith.constant 0 : index
    %c0_1 = arith.constant 0 : index
    %0 = vector.load %arg1[%c0, %c0_0, %c0_1] : memref<1x128x128xf32, #tpu.memory_space<vmem>>, vector<1x128x128xf32>
    %1 = vector.shape_cast %0 : vector<1x128x128xf32> to vector<128x128xf32>
    %c0_2 = arith.constant 0 : index
    %c0_3 = arith.constant 0 : index
    %2 = vector.load %arg2[%c0_2, %c0_3] : memref<1x128xf32, #tpu.memory_space<vmem>>, vector<1x128xf32>
    %3 = vector.broadcast %2 : vector<1x128xf32> to vector<128x128xf32>
    %4 = arith.mulf %1, %3 : vector<128x128xf32>
    %c0_4 = arith.constant 0 : index
    %c0_5 = arith.constant 0 : index
    %5 = vector.load %arg3[%c0_4, %c0_5] : memref<1x128xf32, #tpu.memory_space<vmem>>, vector<1x128xf32>
    %6 = vector.broadcast %5 : vector<1x128xf32> to vector<128x128xf32>
    %7 = arith.addf %4, %6 : vector<128x128xf32>
    %cst = arith.constant 0.000000e+00 : f32
    %8 = vector.broadcast %cst : f32 to vector<128x128xf32>
    %9 = arith.maximumf %7, %8 : vector<128x128xf32>
    %c0_6 = arith.constant 0 : index
    %c0_7 = arith.constant 0 : index
    %c0_8 = arith.constant 0 : index
    %10 = vector.load %arg4[%c0_6, %c0_7, %c0_8] : memref<1x128x128xf32, #tpu.memory_space<vmem>>, vector<1x128x128xf32>
    %11 = vector.shape_cast %10 : vector<1x128x128xf32> to vector<128x128xf32>
    %12 = vector.shape_cast %9 : vector<128x128xf32> to vector<1x128x128xf32>
    tpu.vector_store %arg4[%c0_6, %c0_7, %c0_8], %12 {strides = array<i32>} : memref<1x128x128xf32, #tpu.memory_space<vmem>>, vector<1x128x128xf32>,
    return
  }
  func.func @transform_0(%arg0: i32) -> (i32, i32, i32) {
    %c0_i32 = arith.constant 0 : i32
    %c0_i32_0 = arith.constant 0 : i32
    %c0_i32_1 = arith.constant 0 : i32
    return %arg0, %c0_i32, %c0_i32_0 : i32, i32, i32
  }
  func.func @transform_1(%arg0: i32) -> (i32, i32) {
    %c0_i32 = arith.constant 0 : i32
    %c0_i32_0 = arith.constant 0 : i32
    %c0_i32_1 = arith.constant 0 : i32
    return %c0_i32, %c0_i32_0 : i32, i32
  }
  func.func @transform_2(%arg0: i32) -> (i32, i32) {
    %c0_i32 = arith.constant 0 : i32
    %c0_i32_0 = arith.constant 0 : i32
    %c0_i32_1 = arith.constant 0 : i32
    return %c0_i32, %c0_i32_0 : i32, i32
  }
  func.func @transform_3(%arg0: i32) -> (i32, i32, i32) {
    %c0_i32 = arith.constant 0 : i32
    %c0_i32_0 = arith.constant 0 : i32
    %c0_i32_1 = arith.constant 0 : i32
    return %arg0, %c0_i32, %c0_i32_0 : i32, i32, i32
  }
}

module attributes {stable_mosaic.version = 11 : i64} {
  func.func @kernel(%arg0: i32, %arg1: memref<1x10x18x8xbf16, #tpu.memory_space<vmem>>, %arg2: memref<9x8x128xbf16, #tpu.memory_space<vmem>>, %arg3: memref<1x128x128xf32, #tpu.memory_space<vmem>>, %arg4: memref<1x2x128xf32, #tpu.memory_space<vmem>>) attributes {dimension_semantics = [#tpu.dimension_semantics<parallel>], iteration_bounds = array<i64: 4>, scalar_prefetch = 0 : i64, scratch_operands = 0 : i64, tpu.core_type = #tpu.core_type<tc>, window_params = [{transform_indices = @transform_0, window_bounds = array<i64: 1, 10, 18, 8>}, {pipeline_mode = #tpu.pipeline_mode<synchronous>, transform_indices = @transform_1, window_bounds = array<i64: 9, 8, 128>}, {transform_indices = @transform_2, window_bounds = array<i64: 1, 128, 128>}, {transform_indices = @transform_3, window_bounds = array<i64: 1, 2, 128>}]} {
    %c0 = arith.constant 0 : index
    %c0_0 = arith.constant 0 : index
    %c0_1 = arith.constant 0 : index
    %c0_2 = arith.constant 0 : index
    %0 = vector.load %arg1[%c0, %c0_0, %c0_1, %c0_2] : memref<1x10x18x8xbf16, #tpu.memory_space<vmem>>, vector<1x8x16x8xbf16>
    %1 = vector.shape_cast %0 : vector<1x8x16x8xbf16> to vector<8x16x8xbf16>
    %2 = vector.shape_cast %1 : vector<8x16x8xbf16> to vector<128x8xbf16>
    %c0_3 = arith.constant 0 : index
    %c0_4 = arith.constant 0 : index
    %c0_5 = arith.constant 0 : index
    %3 = vector.load %arg2[%c0_3, %c0_4, %c0_5] : memref<9x8x128xbf16, #tpu.memory_space<vmem>>, vector<1x8x128xbf16>
    %4 = vector.shape_cast %3 : vector<1x8x128xbf16> to vector<8x128xbf16>
    %cst = arith.constant dense<0.000000e+00> : vector<128x128xf32>
    %5 = tpu.matmul %2, %4, %cst {dimension_numbers = #tpu.dot_dimension_numbers<[1], [0], [0], [1], [0, 0, 1, 1], [], []>} : vector<128x8xbf16>, vector<8x128xbf16>, vector<128x128xf32> -> vector<128x128xf32>
    %c0_6 = arith.constant 0 : index
    %c0_7 = arith.constant 0 : index
    %c1 = arith.constant 1 : index
    %c0_8 = arith.constant 0 : index
    %6 = vector.load %arg1[%c0_6, %c0_7, %c1, %c0_8] : memref<1x10x18x8xbf16, #tpu.memory_space<vmem>>, vector<1x8x16x8xbf16>
    %7 = vector.shape_cast %6 : vector<1x8x16x8xbf16> to vector<8x16x8xbf16>
    %8 = vector.shape_cast %7 : vector<8x16x8xbf16> to vector<128x8xbf16>
    %c1_9 = arith.constant 1 : index
    %c0_10 = arith.constant 0 : index
    %c0_11 = arith.constant 0 : index
    %9 = vector.load %arg2[%c1_9, %c0_10, %c0_11] : memref<9x8x128xbf16, #tpu.memory_space<vmem>>, vector<1x8x128xbf16>
    %10 = vector.shape_cast %9 : vector<1x8x128xbf16> to vector<8x128xbf16>
    %cst_12 = arith.constant dense<0.000000e+00> : vector<128x128xf32>
    %11 = tpu.matmul %8, %10, %cst_12 {dimension_numbers = #tpu.dot_dimension_numbers<[1], [0], [0], [1], [0, 0, 1, 1], [], []>} : vector<128x8xbf16>, vector<8x128xbf16>, vector<128x128xf32> -> vector<128x128xf32>
    %12 = arith.addf %5, %11 : vector<128x128xf32>
    %c0_13 = arith.constant 0 : index
    %c0_14 = arith.constant 0 : index
    %c2 = arith.constant 2 : index
    %c0_15 = arith.constant 0 : index
    %13 = vector.load %arg1[%c0_13, %c0_14, %c2, %c0_15] : memref<1x10x18x8xbf16, #tpu.memory_space<vmem>>, vector<1x8x16x8xbf16>
    %14 = vector.shape_cast %13 : vector<1x8x16x8xbf16> to vector<8x16x8xbf16>
    %15 = vector.shape_cast %14 : vector<8x16x8xbf16> to vector<128x8xbf16>
    %c2_16 = arith.constant 2 : index
    %c0_17 = arith.constant 0 : index
    %c0_18 = arith.constant 0 : index
    %16 = vector.load %arg2[%c2_16, %c0_17, %c0_18] : memref<9x8x128xbf16, #tpu.memory_space<vmem>>, vector<1x8x128xbf16>
    %17 = vector.shape_cast %16 : vector<1x8x128xbf16> to vector<8x128xbf16>
    %cst_19 = arith.constant dense<0.000000e+00> : vector<128x128xf32>
    %18 = tpu.matmul %15, %17, %cst_19 {dimension_numbers = #tpu.dot_dimension_numbers<[1], [0], [0], [1], [0, 0, 1, 1], [], []>} : vector<128x8xbf16>, vector<8x128xbf16>, vector<128x128xf32> -> vector<128x128xf32>
    %19 = arith.addf %12, %18 : vector<128x128xf32>
    %c0_20 = arith.constant 0 : index
    %c1_21 = arith.constant 1 : index
    %c0_22 = arith.constant 0 : index
    %c0_23 = arith.constant 0 : index
    %20 = vector.load %arg1[%c0_20, %c1_21, %c0_22, %c0_23] : memref<1x10x18x8xbf16, #tpu.memory_space<vmem>>, vector<1x8x16x8xbf16>
    %21 = vector.shape_cast %20 : vector<1x8x16x8xbf16> to vector<8x16x8xbf16>
    %22 = vector.shape_cast %21 : vector<8x16x8xbf16> to vector<128x8xbf16>
    %c3 = arith.constant 3 : index
    %c0_24 = arith.constant 0 : index
    %c0_25 = arith.constant 0 : index
    %23 = vector.load %arg2[%c3, %c0_24, %c0_25] : memref<9x8x128xbf16, #tpu.memory_space<vmem>>, vector<1x8x128xbf16>
    %24 = vector.shape_cast %23 : vector<1x8x128xbf16> to vector<8x128xbf16>
    %cst_26 = arith.constant dense<0.000000e+00> : vector<128x128xf32>
    %25 = tpu.matmul %22, %24, %cst_26 {dimension_numbers = #tpu.dot_dimension_numbers<[1], [0], [0], [1], [0, 0, 1, 1], [], []>} : vector<128x8xbf16>, vector<8x128xbf16>, vector<128x128xf32> -> vector<128x128xf32>
    %26 = arith.addf %19, %25 : vector<128x128xf32>
    %c0_27 = arith.constant 0 : index
    %c1_28 = arith.constant 1 : index
    %c1_29 = arith.constant 1 : index
    %c0_30 = arith.constant 0 : index
    %27 = vector.load %arg1[%c0_27, %c1_28, %c1_29, %c0_30] : memref<1x10x18x8xbf16, #tpu.memory_space<vmem>>, vector<1x8x16x8xbf16>
    %28 = vector.shape_cast %27 : vector<1x8x16x8xbf16> to vector<8x16x8xbf16>
    %29 = vector.shape_cast %28 : vector<8x16x8xbf16> to vector<128x8xbf16>
    %c4 = arith.constant 4 : index
    %c0_31 = arith.constant 0 : index
    %c0_32 = arith.constant 0 : index
    %30 = vector.load %arg2[%c4, %c0_31, %c0_32] : memref<9x8x128xbf16, #tpu.memory_space<vmem>>, vector<1x8x128xbf16>
    %31 = vector.shape_cast %30 : vector<1x8x128xbf16> to vector<8x128xbf16>
    %cst_33 = arith.constant dense<0.000000e+00> : vector<128x128xf32>
    %32 = tpu.matmul %29, %31, %cst_33 {dimension_numbers = #tpu.dot_dimension_numbers<[1], [0], [0], [1], [0, 0, 1, 1], [], []>} : vector<128x8xbf16>, vector<8x128xbf16>, vector<128x128xf32> -> vector<128x128xf32>
    %33 = arith.addf %26, %32 : vector<128x128xf32>
    %c0_34 = arith.constant 0 : index
    %c1_35 = arith.constant 1 : index
    %c2_36 = arith.constant 2 : index
    %c0_37 = arith.constant 0 : index
    %34 = vector.load %arg1[%c0_34, %c1_35, %c2_36, %c0_37] : memref<1x10x18x8xbf16, #tpu.memory_space<vmem>>, vector<1x8x16x8xbf16>
    %35 = vector.shape_cast %34 : vector<1x8x16x8xbf16> to vector<8x16x8xbf16>
    %36 = vector.shape_cast %35 : vector<8x16x8xbf16> to vector<128x8xbf16>
    %c5 = arith.constant 5 : index
    %c0_38 = arith.constant 0 : index
    %c0_39 = arith.constant 0 : index
    %37 = vector.load %arg2[%c5, %c0_38, %c0_39] : memref<9x8x128xbf16, #tpu.memory_space<vmem>>, vector<1x8x128xbf16>
    %38 = vector.shape_cast %37 : vector<1x8x128xbf16> to vector<8x128xbf16>
    %cst_40 = arith.constant dense<0.000000e+00> : vector<128x128xf32>
    %39 = tpu.matmul %36, %38, %cst_40 {dimension_numbers = #tpu.dot_dimension_numbers<[1], [0], [0], [1], [0, 0, 1, 1], [], []>} : vector<128x8xbf16>, vector<8x128xbf16>, vector<128x128xf32> -> vector<128x128xf32>
    %40 = arith.addf %33, %39 : vector<128x128xf32>
    %c0_41 = arith.constant 0 : index
    %c2_42 = arith.constant 2 : index
    %c0_43 = arith.constant 0 : index
    %c0_44 = arith.constant 0 : index
    %41 = vector.load %arg1[%c0_41, %c2_42, %c0_43, %c0_44] : memref<1x10x18x8xbf16, #tpu.memory_space<vmem>>, vector<1x8x16x8xbf16>
    %42 = vector.shape_cast %41 : vector<1x8x16x8xbf16> to vector<8x16x8xbf16>
    %43 = vector.shape_cast %42 : vector<8x16x8xbf16> to vector<128x8xbf16>
    %c6 = arith.constant 6 : index
    %c0_45 = arith.constant 0 : index
    %c0_46 = arith.constant 0 : index
    %44 = vector.load %arg2[%c6, %c0_45, %c0_46] : memref<9x8x128xbf16, #tpu.memory_space<vmem>>, vector<1x8x128xbf16>
    %45 = vector.shape_cast %44 : vector<1x8x128xbf16> to vector<8x128xbf16>
    %cst_47 = arith.constant dense<0.000000e+00> : vector<128x128xf32>
    %46 = tpu.matmul %43, %45, %cst_47 {dimension_numbers = #tpu.dot_dimension_numbers<[1], [0], [0], [1], [0, 0, 1, 1], [], []>} : vector<128x8xbf16>, vector<8x128xbf16>, vector<128x128xf32> -> vector<128x128xf32>
    %47 = arith.addf %40, %46 : vector<128x128xf32>
    %c0_48 = arith.constant 0 : index
    %c2_49 = arith.constant 2 : index
    %c1_50 = arith.constant 1 : index
    %c0_51 = arith.constant 0 : index
    %48 = vector.load %arg1[%c0_48, %c2_49, %c1_50, %c0_51] : memref<1x10x18x8xbf16, #tpu.memory_space<vmem>>, vector<1x8x16x8xbf16>
    %49 = vector.shape_cast %48 : vector<1x8x16x8xbf16> to vector<8x16x8xbf16>
    %50 = vector.shape_cast %49 : vector<8x16x8xbf16> to vector<128x8xbf16>
    %c7 = arith.constant 7 : index
    %c0_52 = arith.constant 0 : index
    %c0_53 = arith.constant 0 : index
    %51 = vector.load %arg2[%c7, %c0_52, %c0_53] : memref<9x8x128xbf16, #tpu.memory_space<vmem>>, vector<1x8x128xbf16>
    %52 = vector.shape_cast %51 : vector<1x8x128xbf16> to vector<8x128xbf16>
    %cst_54 = arith.constant dense<0.000000e+00> : vector<128x128xf32>
    %53 = tpu.matmul %50, %52, %cst_54 {dimension_numbers = #tpu.dot_dimension_numbers<[1], [0], [0], [1], [0, 0, 1, 1], [], []>} : vector<128x8xbf16>, vector<8x128xbf16>, vector<128x128xf32> -> vector<128x128xf32>
    %54 = arith.addf %47, %53 : vector<128x128xf32>
    %c0_55 = arith.constant 0 : index
    %c2_56 = arith.constant 2 : index
    %c2_57 = arith.constant 2 : index
    %c0_58 = arith.constant 0 : index
    %55 = vector.load %arg1[%c0_55, %c2_56, %c2_57, %c0_58] : memref<1x10x18x8xbf16, #tpu.memory_space<vmem>>, vector<1x8x16x8xbf16>
    %56 = vector.shape_cast %55 : vector<1x8x16x8xbf16> to vector<8x16x8xbf16>
    %57 = vector.shape_cast %56 : vector<8x16x8xbf16> to vector<128x8xbf16>
    %c8 = arith.constant 8 : index
    %c0_59 = arith.constant 0 : index
    %c0_60 = arith.constant 0 : index
    %58 = vector.load %arg2[%c8, %c0_59, %c0_60] : memref<9x8x128xbf16, #tpu.memory_space<vmem>>, vector<1x8x128xbf16>
    %59 = vector.shape_cast %58 : vector<1x8x128xbf16> to vector<8x128xbf16>
    %cst_61 = arith.constant dense<0.000000e+00> : vector<128x128xf32>
    %60 = tpu.matmul %57, %59, %cst_61 {dimension_numbers = #tpu.dot_dimension_numbers<[1], [0], [0], [1], [0, 0, 1, 1], [], []>} : vector<128x8xbf16>, vector<8x128xbf16>, vector<128x128xf32> -> vector<128x128xf32>
    %61 = arith.addf %54, %60 : vector<128x128xf32>
    %c0_62 = arith.constant 0 : index
    %c0_63 = arith.constant 0 : index
    %c0_64 = arith.constant 0 : index
    %62 = vector.load %arg3[%c0_62, %c0_63, %c0_64] : memref<1x128x128xf32, #tpu.memory_space<vmem>>, vector<1x128x128xf32>
    %63 = vector.shape_cast %62 : vector<1x128x128xf32> to vector<128x128xf32>
    %64 = vector.shape_cast %61 : vector<128x128xf32> to vector<1x128x128xf32>
    tpu.vector_store %arg3[%c0_62, %c0_63, %c0_64], %64 {strides = array<i32>} : memref<1x128x128xf32, #tpu.memory_space<vmem>>, vector<1x128x128xf32>,
    %cst_65 = arith.constant dense<0.000000e+00> : vector<128xf32>
    %65 = vector.multi_reduction <add>, %61, %cst_65 [0] : vector<128x128xf32> to vector<128xf32>
    %66 = vector.shape_cast %65 : vector<128xf32> to vector<1x128xf32>
    %c0_66 = arith.constant 0 : index
    %c0_67 = arith.constant 0 : index
    %c0_68 = arith.constant 0 : index
    %67 = vector.load %arg4[%c0_66, %c0_67, %c0_68] : memref<1x2x128xf32, #tpu.memory_space<vmem>>, vector<1x1x128xf32>
    %68 = vector.shape_cast %67 : vector<1x1x128xf32> to vector<1x128xf32>
    %69 = vector.shape_cast %66 : vector<1x128xf32> to vector<1x1x128xf32>
    tpu.vector_store %arg4[%c0_66, %c0_67, %c0_68], %69 {strides = array<i32>} : memref<1x2x128xf32, #tpu.memory_space<vmem>>, vector<1x1x128xf32>,
    %70 = arith.mulf %61, %61 : vector<128x128xf32>
    %cst_69 = arith.constant dense<0.000000e+00> : vector<128xf32>
    %71 = vector.multi_reduction <add>, %70, %cst_69 [0] : vector<128x128xf32> to vector<128xf32>
    %72 = vector.shape_cast %71 : vector<128xf32> to vector<1x128xf32>
    %c0_70 = arith.constant 0 : index
    %c1_71 = arith.constant 1 : index
    %c0_72 = arith.constant 0 : index
    %73 = vector.load %arg4[%c0_70, %c1_71, %c0_72] : memref<1x2x128xf32, #tpu.memory_space<vmem>>, vector<1x1x128xf32>
    %74 = vector.shape_cast %73 : vector<1x1x128xf32> to vector<1x128xf32>
    %75 = vector.shape_cast %72 : vector<1x128xf32> to vector<1x1x128xf32>
    tpu.vector_store %arg4[%c0_70, %c1_71, %c0_72], %75 {strides = array<i32>} : memref<1x2x128xf32, #tpu.memory_space<vmem>>, vector<1x1x128xf32>,
    return
  }
  func.func @transform_0(%arg0: i32) -> (i32, i32, i32, i32) {
    %c0_i32 = arith.constant 0 : i32
    %c0_i32_0 = arith.constant 0 : i32
    %c0_i32_1 = arith.constant 0 : i32
    %c0_i32_2 = arith.constant 0 : i32
    return %arg0, %c0_i32, %c0_i32_0, %c0_i32_1 : i32, i32, i32, i32
  }
  func.func @transform_1(%arg0: i32) -> (i32, i32, i32) {
    %c0_i32 = arith.constant 0 : i32
    %c0_i32_0 = arith.constant 0 : i32
    %c0_i32_1 = arith.constant 0 : i32
    %c0_i32_2 = arith.constant 0 : i32
    return %c0_i32, %c0_i32_0, %c0_i32_1 : i32, i32, i32
  }
  func.func @transform_2(%arg0: i32) -> (i32, i32, i32) {
    %c0_i32 = arith.constant 0 : i32
    %c0_i32_0 = arith.constant 0 : i32
    %c0_i32_1 = arith.constant 0 : i32
    return %arg0, %c0_i32, %c0_i32_0 : i32, i32, i32
  }
  func.func @transform_3(%arg0: i32) -> (i32, i32, i32) {
    %c0_i32 = arith.constant 0 : i32
    %c0_i32_0 = arith.constant 0 : i32
    %c0_i32_1 = arith.constant 0 : i32
    return %arg0, %c0_i32, %c0_i32_0 : i32, i32, i32
  }
}

</mosaic_0001>

<llo_original>
// kernel: _lambda_.5
$region0: #{_lambda_.5}
  #allocation0 [shape = 'u32[]', space=smem, size = 0x4, offset = 0x4, fixed_abs, tag = 'smem constant byte address 0x4 - core index']
  #allocation1 [shape = 'u32[144,128]{1,0:T(1,128)}', space=vmem, size = 0x12000, scoped, tag = 'internal scratch']
  %s0 = inlined_call_operand.vmem [shape: f32[4,128,128], index: 0, kind: input, shape index: {}]
  %s1 = inlined_call_operand.vmem [shape: f32[1,128], index: 1, kind: input, shape index: {}]
  %s2 = inlined_call_operand.vmem [shape: f32[1,128], index: 2, kind: input, shape index: {}]
  %s3 = inlined_call_operand.vmem [shape: f32[4,128,128], index: 3, kind: output, shape index: {}]
  %s4 = sld [smem:[#allocation0]]
  $region45: #{_lambda_.5} parent=0
    _
  %s6 = ssub.s32 1, %s4
  %s7 = scalar_select 0, %s6, %s4
  loop: start=0, step=1, limit=6
  $region2: #{_lambda_.5} parent=0 // loop_pre_header
    _
  $region3: #{_lambda_.5} parent=0 // loop_header
    %s9 = sphi 0, %s13
    %p10 = scmp.ge.s32.totalorder %s9, 6
    %s19 = sphi 0, %s21
    %s22 = sphi 0, %s19
    %s23 = sphi 0, %s22
    %s39 = sphi 0, %s23
    %s43 = sphi 0, %s43
    %s45 = sphi 0, %s43
    %s46 = sphi 0, %s45
    %s60 = sphi 0, %s46
    %s64 = sphi 0, %s64
    %s66 = sphi 0, %s64
    %s67 = sphi 0, %s66
    %s81 = sphi 0, %s67
    %s87 = sphi 0, %s89
    %s90 = sphi 0, %s87
    %s91 = sphi 0, %s90
    %s107 = sphi 0, %s91
  $region4: #{_lambda_.5} parent=0 // loop_header_branch
    %12 = sbr.rel (%p10) target = $region8
  $region5: #{_lambda_.5} parent=0 // loop_body
    %s14 = ssub.s32 %s9, 1
    %s15 = ssub.s32 %s9, 2
    %s16 = sadd.s32 %s9, 1
    %s17 = ssub.s32 %s9, %s16
    %p18 = scmp.eq.s32.totalorder %s17, 0
    %s20 = sadd.s32 %s19, 1
    %s21 = scalar_select %p18, %s19, %s20
    %p24 = pneg %p18
    %p25 = scmp.eq.s32.totalorder %s9, 3
    %p26 = por %p24, %p25
    %p27 = scmp.ne.s32.totalorder %s19, %s22
    %p28 = scmp.eq.s32.totalorder %s9, 0
    %p29 = por %p27, %p28
    %p30 = scmp.ne.s32.totalorder %s19, %s22
    %p31 = scmp.eq.s32.totalorder %s14, 3
    %p32 = por %p30, %p31
    %p33 = scmp.ne.s32.totalorder %s22, %s23
    %p34 = scmp.eq.s32.totalorder %s14, 0
    %p35 = por %p33, %p34
    %p36 = scmp.ne.s32.totalorder %s22, %s23
    %p37 = scmp.eq.s32.totalorder %s15, 3
    %p38 = por %p36, %p37
    %p40 = scmp.ne.s32.totalorder %s23, %s39
    %p41 = scmp.eq.s32.totalorder %s15, 0
    %p42 = por %p40, %p41
    %s44 = sadd.s32 %s43, 1
    %p47 = scmp.eq.s32.totalorder %s9, 3
    %p48 = scmp.ne.s32.totalorder %s43, %s45
    %p49 = scmp.eq.s32.totalorder %s9, 0
    %p50 = por %p48, %p49
    %p51 = scmp.ne.s32.totalorder %s43, %s45
    %p52 = scmp.eq.s32.totalorder %s14, 3
    %p53 = por %p51, %p52
    %p54 = scmp.ne.s32.totalorder %s45, %s46
    %p55 = scmp.eq.s32.totalorder %s14, 0
    %p56 = por %p54, %p55
    %p57 = scmp.ne.s32.totalorder %s45, %s46
    %p58 = scmp.eq.s32.totalorder %s15, 3
    %p59 = por %p57, %p58
    %p61 = scmp.ne.s32.totalorder %s46, %s60
    %p62 = scmp.eq.s32.totalorder %s15, 0
    %p63 = por %p61, %p62
    %s65 = sadd.s32 %s64, 1
    %p68 = scmp.eq.s32.totalorder %s9, 3
    %p69 = scmp.ne.s32.totalorder %s64, %s66
    %p70 = scmp.eq.s32.totalorder %s9, 0
    %p71 = por %p69, %p70
    %p72 = scmp.ne.s32.totalorder %s64, %s66
    %p73 = scmp.eq.s32.totalorder %s14, 3
    %p74 = por %p72, %p73
    %p75 = scmp.ne.s32.totalorder %s66, %s67
    %p76 = scmp.eq.s32.totalorder %s14, 0
    %p77 = por %p75, %p76
    %p78 = scmp.ne.s32.totalorder %s66, %s67
    %p79 = scmp.eq.s32.totalorder %s15, 3
    %p80 = por %p78, %p79
    %p82 = scmp.ne.s32.totalorder %s67, %s81
    %p83 = scmp.eq.s32.totalorder %s15, 0
    %p84 = por %p82, %p83
    %s85 = ssub.s32 %s9, %s16
    %p86 = scmp.eq.s32.totalorder %s85, 0
    %s88 = sadd.s32 %s87, 1
    %s89 = scalar_select %p86, %s87, %s88
    %p92 = pneg %p86
    %p93 = scmp.eq.s32.totalorder %s9, 3
    %p94 = por %p92, %p93
    %p95 = scmp.ne.s32.totalorder %s87, %s90
    %p96 = scmp.eq.s32.totalorder %s9, 0
    %p97 = por %p95, %p96
    %p98 = scmp.ne.s32.totalorder %s87, %s90
    %p99 = scmp.eq.s32.totalorder %s14, 3
    %p100 = por %p98, %p99
    %p101 = scmp.ne.s32.totalorder %s90, %s91
    %p102 = scmp.eq.s32.totalorder %s14, 0
    %p103 = por %p101, %p102
    %p104 = scmp.ne.s32.totalorder %s90, %s91
    %p105 = scmp.eq.s32.totalorder %s15, 3
    %p106 = por %p104, %p105
    %p108 = scmp.ne.s32.totalorder %s91, %s107
    %p109 = scmp.eq.s32.totalorder %s15, 0
    %p110 = por %p108, %p109
    %p111 = scmp.le.s32.totalorder 1, %s9
    %p112 = scmp.lt.s32.totalorder %s9, 5
    %p113 = pnand %p111, %p112
    %p114 = pneg %p113
    // Predicated region
    $region9: #{_lambda_.5} parent=5 // pred_check
      _
    $region10: #{_lambda_.5} parent=5 // pred_check_branch
      %116 = sbr.rel (%p113) target = $region12
    $region11: #{_lambda_.5} parent=5 // pred_region
      %s117 = ssub.s32 %s9, 1
      // Predicated region
      $region13: #{_lambda_.5} parent=11 // pred_check
        %p118 = pneg %p56
      $region14: #{_lambda_.5} parent=11 // pred_check_branch
        %120 = sbr.rel (%p118) target = $region16
      $region15: #{_lambda_.5} parent=11 // pred_region
        _
      $region16: #{_lambda_.5} parent=11 // pred_fallthru
        _
      // Predicated region
      $region17: #{_lambda_.5} parent=11 // pred_check
        %p121 = pneg %p77
      $region18: #{_lambda_.5} parent=11 // pred_check_branch
        %123 = sbr.rel (%p121) target = $region20
      $region19: #{_lambda_.5} parent=11 // pred_region
        _
      $region20: #{_lambda_.5} parent=11 // pred_fallthru
        _
    $region12: #{_lambda_.5} parent=5 // pred_fallthru
      _
    %p124 = scmp.lt.s32.totalorder %s9, 4
    // Predicated region
    $region21: #{_lambda_.5} parent=5 // pred_check
      %p125 = pneg %p124
    $region22: #{_lambda_.5} parent=5 // pred_check_branch
      %127 = sbr.rel (%p125) target = $region24
    $region23: #{_lambda_.5} parent=5 // pred_region
      // Predicated region
      $region25: #{_lambda_.5} parent=23 // pred_check
        %p128 = pneg %p29
      $region26: #{_lambda_.5} parent=23 // pred_check_branch
        %130 = sbr.rel (%p128) target = $region28
      $region27: #{_lambda_.5} parent=23 // pred_region
        %p131 = scmp.lt.s32.totalorder %s9, 3
        %s132 = scalar_select %p131, %s9, 3
        %s133 = smul.addr %s132, 16
        %s134 = smul.addr %s133, 8
        %s135 = scalar_lea.vmem %s0, %s134
      $region28: #{_lambda_.5} parent=23 // pred_fallthru
        _
    $region24: #{_lambda_.5} parent=5 // pred_fallthru
      _
    %p136 = scmp.le.s32.totalorder 1, %s9
    %p137 = scmp.lt.s32.totalorder %s9, 5
    %p138 = pnand %p136, %p137
    %p139 = pneg %p138
    // Predicated region
    $region29: #{_lambda_.5} parent=5 // pred_check
      _
    $region30: #{_lambda_.5} parent=5 // pred_check_branch
      %141 = sbr.rel (%p138) target = $region32
    $region31: #{_lambda_.5} parent=5 // pred_region
      %s142 = ssub.s32 %s9, 1
      %p143 = scmp.lt.s32.totalorder %s14, 3
      %s144 = scalar_select %p143, %s14, 3
      %s145 = smul.addr %s144, 16
      %s146 = smul.addr %s145, 8
      %s147 = scalar_lea.vmem %s0, %s146
      %p148 = pneg %p35
      %p149 = pneg %p32
      %p150 = pneg %p56
      %p151 = pneg %p53
      %p152 = pneg %p77
      %p153 = pneg %p74
      %p154 = pneg %p103
      %p155 = pneg %p100
      %p156 = scmp.lt.s32.totalorder %s14, 3
      %s157 = scalar_select %p156, %s14, 3
      %s158 = smul.addr %s157, 16
      %s159 = smul.addr %s158, 8
      %s160 = scalar_lea.vmem %s3, %s159
      %p161 = scmp.lt.s32.totalorder %s14, 3
      %s162 = scalar_select %p161, %s14, 3
      %s163 = smul.addr %s162, 16
      %s164 = smul.addr %s163, 8
      %s165 = scalar_lea.vmem %s0, %s164
      %p166 = scmp.lt.s32.totalorder %s14, 3
      %s167 = scalar_select %p166, %s14, 3
      %s168 = smul.addr %s167, 16
      %s169 = smul.addr %s168, 8
      %s170 = scalar_lea.vmem %s3, %s169
      %v171 = vld [vmem:[%s165] sm:$0xff]
      %v172 = vld [vmem:[%s165 + $0x8] sm:$0xff]
      %v173 = vld [vmem:[%s165 + $0x10] sm:$0xff]
      %v174 = vld [vmem:[%s165 + $0x18] sm:$0xff]
      %v175 = vld [vmem:[%s165 + $0x20] sm:$0xff]
      %v176 = vld [vmem:[%s165 + $0x28] sm:$0xff]
      %v177 = vld [vmem:[%s165 + $0x30] sm:$0xff]
      %v178 = vld [vmem:[%s165 + $0x38] sm:$0xff]
      %v179 = vld [vmem:[%s165 + $0x40] sm:$0xff]
      %v180 = vld [vmem:[%s165 + $0x48] sm:$0xff]
      %v181 = vld [vmem:[%s165 + $0x50] sm:$0xff]
      %v182 = vld [vmem:[%s165 + $0x58] sm:$0xff]
      %v183 = vld [vmem:[%s165 + $0x60] sm:$0xff]
      %v184 = vld [vmem:[%s165 + $0x68] sm:$0xff]
      %v185 = vld [vmem:[%s165 + $0x70] sm:$0xff]
      %v186 = vld [vmem:[%s165 + $0x78] sm:$0xff]
      %v187 = vld [vmem:[%s1] sm:$0x1]
      %v189 = vlaneseq
      %v190 = vshrl.u32 %v189, 7
      %v191 = vsub.s32 0, %v190
      %v192 = vrot.slane %v187, %v191
      %v194 = vmul.f32 %v171, %v192
      %v195 = vmul.f32 %v172, %v192
      %v196 = vmul.f32 %v173, %v192
      %v197 = vmul.f32 %v174, %v192
      %v198 = vmul.f32 %v175, %v192
      %v199 = vmul.f32 %v176, %v192
      %v200 = vmul.f32 %v177, %v192
      %v201 = vmul.f32 %v178, %v192
      %v202 = vmul.f32 %v179, %v192
      %v203 = vmul.f32 %v180, %v192
      %v204 = vmul.f32 %v181, %v192
      %v205 = vmul.f32 %v182, %v192
      %v206 = vmul.f32 %v183, %v192
      %v207 = vmul.f32 %v184, %v192
      %v208 = vmul.f32 %v185, %v192
      %v209 = vmul.f32 %v186, %v192
      %v210 = vld [vmem:[%s2] sm:$0x1]
      %v212 = vlaneseq
      %v213 = vshrl.u32 %v212, 7
      %v214 = vsub.s32 0, %v213
      %v215 = vrot.slane %v210, %v214
      %v217 = vadd.f32 %v194, %v215
      %v218 = vadd.f32 %v195, %v215
      %v219 = vadd.f32 %v196, %v215
      %v220 = vadd.f32 %v197, %v215
      %v221 = vadd.f32 %v198, %v215
      %v222 = vadd.f32 %v199, %v215
      %v223 = vadd.f32 %v200, %v215
      %v224 = vadd.f32 %v201, %v215
      %v225 = vadd.f32 %v202, %v215
      %v226 = vadd.f32 %v203, %v215
      %v227 = vadd.f32 %v204, %v215
      %v228 = vadd.f32 %v205, %v215
      %v229 = vadd.f32 %v206, %v215
      %v230 = vadd.f32 %v207, %v215
      %v231 = vadd.f32 %v208, %v215
      %v232 = vadd.f32 %v209, %v215
      %v233 = vmax.f32 %v217, 0.0
      %v234 = vmax.f32 %v218, 0.0
      %v235 = vmax.f32 %v219, 0.0
      %v236 = vmax.f32 %v220, 0.0
      %v237 = vmax.f32 %v221, 0.0
      %v238 = vmax.f32 %v222, 0.0
      %v239 = vmax.f32 %v223, 0.0
      %v240 = vmax.f32 %v224, 0.0
      %v241 = vmax.f32 %v225, 0.0
      %v242 = vmax.f32 %v226, 0.0
      %v243 = vmax.f32 %v227, 0.0
      %v244 = vmax.f32 %v228, 0.0
      %v245 = vmax.f32 %v229, 0.0
      %v246 = vmax.f32 %v230, 0.0
      %v247 = vmax.f32 %v231, 0.0
      %v248 = vmax.f32 %v232, 0.0
      %249 = vst [vmem:[%s170] sm:$0xff] %v233
      %250 = vst [vmem:[%s170 + $0x8] sm:$0xff] %v234
      %251 = vst [vmem:[%s170 + $0x10] sm:$0xff] %v235
      %252 = vst [vmem:[%s170 + $0x18] sm:$0xff] %v236
      %253 = vst [vmem:[%s170 + $0x20] sm:$0xff] %v237
      %254 = vst [vmem:[%s170 + $0x28] sm:$0xff] %v238
      %255 = vst [vmem:[%s170 + $0x30] sm:$0xff] %v239
      %256 = vst [vmem:[%s170 + $0x38] sm:$0xff] %v240
      %257 = vst [vmem:[%s170 + $0x40] sm:$0xff] %v241
      %258 = vst [vmem:[%s170 + $0x48] sm:$0xff] %v242
      %259 = vst [vmem:[%s170 + $0x50] sm:$0xff] %v243
      %260 = vst [vmem:[%s170 + $0x58] sm:$0xff] %v244
      %261 = vst [vmem:[%s170 + $0x60] sm:$0xff] %v245
      %262 = vst [vmem:[%s170 + $0x68] sm:$0xff] %v246
      %263 = vst [vmem:[%s170 + $0x70] sm:$0xff] %v247
      %264 = vst [vmem:[%s170 + $0x78] sm:$0xff] %v248
      %p265 = scmp.lt.s32.totalorder %s14, 3
      %s266 = scalar_select %p265, %s14, 3
      %s267 = smul.addr %s266, 16
      %s268 = smul.addr %s267, 8
      %s269 = scalar_lea.vmem %s3, %s268
      // Predicated region
      $region33: #{_lambda_.5} parent=31 // pred_check
        %p270 = pneg %p100
      $region34: #{_lambda_.5} parent=31 // pred_check_branch
        %272 = sbr.rel (%p270) target = $region36
      $region35: #{_lambda_.5} parent=31 // pred_region
        _
      $region36: #{_lambda_.5} parent=31 // pred_fallthru
        _
    $region32: #{_lambda_.5} parent=5 // pred_fallthru
      _
    %p273 = scmp.le.s32.totalorder 2, %s9
    // Predicated region
    $region37: #{_lambda_.5} parent=5 // pred_check
      %p274 = pneg %p273
    $region38: #{_lambda_.5} parent=5 // pred_check_branch
      %276 = sbr.rel (%p274) target = $region40
    $region39: #{_lambda_.5} parent=5 // pred_region
      %s277 = ssub.s32 %s9, 2
      // Predicated region
      $region41: #{_lambda_.5} parent=39 // pred_check
        %p278 = pneg %p106
      $region42: #{_lambda_.5} parent=39 // pred_check_branch
        %280 = sbr.rel (%p278) target = $region44
      $region43: #{_lambda_.5} parent=39 // pred_region
        %p281 = scmp.lt.s32.totalorder %s15, 3
        %s282 = scalar_select %p281, %s15, 3
        %s283 = smul.addr %s282, 16
        %s284 = smul.addr %s283, 8
        %s285 = scalar_lea.vmem %s3, %s284
      $region44: #{_lambda_.5} parent=39 // pred_fallthru
        _
    $region40: #{_lambda_.5} parent=5 // pred_fallthru
      _
  $region6: #{_lambda_.5} parent=0 // loop_footer
    %s13 = sadd.s32 1, %s9
  $region7: #{_lambda_.5} parent=0 // loop_footer_branch
    %8 = sbr.rel target = $region3
  $region8: #{_lambda_.5} parent=0 // loop_exit
    _

// kernel: _lambda_.4
$region0: #{_lambda_.4}
  #allocation0 [shape = 'u32[]', space=smem, size = 0x4, offset = 0x4, fixed_abs, tag = 'smem constant byte address 0x4 - core index']
  #allocation1 [shape = 'u32[144,128]{1,0:T(1,128)}', space=vmem, size = 0x12000, scoped, tag = 'internal scratch']
  %s0 = inlined_call_operand.vmem [shape: bf16[4,10,18,4], index: 0, kind: input, shape index: {}]
  %s1 = inlined_call_operand.vmem [shape: bf16[9,4,128], index: 1, kind: input, shape index: {}]
  %s2 = inlined_call_operand.vmem [shape: f32[4,128,128], index: 2, kind: output, shape index: {0}]
  %s3 = inlined_call_operand.vmem [shape: f32[4,2,128], index: 3, kind: output, shape index: {1}]
  %4 = xla_tuple %s2, %s3
  %s5 = sld [smem:[#allocation0]]
  $region49: #{_lambda_.4} parent=0
    _
  %s7 = ssub.s32 1, %s5
  %s8 = scalar_select 0, %s7, %s5
  loop: start=0, step=1, limit=6
  $region2: #{_lambda_.4} parent=0 // loop_pre_header
    _
  $region3: #{_lambda_.4} parent=0 // loop_header
    %s10 = sphi 0, %s14
    %p11 = scmp.ge.s32.totalorder %s10, 6
    %s20 = sphi 0, %s22
    %s23 = sphi 0, %s20
    %s24 = sphi 0, %s23
    %s40 = sphi 0, %s24
    %s44 = sphi 0, %s44
    %s46 = sphi 0, %s44
    %s47 = sphi 0, %s46
    %s61 = sphi 0, %s47
    %s67 = sphi 0, %s69
    %s70 = sphi 0, %s67
    %s71 = sphi 0, %s70
    %s87 = sphi 0, %s71
    %s93 = sphi 0, %s95
    %s96 = sphi 0, %s93
    %s97 = sphi 0, %s96
    %s113 = sphi 0, %s97
  $region4: #{_lambda_.4} parent=0 // loop_header_branch
    %13 = sbr.rel (%p11) target = $region8
  $region5: #{_lambda_.4} parent=0 // loop_body
    %s15 = ssub.s32 %s10, 1
    %s16 = ssub.s32 %s10, 2
    %s17 = sadd.s32 %s10, 1
    %s18 = ssub.s32 %s10, %s17
    %p19 = scmp.eq.s32.totalorder %s18, 0
    %s21 = sadd.s32 %s20, 1
    %s22 = scalar_select %p19, %s20, %s21
    %p25 = pneg %p19
    %p26 = scmp.eq.s32.totalorder %s10, 3
    %p27 = por %p25, %p26
    %p28 = scmp.ne.s32.totalorder %s20, %s23
    %p29 = scmp.eq.s32.totalorder %s10, 0
    %p30 = por %p28, %p29
    %p31 = scmp.ne.s32.totalorder %s20, %s23
    %p32 = scmp.eq.s32.totalorder %s15, 3
    %p33 = por %p31, %p32
    %p34 = scmp.ne.s32.totalorder %s23, %s24
    %p35 = scmp.eq.s32.totalorder %s15, 0
    %p36 = por %p34, %p35
    %p37 = scmp.ne.s32.totalorder %s23, %s24
    %p38 = scmp.eq.s32.totalorder %s16, 3
    %p39 = por %p37, %p38
    %p41 = scmp.ne.s32.totalorder %s24, %s40
    %p42 = scmp.eq.s32.totalorder %s16, 0
    %p43 = por %p41, %p42
    %s45 = sadd.s32 %s44, 1
    %p48 = scmp.eq.s32.totalorder %s10, 3
    %p49 = scmp.ne.s32.totalorder %s44, %s46
    %p50 = scmp.eq.s32.totalorder %s10, 0
    %p51 = por %p49, %p50
    %p52 = scmp.ne.s32.totalorder %s44, %s46
    %p53 = scmp.eq.s32.totalorder %s15, 3
    %p54 = por %p52, %p53
    %p55 = scmp.ne.s32.totalorder %s46, %s47
    %p56 = scmp.eq.s32.totalorder %s15, 0
    %p57 = por %p55, %p56
    %p58 = scmp.ne.s32.totalorder %s46, %s47
    %p59 = scmp.eq.s32.totalorder %s16, 3
    %p60 = por %p58, %p59
    %p62 = scmp.ne.s32.totalorder %s47, %s61
    %p63 = scmp.eq.s32.totalorder %s16, 0
    %p64 = por %p62, %p63
    %s65 = ssub.s32 %s10, %s17
    %p66 = scmp.eq.s32.totalorder %s65, 0
    %s68 = sadd.s32 %s67, 1
    %s69 = scalar_select %p66, %s67, %s68
    %p72 = pneg %p66
    %p73 = scmp.eq.s32.totalorder %s10, 3
    %p74 = por %p72, %p73
    %p75 = scmp.ne.s32.totalorder %s67, %s70
    %p76 = scmp.eq.s32.totalorder %s10, 0
    %p77 = por %p75, %p76
    %p78 = scmp.ne.s32.totalorder %s67, %s70
    %p79 = scmp.eq.s32.totalorder %s15, 3
    %p80 = por %p78, %p79
    %p81 = scmp.ne.s32.totalorder %s70, %s71
    %p82 = scmp.eq.s32.totalorder %s15, 0
    %p83 = por %p81, %p82
    %p84 = scmp.ne.s32.totalorder %s70, %s71
    %p85 = scmp.eq.s32.totalorder %s16, 3
    %p86 = por %p84, %p85
    %p88 = scmp.ne.s32.totalorder %s71, %s87
    %p89 = scmp.eq.s32.totalorder %s16, 0
    %p90 = por %p88, %p89
    %s91 = ssub.s32 %s10, %s17
    %p92 = scmp.eq.s32.totalorder %s91, 0
    %s94 = sadd.s32 %s93, 1
    %s95 = scalar_select %p92, %s93, %s94
    %p98 = pneg %p92
    %p99 = scmp.eq.s32.totalorder %s10, 3
    %p100 = por %p98, %p99
    %p101 = scmp.ne.s32.totalorder %s93, %s96
    %p102 = scmp.eq.s32.totalorder %s10, 0
    %p103 = por %p101, %p102
    %p104 = scmp.ne.s32.totalorder %s93, %s96
    %p105 = scmp.eq.s32.totalorder %s15, 3
    %p106 = por %p104, %p105
    %p107 = scmp.ne.s32.totalorder %s96, %s97
    %p108 = scmp.eq.s32.totalorder %s15, 0
    %p109 = por %p107, %p108
    %p110 = scmp.ne.s32.totalorder %s96, %s97
    %p111 = scmp.eq.s32.totalorder %s16, 3
    %p112 = por %p110, %p111
    %p114 = scmp.ne.s32.totalorder %s97, %s113
    %p115 = scmp.eq.s32.totalorder %s16, 0
    %p116 = por %p114, %p115
    %p117 = scmp.le.s32.totalorder 1, %s10
    %p118 = scmp.lt.s32.totalorder %s10, 5
    %p119 = pnand %p117, %p118
    %p120 = pneg %p119
    // Predicated region
    $region9: #{_lambda_.4} parent=5 // pred_check
      _
    $region10: #{_lambda_.4} parent=5 // pred_check_branch
      %122 = sbr.rel (%p119) target = $region12
    $region11: #{_lambda_.4} parent=5 // pred_region
      %s123 = ssub.s32 %s10, 1
      // Predicated region
      $region13: #{_lambda_.4} parent=11 // pred_check
        %p124 = pneg %p57
      $region14: #{_lambda_.4} parent=11 // pred_check_branch
        %126 = sbr.rel (%p124) target = $region16
      $region15: #{_lambda_.4} parent=11 // pred_region
        _
      $region16: #{_lambda_.4} parent=11 // pred_fallthru
        _
    $region12: #{_lambda_.4} parent=5 // pred_fallthru
      _
    %p127 = scmp.lt.s32.totalorder %s10, 4
    // Predicated region
    $region17: #{_lambda_.4} parent=5 // pred_check
      %p128 = pneg %p127
    $region18: #{_lambda_.4} parent=5 // pred_check_branch
      %130 = sbr.rel (%p128) target = $region20
    $region19: #{_lambda_.4} parent=5 // pred_region
      // Predicated region
      $region21: #{_lambda_.4} parent=19 // pred_check
        %p131 = pneg %p30
      $region22: #{_lambda_.4} parent=19 // pred_check_branch
        %133 = sbr.rel (%p131) target = $region24
      $region23: #{_lambda_.4} parent=19 // pred_region
        %p134 = scmp.lt.s32.totalorder %s10, 3
        %s135 = scalar_select %p134, %s10, 3
        %s136 = smul.addr %s135, 30
        %s137 = smul.addr %s136, 4
        %s138 = scalar_lea.vmem %s0, %s137
      $region24: #{_lambda_.4} parent=19 // pred_fallthru
        _
    $region20: #{_lambda_.4} parent=5 // pred_fallthru
      _
    %p139 = scmp.le.s32.totalorder 1, %s10
    %p140 = scmp.lt.s32.totalorder %s10, 5
    %p141 = pnand %p139, %p140
    %p142 = pneg %p141
    // Predicated region
    $region25: #{_lambda_.4} parent=5 // pred_check
      _
    $region26: #{_lambda_.4} parent=5 // pred_check_branch
      %144 = sbr.rel (%p141) target = $region28
    $region27: #{_lambda_.4} parent=5 // pred_region
      %s145 = ssub.s32 %s10, 1
      %p146 = scmp.lt.s32.totalorder %s15, 3
      %s147 = scalar_select %p146, %s15, 3
      %s148 = smul.addr %s147, 30
      %s149 = smul.addr %s148, 4
      %s150 = scalar_lea.vmem %s0, %s149
      %p151 = pneg %p36
      %p152 = pneg %p33
      %p153 = pneg %p57
      %p154 = pneg %p54
      %p155 = pneg %p83
      %p156 = pneg %p80
      %p157 = scmp.lt.s32.totalorder %s15, 3
      %s158 = scalar_select %p157, %s15, 3
      %s159 = smul.addr %s158, 16
      %s160 = smul.addr %s159, 8
      %s161 = scalar_lea.vmem %s2, %s160
      %p162 = pneg %p109
      %p163 = pneg %p106
      %p164 = scmp.lt.s32.totalorder %s15, 3
      %s165 = scalar_select %p164, %s15, 3
      %s166 = smul.addr %s165, 2
      %s167 = scalar_lea.vmem %s3, %s166
      %p168 = scmp.lt.s32.totalorder %s15, 3
      %s169 = scalar_select %p168, %s15, 3
      %s170 = smul.addr %s169, 30
      %s171 = smul.addr %s170, 4
      %s172 = scalar_lea.vmem %s0, %s171
      %p173 = scmp.lt.s32.totalorder %s15, 3
      %s174 = scalar_select %p173, %s15, 3
      %s175 = smul.addr %s174, 16
      %s176 = smul.addr %s175, 8
      %s177 = scalar_lea.vmem %s2, %s176
      %p178 = scmp.lt.s32.totalorder %s15, 3
      %s179 = scalar_select %p178, %s15, 3
      %s180 = smul.addr %s179, 2
      %s181 = scalar_lea.vmem %s3, %s180
      %v183 = vld [vmem:[%s172] sm:$0xf]
      %v184 = vld [vmem:[%s172 + $0x4] sm:$0xf]
      %v185 = vld [vmem:[%s172 + $0xc] sm:$0xf]
      %v186 = vld [vmem:[%s172 + $0x10] sm:$0xf]
      %v187 = vld [vmem:[%s172 + $0x18] sm:$0xf]
      %v188 = vld [vmem:[%s172 + $0x1c] sm:$0xf]
      %v189 = vld [vmem:[%s172 + $0x24] sm:$0xf]
      %v190 = vld [vmem:[%s172 + $0x28] sm:$0xf]
      %v191 = vld [vmem:[%s172 + $0x30] sm:$0xf]
      %v192 = vld [vmem:[%s172 + $0x34] sm:$0xf]
      %v193 = vld [vmem:[%s172 + $0x3c] sm:$0xf]
      %v194 = vld [vmem:[%s172 + $0x40] sm:$0xf]
      %v195 = vld [vmem:[%s172 + $0x48] sm:$0xf]
      %v196 = vld [vmem:[%s172 + $0x4c] sm:$0xf]
      %v197 = vld [vmem:[%s172 + $0x54] sm:$0xf]
      %v198 = vld [vmem:[%s172 + $0x58] sm:$0xf]
      %v199 = vld [vmem:[%s1] sm:$0x3]
      %v200 = vld [vmem:[%s172 + $0x8] sm:$0x1]
      %v201 = vld [vmem:[%s172 + $0x14] sm:$0x1]
      %v202 = vld [vmem:[%s172 + $0x20] sm:$0x1]
      %v203 = vld [vmem:[%s172 + $0x2c] sm:$0x1]
      %v204 = vld [vmem:[%s172 + $0x38] sm:$0x1]
      %v205 = vld [vmem:[%s172 + $0x44] sm:$0x1]
      %v206 = vld [vmem:[%s172 + $0x50] sm:$0x1]
      %v207 = vld [vmem:[%s172 + $0x5c] sm:$0x1]
      %vm208 = vsmask.f32 3328
      %vm209 = vsmask.f32 7440
      %vm210 = vmor %vm208, %vm209
      %v212 = vshrl.u32 %v183, 16
      %v214 = vrot.slane %v212, 4
      %v215 = vshll.u32 %v183, 16
      %v217 = vrot.slane %v215, 5
      %v218 = vor.u32 %v214, %v217
      %v219 = vrot.slane %v218, 4
      %v221 = vshll.u32 %v184, 16
      %v223 = vrot.slane %v221, 5
      %v224 = vsel %vm210, %v219, %v223
      %v225 = vshrl.u32 %v184, 16
      %v227 = vrot.slane %v225, 4
      %v228 = vor.u32 %v227, %v223
      %v229 = vrot.slane %v228, 4
      %v231 = vshll.u32 %v200, 16
      %v233 = vrot.slane %v231, 5
      %v234 = vsel %vm210, %v229, %v233
      %v236 = vshrl.u32 %v185, 16
      %v238 = vrot.slane %v236, 4
      %v239 = vshll.u32 %v185, 16
      %v241 = vrot.slane %v239, 5
      %v242 = vor.u32 %v238, %v241
      %v243 = vrot.slane %v242, 4
      %v245 = vshll.u32 %v186, 16
      %v247 = vrot.slane %v245, 5
      %v248 = vsel %vm210, %v243, %v247
      %v249 = vshrl.u32 %v186, 16
      %v251 = vrot.slane %v249, 4
      %v252 = vor.u32 %v251, %v247
      %v253 = vrot.slane %v252, 4
      %v255 = vshll.u32 %v201, 16
      %v257 = vrot.slane %v255, 5
      %v258 = vsel %vm210, %v253, %v257
      %v260 = vshrl.u32 %v187, 16
      %v262 = vrot.slane %v260, 4
      %v263 = vshll.u32 %v187, 16
      %v265 = vrot.slane %v263, 5
      %v266 = vor.u32 %v262, %v265
      %v267 = vrot.slane %v266, 4
      %v269 = vshll.u32 %v188, 16
      %v271 = vrot.slane %v269, 5
      %v272 = vsel %vm210, %v267, %v271
      %v273 = vshrl.u32 %v188, 16
      %v275 = vrot.slane %v273, 4
      %v276 = vor.u32 %v275, %v271
      %v277 = vrot.slane %v276, 4
      %v279 = vshll.u32 %v202, 16
      %v281 = vrot.slane %v279, 5
      %v282 = vsel %vm210, %v277, %v281
      %v284 = vshrl.u32 %v189, 16
      %v286 = vrot.slane %v284, 4
      %v287 = vshll.u32 %v189, 16
      %v289 = vrot.slane %v287, 5
      %v290 = vor.u32 %v286, %v289
      %v291 = vrot.slane %v290, 4
      %v293 = vshll.u32 %v190, 16
      %v295 = vrot.slane %v293, 5
      %v296 = vsel %vm210, %v291, %v295
      %v297 = vshrl.u32 %v190, 16
      %v299 = vrot.slane %v297, 4
      %v300 = vor.u32 %v299, %v295
      %v301 = vrot.slane %v300, 4
      %v303 = vshll.u32 %v203, 16
      %v305 = vrot.slane %v303, 5
      %v306 = vsel %vm210, %v301, %v305
      %v308 = vshrl.u32 %v191, 16
      %v310 = vrot.slane %v308, 4
      %v311 = vshll.u32 %v191, 16
      %v313 = vrot.slane %v311, 5
      %v314 = vor.u32 %v310, %v313
      %v315 = vrot.slane %v314, 4
      %v317 = vshll.u32 %v192, 16
      %v319 = vrot.slane %v317, 5
      %v320 = vsel %vm210, %v315, %v319
      %v321 = vshrl.u32 %v192, 16
      %v323 = vrot.slane %v321, 4
      %v324 = vor.u32 %v323, %v319
      %v325 = vrot.slane %v324, 4
      %v327 = vshll.u32 %v204, 16
      %v329 = vrot.slane %v327, 5
      %v330 = vsel %vm210, %v325, %v329
      %v332 = vshrl.u32 %v193, 16
      %v334 = vrot.slane %v332, 4
      %v335 = vshll.u32 %v193, 16
      %v337 = vrot.slane %v335, 5
      %v338 = vor.u32 %v334, %v337
      %v339 = vrot.slane %v338, 4
      %v341 = vshll.u32 %v194, 16
      %v343 = vrot.slane %v341, 5
      %v344 = vsel %vm210, %v339, %v343
      %v345 = vshrl.u32 %v194, 16
      %v347 = vrot.slane %v345, 4
      %v348 = vor.u32 %v347, %v343
      %v349 = vrot.slane %v348, 4
      %v351 = vshll.u32 %v205, 16
      %v353 = vrot.slane %v351, 5
      %v354 = vsel %vm210, %v349, %v353
      %v356 = vshrl.u32 %v195, 16
      %v358 = vrot.slane %v356, 4
      %v359 = vshll.u32 %v195, 16
      %v361 = vrot.slane %v359, 5
      %v362 = vor.u32 %v358, %v361
      %v363 = vrot.slane %v362, 4
      %v365 = vshll.u32 %v196, 16
      %v367 = vrot.slane %v365, 5
      %v368 = vsel %vm210, %v363, %v367
      %v369 = vshrl.u32 %v196, 16
      %v371 = vrot.slane %v369, 4
      %v372 = vor.u32 %v371, %v367
      %v373 = vrot.slane %v372, 4
      %v375 = vshll.u32 %v206, 16
      %v377 = vrot.slane %v375, 5
      %v378 = vsel %vm210, %v373, %v377
      %v380 = vshrl.u32 %v197, 16
      %v382 = vrot.slane %v380, 4
      %v383 = vshll.u32 %v197, 16
      %v385 = vrot.slane %v383, 5
      %v386 = vor.u32 %v382, %v385
      %v387 = vrot.slane %v386, 4
      %v389 = vshll.u32 %v198, 16
      %v391 = vrot.slane %v389, 5
      %v392 = vsel %vm210, %v387, %v391
      %v393 = vshrl.u32 %v198, 16
      %v395 = vrot.slane %v393, 4
      %v396 = vor.u32 %v395, %v391
      %v397 = vrot.slane %v396, 4
      %v399 = vshll.u32 %v207, 16
      %v401 = vrot.slane %v399, 5
      %v402 = vsel %vm210, %v397, %v401
      %s403 = scalar_lea.vmem %s1, 2
      %v404 = vld [vmem:[%s403] sm:$0x3]
      %v405 = vunpack.c.l.b16 %v224
      %v406 = vunpack.c.l.b16 %v234
      %v407 = vunpack.c.l.b16 %v248
      %v408 = vunpack.c.l.b16 %v258
      %v409 = vunpack.c.l.b16 %v272
      %v410 = vunpack.c.l.b16 %v282
      %v411 = vunpack.c.l.b16 %v296
      %v412 = vunpack.c.l.b16 %v306
      %v413 = vunpack.c.l.b16 %v320
      %v414 = vunpack.c.l.b16 %v330
      %v415 = vunpack.c.l.b16 %v344
      %v416 = vunpack.c.l.b16 %v354
      %v417 = vunpack.c.l.b16 %v368
      %v418 = vunpack.c.l.b16 %v378
      %v419 = vunpack.c.l.b16 %v392
      %v420 = vunpack.c.l.b16 %v402
      %v421 = vpack.c.b16 %v406, %v405
      %v422 = vpack.c.b16 %v408, %v407
      %v423 = vpack.c.b16 %v410, %v409
      %v424 = vpack.c.b16 %v412, %v411
      %v425 = vpack.c.b16 %v414, %v413
      %v426 = vpack.c.b16 %v416, %v415
      %v427 = vpack.c.b16 %v418, %v417
      %v428 = vpack.c.b16 %v420, %v419
      %vm429 = vcmask 31744
      %v431 = vsel %vm429, %v421, 0
      %v434 = vsel %vm429, %v422, 0
      %v437 = vsel %vm429, %v423, 0
      %v440 = vsel %vm429, %v424, 0
      %v443 = vsel %vm429, %v425, 0
      %v446 = vsel %vm429, %v426, 0
      %v449 = vsel %vm429, %v427, 0
      %v452 = vsel %vm429, %v428, 0
      %vm454 = vcmask 1041408
      %v456 = vsel %vm454, %v404, 0
      %458 = vmatprep.subr.bf16.mxu0 0
      %459 = vmatpush1.bf16.msra.mxu0 %v456
      %460 = vmatprep.subr.bf16.mxu0 0
      %461 = vmatpush1.bf16.msra.mxu0 0
      %462 = vmatprep.subr.bf16.mxu0 0
      %463 = vmatpush1.bf16.msra.mxu0 0
      %464 = vmatprep.subr.bf16.mxu0 0
      %465 = vmatpush1.bf16.msra.mxu0 0
      %466 = vmatprep.subr.bf16.mxu0 0
      %467 = vmatpush1.bf16.msra.mxu0 0
      %468 = vmatprep.subr.bf16.mxu0 0
      %469 = vmatpush1.bf16.msra.mxu0 0
      %470 = vmatprep.subr.bf16.mxu0 0
      %471 = vmatpush1.bf16.msra.mxu0 0
      %472 = vmatprep.subr.bf16.mxu0 0
      %473 = vmatpush1.bf16.msra.mxu0 0
      %474 = vmatprep.subr.bf16.mxu0 0
      %475 = vmatpush1.bf16.msra.mxu0 0
      %476 = vmatprep.subr.bf16.mxu0 0
      %477 = vmatpush1.bf16.msra.mxu0 0
      %478 = vmatprep.subr.bf16.mxu0 0
      %479 = vmatpush1.bf16.msra.mxu0 0
      %480 = vmatprep.subr.bf16.mxu0 0
      %481 = vmatpush1.bf16.msra.mxu0 0
      %482 = vmatprep.subr.bf16.mxu0 0
      %483 = vmatpush1.bf16.msra.mxu0 0
      %484 = vmatprep.subr.bf16.mxu0 0
      %485 = vmatpush1.bf16.msra.mxu0 0
      %486 = vmatprep.subr.bf16.mxu0 0
      %487 = vmatpush1.bf16.msra.mxu0 0
      %488 = vmatprep.subr.bf16.mxu0 0
      %489 = vmatpush1.bf16.msra.mxu0 0
      %490 = vmatprep.mubr.bf16.mxu0 0
      %491 = vmatmul.mubr.bf16.gmra.mrb[0].mxu0 %v431
      %v492 = vpop.f32.mrb[0].mxu0
      %v493 = vadd.f32 0.0, %v492
      %v494 = vpop.f32.mrb[0].mxu0
      %v495 = vpop.f32.mrb[0].mxu0
      %v496 = vadd.f32 0.0, %v495
      %v497 = vpop.f32.mrb[0].mxu0
      %498 = vmatprep.mubr.bf16.mxu0 0
      %499 = vmatmul.mubr.bf16.gmra.mrb[0].mxu0 %v434
      %v500 = vpop.f32.mrb[0].mxu0
      %v501 = vadd.f32 0.0, %v500
      %v502 = vpop.f32.mrb[0].mxu0
      %v503 = vpop.f32.mrb[0].mxu0
      %v504 = vadd.f32 0.0, %v503
      %v505 = vpop.f32.mrb[0].mxu0
      %506 = vmatprep.mubr.bf16.mxu0 0
      %507 = vmatmul.mubr.bf16.gmra.mrb[0].mxu0 %v437
      %v508 = vpop.f32.mrb[0].mxu0
      %v509 = vadd.f32 0.0, %v508
      %v510 = vpop.f32.mrb[0].mxu0
      %v511 = vpop.f32.mrb[0].mxu0
      %v512 = vadd.f32 0.0, %v511
      %v513 = vpop.f32.mrb[0].mxu0
      %514 = vmatprep.mubr.bf16.mxu0 0
      %515 = vmatmul.mubr.bf16.gmra.mrb[0].mxu0 %v440
      %v516 = vpop.f32.mrb[0].mxu0
      %v517 = vadd.f32 0.0, %v516
      %v518 = vpop.f32.mrb[0].mxu0
      %v519 = vpop.f32.mrb[0].mxu0
      %v520 = vadd.f32 0.0, %v519
      %v521 = vpop.f32.mrb[0].mxu0
      %522 = vmatprep.mubr.bf16.mxu0 0
      %523 = vmatmul.mubr.bf16.gmra.mrb[0].mxu0 %v443
      %v524 = vpop.f32.mrb[0].mxu0
      %v525 = vadd.f32 0.0, %v524
      %v526 = vpop.f32.mrb[0].mxu0
      %v527 = vpop.f32.mrb[0].mxu0
      %v528 = vadd.f32 0.0, %v527
      %v529 = vpop.f32.mrb[0].mxu0
      %530 = vmatprep.mubr.bf16.mxu0 0
      %531 = vmatmul.mubr.bf16.gmra.mrb[0].mxu0 %v446
      %v532 = vpop.f32.mrb[0].mxu0
      %v533 = vadd.f32 0.0, %v532
      %v534 = vpop.f32.mrb[0].mxu0
      %v535 = vpop.f32.mrb[0].mxu0
      %v536 = vadd.f32 0.0, %v535
      %v537 = vpop.f32.mrb[0].mxu0
      %538 = vmatprep.mubr.bf16.mxu0 0
      %539 = vmatmul.mubr.bf16.gmra.mrb[0].mxu0 %v449
      %v540 = vpop.f32.mrb[0].mxu0
      %v541 = vadd.f32 0.0, %v540
      %v542 = vpop.f32.mrb[0].mxu0
      %v543 = vpop.f32.mrb[0].mxu0
      %v544 = vadd.f32 0.0, %v543
      %v545 = vpop.f32.mrb[0].mxu0
      %546 = vmatprep.mubr.bf16.mxu0 0
      %547 = vmatmul.mubr.bf16.gmra.mrb[0].mxu0 %v452
      %v548 = vpop.f32.mrb[0].mxu0
      %v549 = vadd.f32 0.0, %v548
      %v550 = vpop.f32.mrb[0].mxu0
      %v551 = vpop.f32.mrb[0].mxu0
      %v552 = vadd.f32 0.0, %v551
      %v553 = vpop.f32.mrb[0].mxu0
      %554 = vdwg.mxu0
      %v571 = vunpack.c.l.b16 %v183
      %v572 = vunpack.c.l.b16 %v184
      %v573 = vunpack.c.l.b16 %v185
      %v574 = vunpack.c.l.b16 %v186
      %v575 = vunpack.c.l.b16 %v187
      %v576 = vunpack.c.l.b16 %v188
      %v577 = vunpack.c.l.b16 %v189
      %v578 = vunpack.c.l.b16 %v190
      %v579 = vunpack.c.l.b16 %v191
      %v580 = vunpack.c.l.b16 %v192
      %v581 = vunpack.c.l.b16 %v193
      %v582 = vunpack.c.l.b16 %v194
      %v583 = vunpack.c.l.b16 %v195
      %v584 = vunpack.c.l.b16 %v196
      %v585 = vunpack.c.l.b16 %v197
      %v586 = vunpack.c.l.b16 %v198
      %v587 = vpack.c.b16 %v572, %v571
      %v588 = vpack.c.b16 %v574, %v573
      %v589 = vpack.c.b16 %v576, %v575
      %v590 = vpack.c.b16 %v578, %v577
      %v591 = vpack.c.b16 %v580, %v579
      %v592 = vpack.c.b16 %v582, %v581
      %v593 = vpack.c.b16 %v584, %v583
      %v594 = vpack.c.b16 %v586, %v585
      %v596 = vsel %vm429, %v587, 0
      %v599 = vsel %vm429, %v588, 0
      %v602 = vsel %vm429, %v589, 0
      %v605 = vsel %vm429, %v590, 0
      %v608 = vsel %vm429, %v591, 0
      %v611 = vsel %vm429, %v592, 0
      %v614 = vsel %vm429, %v593, 0
      %v617 = vsel %vm429, %v594, 0
      %v620 = vsel %vm454, %v199, 0
      %622 = vmatprep.subr.bf16.mxu0 0
      %623 = vmatpush1.bf16.msra.mxu0 %v620
      %624 = vmatprep.subr.bf16.mxu0 0
      %625 = vmatpush1.bf16.msra.mxu0 0
      %626 = vmatprep.subr.bf16.mxu0 0
      %627 = vmatpush1.bf16.msra.mxu0 0
      %628 = vmatprep.subr.bf16.mxu0 0
      %629 = vmatpush1.bf16.msra.mxu0 0
      %630 = vmatprep.subr.bf16.mxu0 0
      %631 = vmatpush1.bf16.msra.mxu0 0
      %632 = vmatprep.subr.bf16.mxu0 0
      %633 = vmatpush1.bf16.msra.mxu0 0
      %634 = vmatprep.subr.bf16.mxu0 0
      %635 = vmatpush1.bf16.msra.mxu0 0
      %636 = vmatprep.subr.bf16.mxu0 0
      %637 = vmatpush1.bf16.msra.mxu0 0
      %638 = vmatprep.subr.bf16.mxu0 0
      %639 = vmatpush1.bf16.msra.mxu0 0
      %640 = vmatprep.subr.bf16.mxu0 0
      %641 = vmatpush1.bf16.msra.mxu0 0
      %642 = vmatprep.subr.bf16.mxu0 0
      %643 = vmatpush1.bf16.msra.mxu0 0
      %644 = vmatprep.subr.bf16.mxu0 0
      %645 = vmatpush1.bf16.msra.mxu0 0
      %646 = vmatprep.subr.bf16.mxu0 0
      %647 = vmatpush1.bf16.msra.mxu0 0
      %648 = vmatprep.subr.bf16.mxu0 0
      %649 = vmatpush1.bf16.msra.mxu0 0
      %650 = vmatprep.subr.bf16.mxu0 0
      %651 = vmatpush1.bf16.msra.mxu0 0
      %652 = vmatprep.subr.bf16.mxu0 0
      %653 = vmatpush1.bf16.msra.mxu0 0
      %654 = vmatprep.mubr.bf16.mxu0 0
      %655 = vmatmul.mubr.bf16.gmra.mrb[0].mxu0 %v596
      %v656 = vpop.f32.mrb[0].mxu0
      %v657 = vadd.f32 %v493, %v656
      %v658 = vpop.f32.mrb[0].mxu0
      %v659 = vpop.f32.mrb[0].mxu0
      %v660 = vadd.f32 %v496, %v659
      %v661 = vpop.f32.mrb[0].mxu0
      %662 = vmatprep.mubr.bf16.mxu0 0
      %663 = vmatmul.mubr.bf16.gmra.mrb[0].mxu0 %v599
      %v664 = vpop.f32.mrb[0].mxu0
      %v665 = vadd.f32 %v501, %v664
      %v666 = vpop.f32.mrb[0].mxu0
      %v667 = vpop.f32.mrb[0].mxu0
      %v668 = vadd.f32 %v504, %v667
      %v669 = vpop.f32.mrb[0].mxu0
      %670 = vmatprep.mubr.bf16.mxu0 0
      %671 = vmatmul.mubr.bf16.gmra.mrb[0].mxu0 %v602
      %v672 = vpop.f32.mrb[0].mxu0
      %v673 = vadd.f32 %v509, %v672
      %v674 = vpop.f32.mrb[0].mxu0
      %v675 = vpop.f32.mrb[0].mxu0
      %v676 = vadd.f32 %v512, %v675
      %v677 = vpop.f32.mrb[0].mxu0
      %678 = vmatprep.mubr.bf16.mxu0 0
      %679 = vmatmul.mubr.bf16.gmra.mrb[0].mxu0 %v605
      %v680 = vpop.f32.mrb[0].mxu0
      %v681 = vadd.f32 %v517, %v680
      %v682 = vpop.f32.mrb[0].mxu0
      %v683 = vpop.f32.mrb[0].mxu0
      %v684 = vadd.f32 %v520, %v683
      %v685 = vpop.f32.mrb[0].mxu0
      %686 = vmatprep.mubr.bf16.mxu0 0
      %687 = vmatmul.mubr.bf16.gmra.mrb[0].mxu0 %v608
      %v688 = vpop.f32.mrb[0].mxu0
      %v689 = vadd.f32 %v525, %v688
      %v690 = vpop.f32.mrb[0].mxu0
      %v691 = vpop.f32.mrb[0].mxu0
      %v692 = vadd.f32 %v528, %v691
      %v693 = vpop.f32.mrb[0].mxu0
      %694 = vmatprep.mubr.bf16.mxu0 0
      %695 = vmatmul.mubr.bf16.gmra.mrb[0].mxu0 %v611
      %v696 = vpop.f32.mrb[0].mxu0
      %v697 = vadd.f32 %v533, %v696
      %v698 = vpop.f32.mrb[0].mxu0
      %v699 = vpop.f32.mrb[0].mxu0
      %v700 = vadd.f32 %v536, %v699
      %v701 = vpop.f32.mrb[0].mxu0
      %702 = vmatprep.mubr.bf16.mxu0 0
      %703 = vmatmul.mubr.bf16.gmra.mrb[0].mxu0 %v614
      %v704 = vpop.f32.mrb[0].mxu0
      %v705 = vadd.f32 %v541, %v704
      %v706 = vpop.f32.mrb[0].mxu0
      %v707 = vpop.f32.mrb[0].mxu0
      %v708 = vadd.f32 %v544, %v707
      %v709 = vpop.f32.mrb[0].mxu0
      %710 = vmatprep.mubr.bf16.mxu0 0
      %711 = vmatmul.mubr.bf16.gmra.mrb[0].mxu0 %v617
      %v712 = vpop.f32.mrb[0].mxu0
      %v713 = vadd.f32 %v549, %v712
      %v714 = vpop.f32.mrb[0].mxu0
      %v715 = vpop.f32.mrb[0].mxu0
      %v716 = vadd.f32 %v552, %v715
      %v717 = vpop.f32.mrb[0].mxu0
      %718 = vdwg.mxu0
      %v719 = vld [vmem:[%s172] sm:$0xe]
      %v720 = vld [vmem:[%s172 + $0xc] sm:$0xe]
      %v721 = vld [vmem:[%s172 + $0x18] sm:$0xe]
      %v722 = vld [vmem:[%s172 + $0x24] sm:$0xe]
      %v723 = vld [vmem:[%s172 + $0x30] sm:$0xe]
      %v724 = vld [vmem:[%s172 + $0x3c] sm:$0xe]
      %v725 = vld [vmem:[%s172 + $0x48] sm:$0xe]
      %v726 = vld [vmem:[%s172 + $0x54] sm:$0xe]
      %vm743 = vcmask 1042432
      %vm744 = vcmask 1046532
      %vm745 = vmor %vm743, %vm744
      %v746 = vrot.slane %v719, 5
      %v747 = vrot.slane %v746, 4
      %v748 = vrot.slane %v184, 5
      %v749 = vsel %vm745, %v747, %v748
      %v750 = vrot.slane %v748, 4
      %v751 = vrot.slane %v200, 5
      %v752 = vsel %vm745, %v750, %v751
      %v753 = vrot.slane %v720, 5
      %v754 = vrot.slane %v753, 4
      %v755 = vrot.slane %v186, 5
      %v756 = vsel %vm745, %v754, %v755
      %v757 = vrot.slane %v755, 4
      %v758 = vrot.slane %v201, 5
      %v759 = vsel %vm745, %v757, %v758
      %v760 = vrot.slane %v721, 5
      %v761 = vrot.slane %v760, 4
      %v762 = vrot.slane %v188, 5
      %v763 = vsel %vm745, %v761, %v762
      %v764 = vrot.slane %v762, 4
      %v765 = vrot.slane %v202, 5
      %v766 = vsel %vm745, %v764, %v765
      %v767 = vrot.slane %v722, 5
      %v768 = vrot.slane %v767, 4
      %v769 = vrot.slane %v190, 5
      %v770 = vsel %vm745, %v768, %v769
      %v771 = vrot.slane %v769, 4
      %v772 = vrot.slane %v203, 5
      %v773 = vsel %vm745, %v771, %v772
      %v774 = vrot.slane %v723, 5
      %v775 = vrot.slane %v774, 4
      %v776 = vrot.slane %v192, 5
      %v777 = vsel %vm745, %v775, %v776
      %v778 = vrot.slane %v776, 4
      %v779 = vrot.slane %v204, 5
      %v780 = vsel %vm745, %v778, %v779
      %v781 = vrot.slane %v724, 5
      %v782 = vrot.slane %v781, 4
      %v783 = vrot.slane %v194, 5
      %v784 = vsel %vm745, %v782, %v783
      %v785 = vrot.slane %v783, 4
      %v786 = vrot.slane %v205, 5
      %v787 = vsel %vm745, %v785, %v786
      %v788 = vrot.slane %v725, 5
      %v789 = vrot.slane %v788, 4
      %v790 = vrot.slane %v196, 5
      %v791 = vsel %vm745, %v789, %v790
      %v792 = vrot.slane %v790, 4
      %v793 = vrot.slane %v206, 5
      %v794 = vsel %vm745, %v792, %v793
      %v795 = vrot.slane %v726, 5
      %v796 = vrot.slane %v795, 4
      %v797 = vrot.slane %v198, 5
      %v798 = vsel %vm745, %v796, %v797
      %v799 = vrot.slane %v797, 4
      %v800 = vrot.slane %v207, 5
      %v801 = vsel %vm745, %v799, %v800
      %s802 = scalar_lea.vmem %s1, 4
      %v803 = vld [vmem:[%s802] sm:$0x3]
      %v804 = vunpack.c.l.b16 %v749
      %v805 = vunpack.c.l.b16 %v752
      %v806 = vunpack.c.l.b16 %v756
      %v807 = vunpack.c.l.b16 %v759
      %v808 = vunpack.c.l.b16 %v763
      %v809 = vunpack.c.l.b16 %v766
      %v810 = vunpack.c.l.b16 %v770
      %v811 = vunpack.c.l.b16 %v773
      %v812 = vunpack.c.l.b16 %v777
      %v813 = vunpack.c.l.b16 %v780
      %v814 = vunpack.c.l.b16 %v784
      %v815 = vunpack.c.l.b16 %v787
      %v816 = vunpack.c.l.b16 %v791
      %v817 = vunpack.c.l.b16 %v794
      %v818 = vunpack.c.l.b16 %v798
      %v819 = vunpack.c.l.b16 %v801
      %v820 = vpack.c.b16 %v805, %v804
      %v821 = vpack.c.b16 %v807, %v806
      %v822 = vpack.c.b16 %v809, %v808
      %v823 = vpack.c.b16 %v811, %v810
      %v824 = vpack.c.b16 %v813, %v812
      %v825 = vpack.c.b16 %v815, %v814
      %v826 = vpack.c.b16 %v817, %v816
      %v827 = vpack.c.b16 %v819, %v818
      %v829 = vsel %vm429, %v820, 0
      %v832 = vsel %vm429, %v821, 0
      %v835 = vsel %vm429, %v822, 0
      %v838 = vsel %vm429, %v823, 0
      %v841 = vsel %vm429, %v824, 0
      %v844 = vsel %vm429, %v825, 0
      %v847 = vsel %vm429, %v826, 0
      %v850 = vsel %vm429, %v827, 0
      %v853 = vsel %vm454, %v803, 0
      %855 = vmatprep.subr.bf16.mxu0 0
      %856 = vmatpush1.bf16.msra.mxu0 %v853
      %857 = vmatprep.subr.bf16.mxu0 0
      %858 = vmatpush1.bf16.msra.mxu0 0
      %859 = vmatprep.subr.bf16.mxu0 0
      %860 = vmatpush1.bf16.msra.mxu0 0
      %861 = vmatprep.subr.bf16.mxu0 0
      %862 = vmatpush1.bf16.msra.mxu0 0
      %863 = vmatprep.subr.bf16.mxu0 0
      %864 = vmatpush1.bf16.msra.mxu0 0
      %865 = vmatprep.subr.bf16.mxu0 0
      %866 = vmatpush1.bf16.msra.mxu0 0
      %867 = vmatprep.subr.bf16.mxu0 0
      %868 = vmatpush1.bf16.msra.mxu0 0
      %869 = vmatprep.subr.bf16.mxu0 0
      %870 = vmatpush1.bf16.msra.mxu0 0
      %871 = vmatprep.subr.bf16.mxu0 0
      %872 = vmatpush1.bf16.msra.mxu0 0
      %873 = vmatprep.subr.bf16.mxu0 0
      %874 = vmatpush1.bf16.msra.mxu0 0
      %875 = vmatprep.subr.bf16.mxu0 0
      %876 = vmatpush1.bf16.msra.mxu0 0
      %877 = vmatprep.subr.bf16.mxu0 0
      %878 = vmatpush1.bf16.msra.mxu0 0
      %879 = vmatprep.subr.bf16.mxu0 0
      %880 = vmatpush1.bf16.msra.mxu0 0
      %881 = vmatprep.subr.bf16.mxu0 0
      %882 = vmatpush1.bf16.msra.mxu0 0
      %883 = vmatprep.subr.bf16.mxu0 0
      %884 = vmatpush1.bf16.msra.mxu0 0
      %885 = vmatprep.subr.bf16.mxu0 0
      %886 = vmatpush1.bf16.msra.mxu0 0
      %887 = vmatprep.mubr.bf16.mxu0 0
      %888 = vmatmul.mubr.bf16.gmra.mrb[0].mxu0 %v829
      %v889 = vpop.f32.mrb[0].mxu0
      %v890 = vadd.f32 0.0, %v889
      %v891 = vpop.f32.mrb[0].mxu0
      %v892 = vpop.f32.mrb[0].mxu0
      %v893 = vadd.f32 0.0, %v892
      %v894 = vpop.f32.mrb[0].mxu0
      %895 = vmatprep.mubr.bf16.mxu0 0
      %896 = vmatmul.mubr.bf16.gmra.mrb[0].mxu0 %v832
      %v897 = vpop.f32.mrb[0].mxu0
      %v898 = vadd.f32 0.0, %v897
      %v899 = vpop.f32.mrb[0].mxu0
      %v900 = vpop.f32.mrb[0].mxu0
      %v901 = vadd.f32 0.0, %v900
      %v902 = vpop.f32.mrb[0].mxu0
      %903 = vmatprep.mubr.bf16.mxu0 0
      %904 = vmatmul.mubr.bf16.gmra.mrb[0].mxu0 %v835
      %v905 = vpop.f32.mrb[0].mxu0
      %v906 = vadd.f32 0.0, %v905
      %v907 = vpop.f32.mrb[0].mxu0
      %v908 = vpop.f32.mrb[0].mxu0
      %v909 = vadd.f32 0.0, %v908
      %v910 = vpop.f32.mrb[0].mxu0
      %911 = vmatprep.mubr.bf16.mxu0 0
      %912 = vmatmul.mubr.bf16.gmra.mrb[0].mxu0 %v838
      %v913 = vpop.f32.mrb[0].mxu0
      %v914 = vadd.f32 0.0, %v913
      %v915 = vpop.f32.mrb[0].mxu0
      %v916 = vpop.f32.mrb[0].mxu0
      %v917 = vadd.f32 0.0, %v916
      %v918 = vpop.f32.mrb[0].mxu0
      %919 = vmatprep.mubr.bf16.mxu0 0
      %920 = vmatmul.mubr.bf16.gmra.mrb[0].mxu0 %v841
      %v921 = vpop.f32.mrb[0].mxu0
      %v922 = vadd.f32 0.0, %v921
      %v923 = vpop.f32.mrb[0].mxu0
      %v924 = vpop.f32.mrb[0].mxu0
      %v925 = vadd.f32 0.0, %v924
      %v926 = vpop.f32.mrb[0].mxu0
      %927 = vmatprep.mubr.bf16.mxu0 0
      %928 = vmatmul.mubr.bf16.gmra.mrb[0].mxu0 %v844
      %v929 = vpop.f32.mrb[0].mxu0
      %v930 = vadd.f32 0.0, %v929
      %v931 = vpop.f32.mrb[0].mxu0
      %v932 = vpop.f32.mrb[0].mxu0
      %v933 = vadd.f32 0.0, %v932
      %v934 = vpop.f32.mrb[0].mxu0
      %935 = vmatprep.mubr.bf16.mxu0 0
      %936 = vmatmul.mubr.bf16.gmra.mrb[0].mxu0 %v847
      %v937 = vpop.f32.mrb[0].mxu0
      %v938 = vadd.f32 0.0, %v937
      %v939 = vpop.f32.mrb[0].mxu0
      %v940 = vpop.f32.mrb[0].mxu0
      %v941 = vadd.f32 0.0, %v940
      %v942 = vpop.f32.mrb[0].mxu0
      %943 = vmatprep.mubr.bf16.mxu0 0
      %944 = vmatmul.mubr.bf16.gmra.mrb[0].mxu0 %v850
      %v945 = vpop.f32.mrb[0].mxu0
      %v946 = vadd.f32 0.0, %v945
      %v947 = vpop.f32.mrb[0].mxu0
      %v948 = vpop.f32.mrb[0].mxu0
      %v949 = vadd.f32 0.0, %v948
      %v950 = vpop.f32.mrb[0].mxu0
      %951 = vdwg.mxu0
      %v952 = vadd.f32 %v657, %v890
      %v953 = vadd.f32 %v660, %v893
      %v954 = vadd.f32 %v665, %v898
      %v955 = vadd.f32 %v668, %v901
      %v956 = vadd.f32 %v673, %v906
      %v957 = vadd.f32 %v676, %v909
      %v958 = vadd.f32 %v681, %v914
      %v959 = vadd.f32 %v684, %v917
      %v960 = vadd.f32 %v689, %v922
      %v961 = vadd.f32 %v692, %v925
      %v962 = vadd.f32 %v697, %v930
      %v963 = vadd.f32 %v700, %v933
      %v964 = vadd.f32 %v705, %v938
      %v965 = vadd.f32 %v708, %v941
      %v966 = vadd.f32 %v713, %v946
      %v967 = vadd.f32 %v716, %v949
      %s968 = scalar_lea.vmem %s172, 12
      %v969 = vld [vmem:[%s968] sm:$0xf]
      %v970 = vld [vmem:[%s968 + $0x4] sm:$0xf]
      %v971 = vld [vmem:[%s968 + $0xc] sm:$0xf]
      %v972 = vld [vmem:[%s968 + $0x10] sm:$0xf]
      %v973 = vld [vmem:[%s968 + $0x18] sm:$0xf]
      %v974 = vld [vmem:[%s968 + $0x1c] sm:$0xf]
      %v975 = vld [vmem:[%s968 + $0x24] sm:$0xf]
      %v976 = vld [vmem:[%s968 + $0x28] sm:$0xf]
      %v977 = vld [vmem:[%s968 + $0x30] sm:$0xf]
      %v978 = vld [vmem:[%s968 + $0x34] sm:$0xf]
      %v979 = vld [vmem:[%s968 + $0x3c] sm:$0xf]
      %v980 = vld [vmem:[%s968 + $0x40] sm:$0xf]
      %v981 = vld [vmem:[%s968 + $0x48] sm:$0xf]
      %v982 = vld [vmem:[%s968 + $0x4c] sm:$0xf]
      %v983 = vld [vmem:[%s968 + $0x54] sm:$0xf]
      %v984 = vld [vmem:[%s968 + $0x58] sm:$0xf]
      %s985 = scalar_lea.vmem %s1, 6
      %v986 = vld [vmem:[%s985] sm:$0x3]
      %v1003 = vunpack.c.l.b16 %v969
      %v1004 = vunpack.c.l.b16 %v970
      %v1005 = vunpack.c.l.b16 %v971
      %v1006 = vunpack.c.l.b16 %v972
      %v1007 = vunpack.c.l.b16 %v973
      %v1008 = vunpack.c.l.b16 %v974
      %v1009 = vunpack.c.l.b16 %v975
      %v1010 = vunpack.c.l.b16 %v976
      %v1011 = vunpack.c.l.b16 %v977
      %v1012 = vunpack.c.l.b16 %v978
      %v1013 = vunpack.c.l.b16 %v979
      %v1014 = vunpack.c.l.b16 %v980
      %v1015 = vunpack.c.l.b16 %v981
      %v1016 = vunpack.c.l.b16 %v982
      %v1017 = vunpack.c.l.b16 %v983
      %v1018 = vunpack.c.l.b16 %v984
      %v1019 = vpack.c.b16 %v1004, %v1003
      %v1020 = vpack.c.b16 %v1006, %v1005
      %v1021 = vpack.c.b16 %v1008, %v1007
      %v1022 = vpack.c.b16 %v1010, %v1009
      %v1023 = vpack.c.b16 %v1012, %v1011
      %v1024 = vpack.c.b16 %v1014, %v1013
      %v1025 = vpack.c.b16 %v1016, %v1015
      %v1026 = vpack.c.b16 %v1018, %v1017
      %v1028 = vsel %vm429, %v1019, 0
      %v1031 = vsel %vm429, %v1020, 0
      %v1034 = vsel %vm429, %v1021, 0
      %v1037 = vsel %vm429, %v1022, 0
      %v1040 = vsel %vm429, %v1023, 0
      %v1043 = vsel %vm429, %v1024, 0
      %v1046 = vsel %vm429, %v1025, 0
      %v1049 = vsel %vm429, %v1026, 0
      %v1052 = vsel %vm454, %v986, 0
      %1054 = vmatprep.subr.bf16.mxu0 0
      %1055 = vmatpush1.bf16.msra.mxu0 %v1052
      %1056 = vmatprep.subr.bf16.mxu0 0
      %1057 = vmatpush1.bf16.msra.mxu0 0
      %1058 = vmatprep.subr.bf16.mxu0 0
      %1059 = vmatpush1.bf16.msra.mxu0 0
      %1060 = vmatprep.subr.bf16.mxu0 0
      %1061 = vmatpush1.bf16.msra.mxu0 0
      %1062 = vmatprep.subr.bf16.mxu0 0
      %1063 = vmatpush1.bf16.msra.mxu0 0
      %1064 = vmatprep.subr.bf16.mxu0 0
      %1065 = vmatpush1.bf16.msra.mxu0 0
      %1066 = vmatprep.subr.bf16.mxu0 0
      %1067 = vmatpush1.bf16.msra.mxu0 0
      %1068 = vmatprep.subr.bf16.mxu0 0
      %1069 = vmatpush1.bf16.msra.mxu0 0
      %1070 = vmatprep.subr.bf16.mxu0 0
      %1071 = vmatpush1.bf16.msra.mxu0 0
      %1072 = vmatprep.subr.bf16.mxu0 0
      %1073 = vmatpush1.bf16.msra.mxu0 0
      %1074 = vmatprep.subr.bf16.mxu0 0
      %1075 = vmatpush1.bf16.msra.mxu0 0
      %1076 = vmatprep.subr.bf16.mxu0 0
      %1077 = vmatpush1.bf16.msra.mxu0 0
      %1078 = vmatprep.subr.bf16.mxu0 0
      %1079 = vmatpush1.bf16.msra.mxu0 0
      %1080 = vmatprep.subr.bf16.mxu0 0
      %1081 = vmatpush1.bf16.msra.mxu0 0
      %1082 = vmatprep.subr.bf16.mxu0 0
      %1083 = vmatpush1.bf16.msra.mxu0 0
      %1084 = vmatprep.subr.bf16.mxu0 0
      %1085 = vmatpush1.bf16.msra.mxu0 0
      %1086 = vmatprep.mubr.bf16.mxu0 0
      %1087 = vmatmul.mubr.bf16.gmra.mrb[0].mxu0 %v1028
      %v1088 = vpop.f32.mrb[0].mxu0
      %v1089 = vadd.f32 0.0, %v1088
      %v1090 = vpop.f32.mrb[0].mxu0
      %v1091 = vpop.f32.mrb[0].mxu0
      %v1092 = vadd.f32 0.0, %v1091
      %v1093 = vpop.f32.mrb[0].mxu0
      %1094 = vmatprep.mubr.bf16.mxu0 0
      %1095 = vmatmul.mubr.bf16.gmra.mrb[0].mxu0 %v1031
      %v1096 = vpop.f32.mrb[0].mxu0
      %v1097 = vadd.f32 0.0, %v1096
      %v1098 = vpop.f32.mrb[0].mxu0
      %v1099 = vpop.f32.mrb[0].mxu0
      %v1100 = vadd.f32 0.0, %v1099
      %v1101 = vpop.f32.mrb[0].mxu0
      %1102 = vmatprep.mubr.bf16.mxu0 0
      %1103 = vmatmul.mubr.bf16.gmra.mrb[0].mxu0 %v1034
      %v1104 = vpop.f32.mrb[0].mxu0
      %v1105 = vadd.f32 0.0, %v1104
      %v1106 = vpop.f32.mrb[0].mxu0
      %v1107 = vpop.f32.mrb[0].mxu0
      %v1108 = vadd.f32 0.0, %v1107
      %v1109 = vpop.f32.mrb[0].mxu0
      %1110 = vmatprep.mubr.bf16.mxu0 0
      %1111 = vmatmul.mubr.bf16.gmra.mrb[0].mxu0 %v1037
      %v1112 = vpop.f32.mrb[0].mxu0
      %v1113 = vadd.f32 0.0, %v1112
      %v1114 = vpop.f32.mrb[0].mxu0
      %v1115 = vpop.f32.mrb[0].mxu0
      %v1116 = vadd.f32 0.0, %v1115
      %v1117 = vpop.f32.mrb[0].mxu0
      %1118 = vmatprep.mubr.bf16.mxu0 0
      %1119 = vmatmul.mubr.bf16.gmra.mrb[0].mxu0 %v1040
      %v1120 = vpop.f32.mrb[0].mxu0
      %v1121 = vadd.f32 0.0, %v1120
      %v1122 = vpop.f32.mrb[0].mxu0
      %v1123 = vpop.f32.mrb[0].mxu0
      %v1124 = vadd.f32 0.0, %v1123
      %v1125 = vpop.f32.mrb[0].mxu0
      %1126 = vmatprep.mubr.bf16.mxu0 0
      %1127 = vmatmul.mubr.bf16.gmra.mrb[0].mxu0 %v1043
      %v1128 = vpop.f32.mrb[0].mxu0
      %v1129 = vadd.f32 0.0, %v1128
      %v1130 = vpop.f32.mrb[0].mxu0
      %v1131 = vpop.f32.mrb[0].mxu0
      %v1132 = vadd.f32 0.0, %v1131
      %v1133 = vpop.f32.mrb[0].mxu0
      %1134 = vmatprep.mubr.bf16.mxu0 0
      %1135 = vmatmul.mubr.bf16.gmra.mrb[0].mxu0 %v1046
      %v1136 = vpop.f32.mrb[0].mxu0
      %v1137 = vadd.f32 0.0, %v1136
      %v1138 = vpop.f32.mrb[0].mxu0
      %v1139 = vpop.f32.mrb[0].mxu0
      %v1140 = vadd.f32 0.0, %v1139
      %v1141 = vpop.f32.mrb[0].mxu0
      %1142 = vmatprep.mubr.bf16.mxu0 0
      %1143 = vmatmul.mubr.bf16.gmra.mrb[0].mxu0 %v1049
      %v1144 = vpop.f32.mrb[0].mxu0
      %v1145 = vadd.f32 0.0, %v1144
      %v1146 = vpop.f32.mrb[0].mxu0
      %v1147 = vpop.f32.mrb[0].mxu0
      %v1148 = vadd.f32 0.0, %v1147
      %v1149 = vpop.f32.mrb[0].mxu0
      %1150 = vdwg.mxu0
      %v1151 = vadd.f32 %v952, %v1089
      %v1152 = vadd.f32 %v953, %v1092
      %v1153 = vadd.f32 %v954, %v1097
      %v1154 = vadd.f32 %v955, %v1100
      %v1155 = vadd.f32 %v956, %v1105
      %v1156 = vadd.f32 %v957, %v1108
      %v1157 = vadd.f32 %v958, %v1113
      %v1158 = vadd.f32 %v959, %v1116
      %v1159 = vadd.f32 %v960, %v1121
      %v1160 = vadd.f32 %v961, %v1124
      %v1161 = vadd.f32 %v962, %v1129
      %v1162 = vadd.f32 %v963, %v1132
      %v1163 = vadd.f32 %v964, %v1137
      %v1164 = vadd.f32 %v965, %v1140
      %v1165 = vadd.f32 %v966, %v1145
      %v1166 = vadd.f32 %v967, %v1148
      %v1167 = vld [vmem:[%s968] sm:$0xf]
      %v1168 = vld [vmem:[%s968 + $0x4] sm:$0xf]
      %v1169 = vld [vmem:[%s968 + $0x8] sm:$0x1]
      %v1170 = vld [vmem:[%s968 + $0xc] sm:$0xf]
      %v1171 = vld [vmem:[%s968 + $0x10] sm:$0xf]
      %v1172 = vld [vmem:[%s968 + $0x14] sm:$0x1]
      %v1173 = vld [vmem:[%s968 + $0x18] sm:$0xf]
      %v1174 = vld [vmem:[%s968 + $0x1c] sm:$0xf]
      %v1175 = vld [vmem:[%s968 + $0x20] sm:$0x1]
      %v1176 = vld [vmem:[%s968 + $0x24] sm:$0xf]
      %v1177 = vld [vmem:[%s968 + $0x28] sm:$0xf]
      %v1178 = vld [vmem:[%s968 + $0x2c] sm:$0x1]
      %v1179 = vld [vmem:[%s968 + $0x30] sm:$0xf]
      %v1180 = vld [vmem:[%s968 + $0x34] sm:$0xf]
      %v1181 = vld [vmem:[%s968 + $0x38] sm:$0x1]
      %v1182 = vld [vmem:[%s968 + $0x3c] sm:$0xf]
      %v1183 = vld [vmem:[%s968 + $0x40] sm:$0xf]
      %v1184 = vld [vmem:[%s968 + $0x44] sm:$0x1]
      %v1185 = vld [vmem:[%s968 + $0x48] sm:$0xf]
      %v1186 = vld [vmem:[%s968 + $0x4c] sm:$0xf]
      %v1187 = vld [vmem:[%s968 + $0x50] sm:$0x1]
      %v1188 = vld [vmem:[%s968 + $0x54] sm:$0xf]
      %v1189 = vld [vmem:[%s968 + $0x58] sm:$0xf]
      %v1190 = vld [vmem:[%s968 + $0x5c] sm:$0x1]
      %v1192 = vshrl.u32 %v1167, 16
      %v1194 = vrot.slane %v1192, 4
      %v1195 = vshll.u32 %v1167, 16
      %v1197 = vrot.slane %v1195, 5
      %v1198 = vor.u32 %v1194, %v1197
      %v1199 = vrot.slane %v1198, 4
      %v1201 = vshll.u32 %v1168, 16
      %v1203 = vrot.slane %v1201, 5
      %v1204 = vsel %vm210, %v1199, %v1203
      %v1205 = vshrl.u32 %v1168, 16
      %v1207 = vrot.slane %v1205, 4
      %v1208 = vor.u32 %v1207, %v1203
      %v1209 = vrot.slane %v1208, 4
      %v1211 = vshll.u32 %v1169, 16
      %v1213 = vrot.slane %v1211, 5
      %v1214 = vsel %vm210, %v1209, %v1213
      %v1216 = vshrl.u32 %v1170, 16
      %v1218 = vrot.slane %v1216, 4
      %v1219 = vshll.u32 %v1170, 16
      %v1221 = vrot.slane %v1219, 5
      %v1222 = vor.u32 %v1218, %v1221
      %v1223 = vrot.slane %v1222, 4
      %v1225 = vshll.u32 %v1171, 16
      %v1227 = vrot.slane %v1225, 5
      %v1228 = vsel %vm210, %v1223, %v1227
      %v1229 = vshrl.u32 %v1171, 16
      %v1231 = vrot.slane %v1229, 4
      %v1232 = vor.u32 %v1231, %v1227
      %v1233 = vrot.slane %v1232, 4
      %v1235 = vshll.u32 %v1172, 16
      %v1237 = vrot.slane %v1235, 5
      %v1238 = vsel %vm210, %v1233, %v1237
      %v1240 = vshrl.u32 %v1173, 16
      %v1242 = vrot.slane %v1240, 4
      %v1243 = vshll.u32 %v1173, 16
      %v1245 = vrot.slane %v1243, 5
      %v1246 = vor.u32 %v1242, %v1245
      %v1247 = vrot.slane %v1246, 4
      %v1249 = vshll.u32 %v1174, 16
      %v1251 = vrot.slane %v1249, 5
      %v1252 = vsel %vm210, %v1247, %v1251
      %v1253 = vshrl.u32 %v1174, 16
      %v1255 = vrot.slane %v1253, 4
      %v1256 = vor.u32 %v1255, %v1251
      %v1257 = vrot.slane %v1256, 4
      %v1259 = vshll.u32 %v1175, 16
      %v1261 = vrot.slane %v1259, 5
      %v1262 = vsel %vm210, %v1257, %v1261
      %v1264 = vshrl.u32 %v1176, 16
      %v1266 = vrot.slane %v1264, 4
      %v1267 = vshll.u32 %v1176, 16
      %v1269 = vrot.slane %v1267, 5
      %v1270 = vor.u32 %v1266, %v1269
      %v1271 = vrot.slane %v1270, 4
      %v1273 = vshll.u32 %v1177, 16
      %v1275 = vrot.slane %v1273, 5
      %v1276 = vsel %vm210, %v1271, %v1275
      %v1277 = vshrl.u32 %v1177, 16
      %v1279 = vrot.slane %v1277, 4
      %v1280 = vor.u32 %v1279, %v1275
      %v1281 = vrot.slane %v1280, 4
      %v1283 = vshll.u32 %v1178, 16
      %v1285 = vrot.slane %v1283, 5
      %v1286 = vsel %vm210, %v1281, %v1285
      %v1288 = vshrl.u32 %v1179, 16
      %v1290 = vrot.slane %v1288, 4
      %v1291 = vshll.u32 %v1179, 16
      %v1293 = vrot.slane %v1291, 5
      %v1294 = vor.u32 %v1290, %v1293
      %v1295 = vrot.slane %v1294, 4
      %v1297 = vshll.u32 %v1180, 16
      %v1299 = vrot.slane %v1297, 5
      %v1300 = vsel %vm210, %v1295, %v1299
      %v1301 = vshrl.u32 %v1180, 16
      %v1303 = vrot.slane %v1301, 4
      %v1304 = vor.u32 %v1303, %v1299
      %v1305 = vrot.slane %v1304, 4
      %v1307 = vshll.u32 %v1181, 16
      %v1309 = vrot.slane %v1307, 5
      %v1310 = vsel %vm210, %v1305, %v1309
      %v1312 = vshrl.u32 %v1182, 16
      %v1314 = vrot.slane %v1312, 4
      %v1315 = vshll.u32 %v1182, 16
      %v1317 = vrot.slane %v1315, 5
      %v1318 = vor.u32 %v1314, %v1317
      %v1319 = vrot.slane %v1318, 4
      %v1321 = vshll.u32 %v1183, 16
      %v1323 = vrot.slane %v1321, 5
      %v1324 = vsel %vm210, %v1319, %v1323
      %v1325 = vshrl.u32 %v1183, 16
      %v1327 = vrot.slane %v1325, 4
      %v1328 = vor.u32 %v1327, %v1323
      %v1329 = vrot.slane %v1328, 4
      %v1331 = vshll.u32 %v1184, 16
      %v1333 = vrot.slane %v1331, 5
      %v1334 = vsel %vm210, %v1329, %v1333
      %v1336 = vshrl.u32 %v1185, 16
      %v1338 = vrot.slane %v1336, 4
      %v1339 = vshll.u32 %v1185, 16
      %v1341 = vrot.slane %v1339, 5
      %v1342 = vor.u32 %v1338, %v1341
      %v1343 = vrot.slane %v1342, 4
      %v1345 = vshll.u32 %v1186, 16
      %v1347 = vrot.slane %v1345, 5
      %v1348 = vsel %vm210, %v1343, %v1347
      %v1349 = vshrl.u32 %v1186, 16
      %v1351 = vrot.slane %v1349, 4
      %v1352 = vor.u32 %v1351, %v1347
      %v1353 = vrot.slane %v1352, 4
      %v1355 = vshll.u32 %v1187, 16
      %v1357 = vrot.slane %v1355, 5
      %v1358 = vsel %vm210, %v1353, %v1357
      %v1360 = vshrl.u32 %v1188, 16
      %v1362 = vrot.slane %v1360, 4
      %v1363 = vshll.u32 %v1188, 16
      %v1365 = vrot.slane %v1363, 5
      %v1366 = vor.u32 %v1362, %v1365
      %v1367 = vrot.slane %v1366, 4
      %v1369 = vshll.u32 %v1189, 16
      %v1371 = vrot.slane %v1369, 5
      %v1372 = vsel %vm210, %v1367, %v1371
      %v1373 = vshrl.u32 %v1189, 16
      %v1375 = vrot.slane %v1373, 4
      %v1376 = vor.u32 %v1375, %v1371
      %v1377 = vrot.slane %v1376, 4
      %v1379 = vshll.u32 %v1190, 16
      %v1381 = vrot.slane %v1379, 5
      %v1382 = vsel %vm210, %v1377, %v1381
      %s1383 = scalar_lea.vmem %s1, 8
      %v1384 = vld [vmem:[%s1383] sm:$0x3]
      %v1385 = vunpack.c.l.b16 %v1204
      %v1386 = vunpack.c.l.b16 %v1214
      %v1387 = vunpack.c.l.b16 %v1228
      %v1388 = vunpack.c.l.b16 %v1238
      %v1389 = vunpack.c.l.b16 %v1252
      %v1390 = vunpack.c.l.b16 %v1262
      %v1391 = vunpack.c.l.b16 %v1276
      %v1392 = vunpack.c.l.b16 %v1286
      %v1393 = vunpack.c.l.b16 %v1300
      %v1394 = vunpack.c.l.b16 %v1310
      %v1395 = vunpack.c.l.b16 %v1324
      %v1396 = vunpack.c.l.b16 %v1334
      %v1397 = vunpack.c.l.b16 %v1348
      %v1398 = vunpack.c.l.b16 %v1358
      %v1399 = vunpack.c.l.b16 %v1372
      %v1400 = vunpack.c.l.b16 %v1382
      %v1401 = vpack.c.b16 %v1386, %v1385
      %v1402 = vpack.c.b16 %v1388, %v1387
      %v1403 = vpack.c.b16 %v1390, %v1389
      %v1404 = vpack.c.b16 %v1392, %v1391
      %v1405 = vpack.c.b16 %v1394, %v1393
      %v1406 = vpack.c.b16 %v1396, %v1395
      %v1407 = vpack.c.b16 %v1398, %v1397
      %v1408 = vpack.c.b16 %v1400, %v1399
      %v1410 = vsel %vm429, %v1401, 0
      %v1413 = vsel %vm429, %v1402, 0
      %v1416 = vsel %vm429, %v1403, 0
      %v1419 = vsel %vm429, %v1404, 0
      %v1422 = vsel %vm429, %v1405, 0
      %v1425 = vsel %vm429, %v1406, 0
      %v1428 = vsel %vm429, %v1407, 0
      %v1431 = vsel %vm429, %v1408, 0
      %v1434 = vsel %vm454, %v1384, 0
      %1436 = vmatprep.subr.bf16.mxu0 0
      %1437 = vmatpush1.bf16.msra.mxu0 %v1434
      %1438 = vmatprep.subr.bf16.mxu0 0
      %1439 = vmatpush1.bf16.msra.mxu0 0
      %1440 = vmatprep.subr.bf16.mxu0 0
      %1441 = vmatpush1.bf16.msra.mxu0 0
      %1442 = vmatprep.subr.bf16.mxu0 0
      %1443 = vmatpush1.bf16.msra.mxu0 0
      %1444 = vmatprep.subr.bf16.mxu0 0
      %1445 = vmatpush1.bf16.msra.mxu0 0
      %1446 = vmatprep.subr.bf16.mxu0 0
      %1447 = vmatpush1.bf16.msra.mxu0 0
      %1448 = vmatprep.subr.bf16.mxu0 0
      %1449 = vmatpush1.bf16.msra.mxu0 0
      %1450 = vmatprep.subr.bf16.mxu0 0
      %1451 = vmatpush1.bf16.msra.mxu0 0
      %1452 = vmatprep.subr.bf16.mxu0 0
      %1453 = vmatpush1.bf16.msra.mxu0 0
      %1454 = vmatprep.subr.bf16.mxu0 0
      %1455 = vmatpush1.bf16.msra.mxu0 0
      %1456 = vmatprep.subr.bf16.mxu0 0
      %1457 = vmatpush1.bf16.msra.mxu0 0
      %1458 = vmatprep.subr.bf16.mxu0 0
      %1459 = vmatpush1.bf16.msra.mxu0 0
      %1460 = vmatprep.subr.bf16.mxu0 0
      %1461 = vmatpush1.bf16.msra.mxu0 0
      %1462 = vmatprep.subr.bf16.mxu0 0
      %1463 = vmatpush1.bf16.msra.mxu0 0
      %1464 = vmatprep.subr.bf16.mxu0 0
      %1465 = vmatpush1.bf16.msra.mxu0 0
      %1466 = vmatprep.subr.bf16.mxu0 0
      %1467 = vmatpush1.bf16.msra.mxu0 0
      %1468 = vmatprep.mubr.bf16.mxu0 0
      %1469 = vmatmul.mubr.bf16.gmra.mrb[0].mxu0 %v1410
      %v1470 = vpop.f32.mrb[0].mxu0
      %v1471 = vadd.f32 0.0, %v1470
      %v1472 = vpop.f32.mrb[0].mxu0
      %v1473 = vpop.f32.mrb[0].mxu0
      %v1474 = vadd.f32 0.0, %v1473
      %v1475 = vpop.f32.mrb[0].mxu0
      %1476 = vmatprep.mubr.bf16.mxu0 0
      %1477 = vmatmul.mubr.bf16.gmra.mrb[0].mxu0 %v1413
      %v1478 = vpop.f32.mrb[0].mxu0
      %v1479 = vadd.f32 0.0, %v1478
      %v1480 = vpop.f32.mrb[0].mxu0
      %v1481 = vpop.f32.mrb[0].mxu0
      %v1482 = vadd.f32 0.0, %v1481
      %v1483 = vpop.f32.mrb[0].mxu0
      %1484 = vmatprep.mubr.bf16.mxu0 0
      %1485 = vmatmul.mubr.bf16.gmra.mrb[0].mxu0 %v1416
      %v1486 = vpop.f32.mrb[0].mxu0
      %v1487 = vadd.f32 0.0, %v1486
      %v1488 = vpop.f32.mrb[0].mxu0
      %v1489 = vpop.f32.mrb[0].mxu0
      %v1490 = vadd.f32 0.0, %v1489
      %v1491 = vpop.f32.mrb[0].mxu0
      %1492 = vmatprep.mubr.bf16.mxu0 0
      %1493 = vmatmul.mubr.bf16.gmra.mrb[0].mxu0 %v1419
      %v1494 = vpop.f32.mrb[0].mxu0
      %v1495 = vadd.f32 0.0, %v1494
      %v1496 = vpop.f32.mrb[0].mxu0
      %v1497 = vpop.f32.mrb[0].mxu0
      %v1498 = vadd.f32 0.0, %v1497
      %v1499 = vpop.f32.mrb[0].mxu0
      %1500 = vmatprep.mubr.bf16.mxu0 0
      %1501 = vmatmul.mubr.bf16.gmra.mrb[0].mxu0 %v1422
      %v1502 = vpop.f32.mrb[0].mxu0
      %v1503 = vadd.f32 0.0, %v1502
      %v1504 = vpop.f32.mrb[0].mxu0
      %v1505 = vpop.f32.mrb[0].mxu0
      %v1506 = vadd.f32 0.0, %v1505
      %v1507 = vpop.f32.mrb[0].mxu0
      %1508 = vmatprep.mubr.bf16.mxu0 0
      %1509 = vmatmul.mubr.bf16.gmra.mrb[0].mxu0 %v1425
      %v1510 = vpop.f32.mrb[0].mxu0
      %v1511 = vadd.f32 0.0, %v1510
      %v1512 = vpop.f32.mrb[0].mxu0
      %v1513 = vpop.f32.mrb[0].mxu0
      %v1514 = vadd.f32 0.0, %v1513
      %v1515 = vpop.f32.mrb[0].mxu0
      %1516 = vmatprep.mubr.bf16.mxu0 0
      %1517 = vmatmul.mubr.bf16.gmra.mrb[0].mxu0 %v1428
      %v1518 = vpop.f32.mrb[0].mxu0
      %v1519 = vadd.f32 0.0, %v1518
      %v1520 = vpop.f32.mrb[0].mxu0
      %v1521 = vpop.f32.mrb[0].mxu0
      %v1522 = vadd.f32 0.0, %v1521
      %v1523 = vpop.f32.mrb[0].mxu0
      %1524 = vmatprep.mubr.bf16.mxu0 0
      %1525 = vmatmul.mubr.bf16.gmra.mrb[0].mxu0 %v1431
      %v1526 = vpop.f32.mrb[0].mxu0
      %v1527 = vadd.f32 0.0, %v1526
      %v1528 = vpop.f32.mrb[0].mxu0
      %v1529 = vpop.f32.mrb[0].mxu0
      %v1530 = vadd.f32 0.0, %v1529
      %v1531 = vpop.f32.mrb[0].mxu0
      %1532 = vdwg.mxu0
      %v1533 = vadd.f32 %v1151, %v1471
      %v1534 = vadd.f32 %v1152, %v1474
      %v1535 = vadd.f32 %v1153, %v1479
      %v1536 = vadd.f32 %v1154, %v1482
      %v1537 = vadd.f32 %v1155, %v1487
      %v1538 = vadd.f32 %v1156, %v1490
      %v1539 = vadd.f32 %v1157, %v1495
      %v1540 = vadd.f32 %v1158, %v1498
      %v1541 = vadd.f32 %v1159, %v1503
      %v1542 = vadd.f32 %v1160, %v1506
      %v1543 = vadd.f32 %v1161, %v1511
      %v1544 = vadd.f32 %v1162, %v1514
      %v1545 = vadd.f32 %v1163, %v1519
      %v1546 = vadd.f32 %v1164, %v1522
      %v1547 = vadd.f32 %v1165, %v1527
      %v1548 = vadd.f32 %v1166, %v1530
      %v1549 = vld [vmem:[%s968] sm:$0xe]
      %v1550 = vld [vmem:[%s968 + $0xc] sm:$0xe]
      %v1551 = vld [vmem:[%s968 + $0x18] sm:$0xe]
      %v1552 = vld [vmem:[%s968 + $0x24] sm:$0xe]
      %v1553 = vld [vmem:[%s968 + $0x30] sm:$0xe]
      %v1554 = vld [vmem:[%s968 + $0x3c] sm:$0xe]
      %v1555 = vld [vmem:[%s968 + $0x48] sm:$0xe]
      %v1556 = vld [vmem:[%s968 + $0x54] sm:$0xe]
      %v1581 = vrot.slane %v1549, 5
      %v1582 = vrot.slane %v1581, 4
      %v1583 = vrot.slane %v1168, 5
      %v1584 = vsel %vm745, %v1582, %v1583
      %v1585 = vrot.slane %v1583, 4
      %v1586 = vrot.slane %v1169, 5
      %v1587 = vsel %vm745, %v1585, %v1586
      %v1588 = vrot.slane %v1550, 5
      %v1589 = vrot.slane %v1588, 4
      %v1590 = vrot.slane %v1171, 5
      %v1591 = vsel %vm745, %v1589, %v1590
      %v1592 = vrot.slane %v1590, 4
      %v1593 = vrot.slane %v1172, 5
      %v1594 = vsel %vm745, %v1592, %v1593
      %v1595 = vrot.slane %v1551, 5
      %v1596 = vrot.slane %v1595, 4
      %v1597 = vrot.slane %v1174, 5
      %v1598 = vsel %vm745, %v1596, %v1597
      %v1599 = vrot.slane %v1597, 4
      %v1600 = vrot.slane %v1175, 5
      %v1601 = vsel %vm745, %v1599, %v1600
      %v1602 = vrot.slane %v1552, 5
      %v1603 = vrot.slane %v1602, 4
      %v1604 = vrot.slane %v1177, 5
      %v1605 = vsel %vm745, %v1603, %v1604
      %v1606 = vrot.slane %v1604, 4
      %v1607 = vrot.slane %v1178, 5
      %v1608 = vsel %vm745, %v1606, %v1607
      %v1609 = vrot.slane %v1553, 5
      %v1610 = vrot.slane %v1609, 4
      %v1611 = vrot.slane %v1180, 5
      %v1612 = vsel %vm745, %v1610, %v1611
      %v1613 = vrot.slane %v1611, 4
      %v1614 = vrot.slane %v1181, 5
      %v1615 = vsel %vm745, %v1613, %v1614
      %v1616 = vrot.slane %v1554, 5
      %v1617 = vrot.slane %v1616, 4
      %v1618 = vrot.slane %v1183, 5
      %v1619 = vsel %vm745, %v1617, %v1618
      %v1620 = vrot.slane %v1618, 4
      %v1621 = vrot.slane %v1184, 5
      %v1622 = vsel %vm745, %v1620, %v1621
      %v1623 = vrot.slane %v1555, 5
      %v1624 = vrot.slane %v1623, 4
      %v1625 = vrot.slane %v1186, 5
      %v1626 = vsel %vm745, %v1624, %v1625
      %v1627 = vrot.slane %v1625, 4
      %v1628 = vrot.slane %v1187, 5
      %v1629 = vsel %vm745, %v1627, %v1628
      %v1630 = vrot.slane %v1556, 5
      %v1631 = vrot.slane %v1630, 4
      %v1632 = vrot.slane %v1189, 5
      %v1633 = vsel %vm745, %v1631, %v1632
      %v1634 = vrot.slane %v1632, 4
      %v1635 = vrot.slane %v1190, 5
      %v1636 = vsel %vm745, %v1634, %v1635
      %s1637 = scalar_lea.vmem %s1, 10
      %v1638 = vld [vmem:[%s1637] sm:$0x3]
      %v1639 = vunpack.c.l.b16 %v1584
      %v1640 = vunpack.c.l.b16 %v1587
      %v1641 = vunpack.c.l.b16 %v1591
      %v1642 = vunpack.c.l.b16 %v1594
      %v1643 = vunpack.c.l.b16 %v1598
      %v1644 = vunpack.c.l.b16 %v1601
      %v1645 = vunpack.c.l.b16 %v1605
      %v1646 = vunpack.c.l.b16 %v1608
      %v1647 = vunpack.c.l.b16 %v1612
      %v1648 = vunpack.c.l.b16 %v1615
      %v1649 = vunpack.c.l.b16 %v1619
      %v1650 = vunpack.c.l.b16 %v1622
      %v1651 = vunpack.c.l.b16 %v1626
      %v1652 = vunpack.c.l.b16 %v1629
      %v1653 = vunpack.c.l.b16 %v1633
      %v1654 = vunpack.c.l.b16 %v1636
      %v1655 = vpack.c.b16 %v1640, %v1639
      %v1656 = vpack.c.b16 %v1642, %v1641
      %v1657 = vpack.c.b16 %v1644, %v1643
      %v1658 = vpack.c.b16 %v1646, %v1645
      %v1659 = vpack.c.b16 %v1648, %v1647
      %v1660 = vpack.c.b16 %v1650, %v1649
      %v1661 = vpack.c.b16 %v1652, %v1651
      %v1662 = vpack.c.b16 %v1654, %v1653
      %v1664 = vsel %vm429, %v1655, 0
      %v1667 = vsel %vm429, %v1656, 0
      %v1670 = vsel %vm429, %v1657, 0
      %v1673 = vsel %vm429, %v1658, 0
      %v1676 = vsel %vm429, %v1659, 0
      %v1679 = vsel %vm429, %v1660, 0
      %v1682 = vsel %vm429, %v1661, 0
      %v1685 = vsel %vm429, %v1662, 0
      %v1688 = vsel %vm454, %v1638, 0
      %1690 = vmatprep.subr.bf16.mxu0 0
      %1691 = vmatpush1.bf16.msra.mxu0 %v1688
      %1692 = vmatprep.subr.bf16.mxu0 0
      %1693 = vmatpush1.bf16.msra.mxu0 0
      %1694 = vmatprep.subr.bf16.mxu0 0
      %1695 = vmatpush1.bf16.msra.mxu0 0
      %1696 = vmatprep.subr.bf16.mxu0 0
      %1697 = vmatpush1.bf16.msra.mxu0 0
      %1698 = vmatprep.subr.bf16.mxu0 0
      %1699 = vmatpush1.bf16.msra.mxu0 0
      %1700 = vmatprep.subr.bf16.mxu0 0
      %1701 = vmatpush1.bf16.msra.mxu0 0
      %1702 = vmatprep.subr.bf16.mxu0 0
      %1703 = vmatpush1.bf16.msra.mxu0 0
      %1704 = vmatprep.subr.bf16.mxu0 0
      %1705 = vmatpush1.bf16.msra.mxu0 0
      %1706 = vmatprep.subr.bf16.mxu0 0
      %1707 = vmatpush1.bf16.msra.mxu0 0
      %1708 = vmatprep.subr.bf16.mxu0 0
      %1709 = vmatpush1.bf16.msra.mxu0 0
      %1710 = vmatprep.subr.bf16.mxu0 0
      %1711 = vmatpush1.bf16.msra.mxu0 0
      %1712 = vmatprep.subr.bf16.mxu0 0
      %1713 = vmatpush1.bf16.msra.mxu0 0
      %1714 = vmatprep.subr.bf16.mxu0 0
      %1715 = vmatpush1.bf16.msra.mxu0 0
      %1716 = vmatprep.subr.bf16.mxu0 0
      %1717 = vmatpush1.bf16.msra.mxu0 0
      %1718 = vmatprep.subr.bf16.mxu0 0
      %1719 = vmatpush1.bf16.msra.mxu0 0
      %1720 = vmatprep.subr.bf16.mxu0 0
      %1721 = vmatpush1.bf16.msra.mxu0 0
      %1722 = vmatprep.mubr.bf16.mxu0 0
      %1723 = vmatmul.mubr.bf16.gmra.mrb[0].mxu0 %v1664
      %v1724 = vpop.f32.mrb[0].mxu0
      %v1725 = vadd.f32 0.0, %v1724
      %v1726 = vpop.f32.mrb[0].mxu0
      %v1727 = vpop.f32.mrb[0].mxu0
      %v1728 = vadd.f32 0.0, %v1727
      %v1729 = vpop.f32.mrb[0].mxu0
      %1730 = vmatprep.mubr.bf16.mxu0 0
      %1731 = vmatmul.mubr.bf16.gmra.mrb[0].mxu0 %v1667
      %v1732 = vpop.f32.mrb[0].mxu0
      %v1733 = vadd.f32 0.0, %v1732
      %v1734 = vpop.f32.mrb[0].mxu0
      %v1735 = vpop.f32.mrb[0].mxu0
      %v1736 = vadd.f32 0.0, %v1735
      %v1737 = vpop.f32.mrb[0].mxu0
      %1738 = vmatprep.mubr.bf16.mxu0 0
      %1739 = vmatmul.mubr.bf16.gmra.mrb[0].mxu0 %v1670
      %v1740 = vpop.f32.mrb[0].mxu0
      %v1741 = vadd.f32 0.0, %v1740
      %v1742 = vpop.f32.mrb[0].mxu0
      %v1743 = vpop.f32.mrb[0].mxu0
      %v1744 = vadd.f32 0.0, %v1743
      %v1745 = vpop.f32.mrb[0].mxu0
      %1746 = vmatprep.mubr.bf16.mxu0 0
      %1747 = vmatmul.mubr.bf16.gmra.mrb[0].mxu0 %v1673
      %v1748 = vpop.f32.mrb[0].mxu0
      %v1749 = vadd.f32 0.0, %v1748
      %v1750 = vpop.f32.mrb[0].mxu0
      %v1751 = vpop.f32.mrb[0].mxu0
      %v1752 = vadd.f32 0.0, %v1751
      %v1753 = vpop.f32.mrb[0].mxu0
      %1754 = vmatprep.mubr.bf16.mxu0 0
      %1755 = vmatmul.mubr.bf16.gmra.mrb[0].mxu0 %v1676
      %v1756 = vpop.f32.mrb[0].mxu0
      %v1757 = vadd.f32 0.0, %v1756
      %v1758 = vpop.f32.mrb[0].mxu0
      %v1759 = vpop.f32.mrb[0].mxu0
      %v1760 = vadd.f32 0.0, %v1759
      %v1761 = vpop.f32.mrb[0].mxu0
      %1762 = vmatprep.mubr.bf16.mxu0 0
      %1763 = vmatmul.mubr.bf16.gmra.mrb[0].mxu0 %v1679
      %v1764 = vpop.f32.mrb[0].mxu0
      %v1765 = vadd.f32 0.0, %v1764
      %v1766 = vpop.f32.mrb[0].mxu0
      %v1767 = vpop.f32.mrb[0].mxu0
      %v1768 = vadd.f32 0.0, %v1767
      %v1769 = vpop.f32.mrb[0].mxu0
      %1770 = vmatprep.mubr.bf16.mxu0 0
      %1771 = vmatmul.mubr.bf16.gmra.mrb[0].mxu0 %v1682
      %v1772 = vpop.f32.mrb[0].mxu0
      %v1773 = vadd.f32 0.0, %v1772
      %v1774 = vpop.f32.mrb[0].mxu0
      %v1775 = vpop.f32.mrb[0].mxu0
      %v1776 = vadd.f32 0.0, %v1775
      %v1777 = vpop.f32.mrb[0].mxu0
      %1778 = vmatprep.mubr.bf16.mxu0 0
      %1779 = vmatmul.mubr.bf16.gmra.mrb[0].mxu0 %v1685
      %v1780 = vpop.f32.mrb[0].mxu0
      %v1781 = vadd.f32 0.0, %v1780
      %v1782 = vpop.f32.mrb[0].mxu0
      %v1783 = vpop.f32.mrb[0].mxu0
      %v1784 = vadd.f32 0.0, %v1783
      %v1785 = vpop.f32.mrb[0].mxu0
      %1786 = vdwg.mxu0
      %v1787 = vadd.f32 %v1533, %v1725
      %v1788 = vadd.f32 %v1534, %v1728
      %v1789 = vadd.f32 %v1535, %v1733
      %v1790 = vadd.f32 %v1536, %v1736
      %v1791 = vadd.f32 %v1537, %v1741
      %v1792 = vadd.f32 %v1538, %v1744
      %v1793 = vadd.f32 %v1539, %v1749
      %v1794 = vadd.f32 %v1540, %v1752
      %v1795 = vadd.f32 %v1541, %v1757
      %v1796 = vadd.f32 %v1542, %v1760
      %v1797 = vadd.f32 %v1543, %v1765
      %v1798 = vadd.f32 %v1544, %v1768
      %v1799 = vadd.f32 %v1545, %v1773
      %v1800 = vadd.f32 %v1546, %v1776
      %v1801 = vadd.f32 %v1547, %v1781
      %v1802 = vadd.f32 %v1548, %v1784
      %s1803 = scalar_lea.vmem %s172, 24
      %v1804 = vld [vmem:[%s1803] sm:$0xf]
      %v1805 = vld [vmem:[%s1803 + $0x4] sm:$0xf]
      %v1806 = vld [vmem:[%s1803 + $0xc] sm:$0xf]
      %v1807 = vld [vmem:[%s1803 + $0x10] sm:$0xf]
      %v1808 = vld [vmem:[%s1803 + $0x18] sm:$0xf]
      %v1809 = vld [vmem:[%s1803 + $0x1c] sm:$0xf]
      %v1810 = vld [vmem:[%s1803 + $0x24] sm:$0xf]
      %v1811 = vld [vmem:[%s1803 + $0x28] sm:$0xf]
      %v1812 = vld [vmem:[%s1803 + $0x30] sm:$0xf]
      %v1813 = vld [vmem:[%s1803 + $0x34] sm:$0xf]
      %v1814 = vld [vmem:[%s1803 + $0x3c] sm:$0xf]
      %v1815 = vld [vmem:[%s1803 + $0x40] sm:$0xf]
      %v1816 = vld [vmem:[%s1803 + $0x48] sm:$0xf]
      %v1817 = vld [vmem:[%s1803 + $0x4c] sm:$0xf]
      %v1818 = vld [vmem:[%s1803 + $0x54] sm:$0xf]
      %v1819 = vld [vmem:[%s1803 + $0x58] sm:$0xf]
      %s1820 = scalar_lea.vmem %s1, 12
      %v1821 = vld [vmem:[%s1820] sm:$0x3]
      %v1838 = vunpack.c.l.b16 %v1804
      %v1839 = vunpack.c.l.b16 %v1805
      %v1840 = vunpack.c.l.b16 %v1806
      %v1841 = vunpack.c.l.b16 %v1807
      %v1842 = vunpack.c.l.b16 %v1808
      %v1843 = vunpack.c.l.b16 %v1809
      %v1844 = vunpack.c.l.b16 %v1810
      %v1845 = vunpack.c.l.b16 %v1811
      %v1846 = vunpack.c.l.b16 %v1812
      %v1847 = vunpack.c.l.b16 %v1813
      %v1848 = vunpack.c.l.b16 %v1814
      %v1849 = vunpack.c.l.b16 %v1815
      %v1850 = vunpack.c.l.b16 %v1816
      %v1851 = vunpack.c.l.b16 %v1817
      %v1852 = vunpack.c.l.b16 %v1818
      %v1853 = vunpack.c.l.b16 %v1819
      %v1854 = vpack.c.b16 %v1839, %v1838
      %v1855 = vpack.c.b16 %v1841, %v1840
      %v1856 = vpack.c.b16 %v1843, %v1842
      %v1857 = vpack.c.b16 %v1845, %v1844
      %v1858 = vpack.c.b16 %v1847, %v1846
      %v1859 = vpack.c.b16 %v1849, %v1848
      %v1860 = vpack.c.b16 %v1851, %v1850
      %v1861 = vpack.c.b16 %v1853, %v1852
      %v1863 = vsel %vm429, %v1854, 0
      %v1866 = vsel %vm429, %v1855, 0
      %v1869 = vsel %vm429, %v1856, 0
      %v1872 = vsel %vm429, %v1857, 0
      %v1875 = vsel %vm429, %v1858, 0
      %v1878 = vsel %vm429, %v1859, 0
      %v1881 = vsel %vm429, %v1860, 0
      %v1884 = vsel %vm429, %v1861, 0
      %v1887 = vsel %vm454, %v1821, 0
      %1889 = vmatprep.subr.bf16.mxu0 0
      %1890 = vmatpush1.bf16.msra.mxu0 %v1887
      %1891 = vmatprep.subr.bf16.mxu0 0
      %1892 = vmatpush1.bf16.msra.mxu0 0
      %1893 = vmatprep.subr.bf16.mxu0 0
      %1894 = vmatpush1.bf16.msra.mxu0 0
      %1895 = vmatprep.subr.bf16.mxu0 0
      %1896 = vmatpush1.bf16.msra.mxu0 0
      %1897 = vmatprep.subr.bf16.mxu0 0
      %1898 = vmatpush1.bf16.msra.mxu0 0
      %1899 = vmatprep.subr.bf16.mxu0 0
      %1900 = vmatpush1.bf16.msra.mxu0 0
      %1901 = vmatprep.subr.bf16.mxu0 0
      %1902 = vmatpush1.bf16.msra.mxu0 0
      %1903 = vmatprep.subr.bf16.mxu0 0
      %1904 = vmatpush1.bf16.msra.mxu0 0
      %1905 = vmatprep.subr.bf16.mxu0 0
      %1906 = vmatpush1.bf16.msra.mxu0 0
      %1907 = vmatprep.subr.bf16.mxu0 0
      %1908 = vmatpush1.bf16.msra.mxu0 0
      %1909 = vmatprep.subr.bf16.mxu0 0
      %1910 = vmatpush1.bf16.msra.mxu0 0
      %1911 = vmatprep.subr.bf16.mxu0 0
      %1912 = vmatpush1.bf16.msra.mxu0 0
      %1913 = vmatprep.subr.bf16.mxu0 0
      %1914 = vmatpush1.bf16.msra.mxu0 0
      %1915 = vmatprep.subr.bf16.mxu0 0
      %1916 = vmatpush1.bf16.msra.mxu0 0
      %1917 = vmatprep.subr.bf16.mxu0 0
      %1918 = vmatpush1.bf16.msra.mxu0 0
      %1919 = vmatprep.subr.bf16.mxu0 0
      %1920 = vmatpush1.bf16.msra.mxu0 0
      %1921 = vmatprep.mubr.bf16.mxu0 0
      %1922 = vmatmul.mubr.bf16.gmra.mrb[0].mxu0 %v1863
      %v1923 = vpop.f32.mrb[0].mxu0
      %v1924 = vadd.f32 0.0, %v1923
      %v1925 = vpop.f32.mrb[0].mxu0
      %v1926 = vpop.f32.mrb[0].mxu0
      %v1927 = vadd.f32 0.0, %v1926
      %v1928 = vpop.f32.mrb[0].mxu0
      %1929 = vmatprep.mubr.bf16.mxu0 0
      %1930 = vmatmul.mubr.bf16.gmra.mrb[0].mxu0 %v1866
      %v1931 = vpop.f32.mrb[0].mxu0
      %v1932 = vadd.f32 0.0, %v1931
      %v1933 = vpop.f32.mrb[0].mxu0
      %v1934 = vpop.f32.mrb[0].mxu0
      %v1935 = vadd.f32 0.0, %v1934
      %v1936 = vpop.f32.mrb[0].mxu0
      %1937 = vmatprep.mubr.bf16.mxu0 0
      %1938 = vmatmul.mubr.bf16.gmra.mrb[0].mxu0 %v1869
      %v1939 = vpop.f32.mrb[0].mxu0
      %v1940 = vadd.f32 0.0, %v1939
      %v1941 = vpop.f32.mrb[0].mxu0
      %v1942 = vpop.f32.mrb[0].mxu0
      %v1943 = vadd.f32 0.0, %v1942
      %v1944 = vpop.f32.mrb[0].mxu0
      %1945 = vmatprep.mubr.bf16.mxu0 0
      %1946 = vmatmul.mubr.bf16.gmra.mrb[0].mxu0 %v1872
      %v1947 = vpop.f32.mrb[0].mxu0
      %v1948 = vadd.f32 0.0, %v1947
      %v1949 = vpop.f32.mrb[0].mxu0
      %v1950 = vpop.f32.mrb[0].mxu0
      %v1951 = vadd.f32 0.0, %v1950
      %v1952 = vpop.f32.mrb[0].mxu0
      %1953 = vmatprep.mubr.bf16.mxu0 0
      %1954 = vmatmul.mubr.bf16.gmra.mrb[0].mxu0 %v1875
      %v1955 = vpop.f32.mrb[0].mxu0
      %v1956 = vadd.f32 0.0, %v1955
      %v1957 = vpop.f32.mrb[0].mxu0
      %v1958 = vpop.f32.mrb[0].mxu0
      %v1959 = vadd.f32 0.0, %v1958
      %v1960 = vpop.f32.mrb[0].mxu0
      %1961 = vmatprep.mubr.bf16.mxu0 0
      %1962 = vmatmul.mubr.bf16.gmra.mrb[0].mxu0 %v1878
      %v1963 = vpop.f32.mrb[0].mxu0
      %v1964 = vadd.f32 0.0, %v1963
      %v1965 = vpop.f32.mrb[0].mxu0
      %v1966 = vpop.f32.mrb[0].mxu0
      %v1967 = vadd.f32 0.0, %v1966
      %v1968 = vpop.f32.mrb[0].mxu0
      %1969 = vmatprep.mubr.bf16.mxu0 0
      %1970 = vmatmul.mubr.bf16.gmra.mrb[0].mxu0 %v1881
      %v1971 = vpop.f32.mrb[0].mxu0
      %v1972 = vadd.f32 0.0, %v1971
      %v1973 = vpop.f32.mrb[0].mxu0
      %v1974 = vpop.f32.mrb[0].mxu0
      %v1975 = vadd.f32 0.0, %v1974
      %v1976 = vpop.f32.mrb[0].mxu0
      %1977 = vmatprep.mubr.bf16.mxu0 0
      %1978 = vmatmul.mubr.bf16.gmra.mrb[0].mxu0 %v1884
      %v1979 = vpop.f32.mrb[0].mxu0
      %v1980 = vadd.f32 0.0, %v1979
      %v1981 = vpop.f32.mrb[0].mxu0
      %v1982 = vpop.f32.mrb[0].mxu0
      %v1983 = vadd.f32 0.0, %v1982
      %v1984 = vpop.f32.mrb[0].mxu0
      %1985 = vdwg.mxu0
      %v1986 = vadd.f32 %v1787, %v1924
      %v1987 = vadd.f32 %v1788, %v1927
      %v1988 = vadd.f32 %v1789, %v1932
      %v1989 = vadd.f32 %v1790, %v1935
      %v1990 = vadd.f32 %v1791, %v1940
      %v1991 = vadd.f32 %v1792, %v1943
      %v1992 = vadd.f32 %v1793, %v1948
      %v1993 = vadd.f32 %v1794, %v1951
      %v1994 = vadd.f32 %v1795, %v1956
      %v1995 = vadd.f32 %v1796, %v1959
      %v1996 = vadd.f32 %v1797, %v1964
      %v1997 = vadd.f32 %v1798, %v1967
      %v1998 = vadd.f32 %v1799, %v1972
      %v1999 = vadd.f32 %v1800, %v1975
      %v2000 = vadd.f32 %v1801, %v1980
      %v2001 = vadd.f32 %v1802, %v1983
      %v2002 = vld [vmem:[%s1803] sm:$0xf]
      %v2003 = vld [vmem:[%s1803 + $0x4] sm:$0xf]
      %v2004 = vld [vmem:[%s1803 + $0x8] sm:$0x1]
      %v2005 = vld [vmem:[%s1803 + $0xc] sm:$0xf]
      %v2006 = vld [vmem:[%s1803 + $0x10] sm:$0xf]
      %v2007 = vld [vmem:[%s1803 + $0x14] sm:$0x1]
      %v2008 = vld [vmem:[%s1803 + $0x18] sm:$0xf]
      %v2009 = vld [vmem:[%s1803 + $0x1c] sm:$0xf]
      %v2010 = vld [vmem:[%s1803 + $0x20] sm:$0x1]
      %v2011 = vld [vmem:[%s1803 + $0x24] sm:$0xf]
      %v2012 = vld [vmem:[%s1803 + $0x28] sm:$0xf]
      %v2013 = vld [vmem:[%s1803 + $0x2c] sm:$0x1]
      %v2014 = vld [vmem:[%s1803 + $0x30] sm:$0xf]
      %v2015 = vld [vmem:[%s1803 + $0x34] sm:$0xf]
      %v2016 = vld [vmem:[%s1803 + $0x38] sm:$0x1]
      %v2017 = vld [vmem:[%s1803 + $0x3c] sm:$0xf]
      %v2018 = vld [vmem:[%s1803 + $0x40] sm:$0xf]
      %v2019 = vld [vmem:[%s1803 + $0x44] sm:$0x1]
      %v2020 = vld [vmem:[%s1803 + $0x48] sm:$0xf]
      %v2021 = vld [vmem:[%s1803 + $0x4c] sm:$0xf]
      %v2022 = vld [vmem:[%s1803 + $0x50] sm:$0x1]
      %v2023 = vld [vmem:[%s1803 + $0x54] sm:$0xf]
      %v2024 = vld [vmem:[%s1803 + $0x58] sm:$0xf]
      %v2025 = vld [vmem:[%s1803 + $0x5c] sm:$0x1]
      %v2027 = vshrl.u32 %v2002, 16
      %v2029 = vrot.slane %v2027, 4
      %v2030 = vshll.u32 %v2002, 16
      %v2032 = vrot.slane %v2030, 5
      %v2033 = vor.u32 %v2029, %v2032
      %v2034 = vrot.slane %v2033, 4
      %v2036 = vshll.u32 %v2003, 16
      %v2038 = vrot.slane %v2036, 5
      %v2039 = vsel %vm210, %v2034, %v2038
      %v2040 = vshrl.u32 %v2003, 16
      %v2042 = vrot.slane %v2040, 4
      %v2043 = vor.u32 %v2042, %v2038
      %v2044 = vrot.slane %v2043, 4
      %v2046 = vshll.u32 %v2004, 16
      %v2048 = vrot.slane %v2046, 5
      %v2049 = vsel %vm210, %v2044, %v2048
      %v2051 = vshrl.u32 %v2005, 16
      %v2053 = vrot.slane %v2051, 4
      %v2054 = vshll.u32 %v2005, 16
      %v2056 = vrot.slane %v2054, 5
      %v2057 = vor.u32 %v2053, %v2056
      %v2058 = vrot.slane %v2057, 4
      %v2060 = vshll.u32 %v2006, 16
      %v2062 = vrot.slane %v2060, 5
      %v2063 = vsel %vm210, %v2058, %v2062
      %v2064 = vshrl.u32 %v2006, 16
      %v2066 = vrot.slane %v2064, 4
      %v2067 = vor.u32 %v2066, %v2062
      %v2068 = vrot.slane %v2067, 4
      %v2070 = vshll.u32 %v2007, 16
      %v2072 = vrot.slane %v2070, 5
      %v2073 = vsel %vm210, %v2068, %v2072
      %v2075 = vshrl.u32 %v2008, 16
      %v2077 = vrot.slane %v2075, 4
      %v2078 = vshll.u32 %v2008, 16
      %v2080 = vrot.slane %v2078, 5
      %v2081 = vor.u32 %v2077, %v2080
      %v2082 = vrot.slane %v2081, 4
      %v2084 = vshll.u32 %v2009, 16
      %v2086 = vrot.slane %v2084, 5
      %v2087 = vsel %vm210, %v2082, %v2086
      %v2088 = vshrl.u32 %v2009, 16
      %v2090 = vrot.slane %v2088, 4
      %v2091 = vor.u32 %v2090, %v2086
      %v2092 = vrot.slane %v2091, 4
      %v2094 = vshll.u32 %v2010, 16
      %v2096 = vrot.slane %v2094, 5
      %v2097 = vsel %vm210, %v2092, %v2096
      %v2099 = vshrl.u32 %v2011, 16
      %v2101 = vrot.slane %v2099, 4
      %v2102 = vshll.u32 %v2011, 16
      %v2104 = vrot.slane %v2102, 5
      %v2105 = vor.u32 %v2101, %v2104
      %v2106 = vrot.slane %v2105, 4
      %v2108 = vshll.u32 %v2012, 16
      %v2110 = vrot.slane %v2108, 5
      %v2111 = vsel %vm210, %v2106, %v2110
      %v2112 = vshrl.u32 %v2012, 16
      %v2114 = vrot.slane %v2112, 4
      %v2115 = vor.u32 %v2114, %v2110
      %v2116 = vrot.slane %v2115, 4
      %v2118 = vshll.u32 %v2013, 16
      %v2120 = vrot.slane %v2118, 5
      %v2121 = vsel %vm210, %v2116, %v2120
      %v2123 = vshrl.u32 %v2014, 16
      %v2125 = vrot.slane %v2123, 4
      %v2126 = vshll.u32 %v2014, 16
      %v2128 = vrot.slane %v2126, 5
      %v2129 = vor.u32 %v2125, %v2128
      %v2130 = vrot.slane %v2129, 4
      %v2132 = vshll.u32 %v2015, 16
      %v2134 = vrot.slane %v2132, 5
      %v2135 = vsel %vm210, %v2130, %v2134
      %v2136 = vshrl.u32 %v2015, 16
      %v2138 = vrot.slane %v2136, 4
      %v2139 = vor.u32 %v2138, %v2134
      %v2140 = vrot.slane %v2139, 4
      %v2142 = vshll.u32 %v2016, 16
      %v2144 = vrot.slane %v2142, 5
      %v2145 = vsel %vm210, %v2140, %v2144
      %v2147 = vshrl.u32 %v2017, 16
      %v2149 = vrot.slane %v2147, 4
      %v2150 = vshll.u32 %v2017, 16
      %v2152 = vrot.slane %v2150, 5
      %v2153 = vor.u32 %v2149, %v2152
      %v2154 = vrot.slane %v2153, 4
      %v2156 = vshll.u32 %v2018, 16
      %v2158 = vrot.slane %v2156, 5
      %v2159 = vsel %vm210, %v2154, %v2158
      %v2160 = vshrl.u32 %v2018, 16
      %v2162 = vrot.slane %v2160, 4
      %v2163 = vor.u32 %v2162, %v2158
      %v2164 = vrot.slane %v2163, 4
      %v2166 = vshll.u32 %v2019, 16
      %v2168 = vrot.slane %v2166, 5
      %v2169 = vsel %vm210, %v2164, %v2168
      %v2171 = vshrl.u32 %v2020, 16
      %v2173 = vrot.slane %v2171, 4
      %v2174 = vshll.u32 %v2020, 16
      %v2176 = vrot.slane %v2174, 5
      %v2177 = vor.u32 %v2173, %v2176
      %v2178 = vrot.slane %v2177, 4
      %v2180 = vshll.u32 %v2021, 16
      %v2182 = vrot.slane %v2180, 5
      %v2183 = vsel %vm210, %v2178, %v2182
      %v2184 = vshrl.u32 %v2021, 16
      %v2186 = vrot.slane %v2184, 4
      %v2187 = vor.u32 %v2186, %v2182
      %v2188 = vrot.slane %v2187, 4
      %v2190 = vshll.u32 %v2022, 16
      %v2192 = vrot.slane %v2190, 5
      %v2193 = vsel %vm210, %v2188, %v2192
      %v2195 = vshrl.u32 %v2023, 16
      %v2197 = vrot.slane %v2195, 4
      %v2198 = vshll.u32 %v2023, 16
      %v2200 = vrot.slane %v2198, 5
      %v2201 = vor.u32 %v2197, %v2200
      %v2202 = vrot.slane %v2201, 4
      %v2204 = vshll.u32 %v2024, 16
      %v2206 = vrot.slane %v2204, 5
      %v2207 = vsel %vm210, %v2202, %v2206
      %v2208 = vshrl.u32 %v2024, 16
      %v2210 = vrot.slane %v2208, 4
      %v2211 = vor.u32 %v2210, %v2206
      %v2212 = vrot.slane %v2211, 4
      %v2214 = vshll.u32 %v2025, 16
      %v2216 = vrot.slane %v2214, 5
      %v2217 = vsel %vm210, %v2212, %v2216
      %s2218 = scalar_lea.vmem %s1, 14
      %v2219 = vld [vmem:[%s2218] sm:$0x3]
      %v2220 = vunpack.c.l.b16 %v2039
      %v2221 = vunpack.c.l.b16 %v2049
      %v2222 = vunpack.c.l.b16 %v2063
      %v2223 = vunpack.c.l.b16 %v2073
      %v2224 = vunpack.c.l.b16 %v2087
      %v2225 = vunpack.c.l.b16 %v2097
      %v2226 = vunpack.c.l.b16 %v2111
      %v2227 = vunpack.c.l.b16 %v2121
      %v2228 = vunpack.c.l.b16 %v2135
      %v2229 = vunpack.c.l.b16 %v2145
      %v2230 = vunpack.c.l.b16 %v2159
      %v2231 = vunpack.c.l.b16 %v2169
      %v2232 = vunpack.c.l.b16 %v2183
      %v2233 = vunpack.c.l.b16 %v2193
      %v2234 = vunpack.c.l.b16 %v2207
      %v2235 = vunpack.c.l.b16 %v2217
      %v2236 = vpack.c.b16 %v2221, %v2220
      %v2237 = vpack.c.b16 %v2223, %v2222
      %v2238 = vpack.c.b16 %v2225, %v2224
      %v2239 = vpack.c.b16 %v2227, %v2226
      %v2240 = vpack.c.b16 %v2229, %v2228
      %v2241 = vpack.c.b16 %v2231, %v2230
      %v2242 = vpack.c.b16 %v2233, %v2232
      %v2243 = vpack.c.b16 %v2235, %v2234
      %v2245 = vsel %vm429, %v2236, 0
      %v2248 = vsel %vm429, %v2237, 0
      %v2251 = vsel %vm429, %v2238, 0
      %v2254 = vsel %vm429, %v2239, 0
      %v2257 = vsel %vm429, %v2240, 0
      %v2260 = vsel %vm429, %v2241, 0
      %v2263 = vsel %vm429, %v2242, 0
      %v2266 = vsel %vm429, %v2243, 0
      %v2269 = vsel %vm454, %v2219, 0
      %2271 = vmatprep.subr.bf16.mxu0 0
      %2272 = vmatpush1.bf16.msra.mxu0 %v2269
      %2273 = vmatprep.subr.bf16.mxu0 0
      %2274 = vmatpush1.bf16.msra.mxu0 0
      %2275 = vmatprep.subr.bf16.mxu0 0
      %2276 = vmatpush1.bf16.msra.mxu0 0
      %2277 = vmatprep.subr.bf16.mxu0 0
      %2278 = vmatpush1.bf16.msra.mxu0 0
      %2279 = vmatprep.subr.bf16.mxu0 0
      %2280 = vmatpush1.bf16.msra.mxu0 0
      %2281 = vmatprep.subr.bf16.mxu0 0
      %2282 = vmatpush1.bf16.msra.mxu0 0
      %2283 = vmatprep.subr.bf16.mxu0 0
      %2284 = vmatpush1.bf16.msra.mxu0 0
      %2285 = vmatprep.subr.bf16.mxu0 0
      %2286 = vmatpush1.bf16.msra.mxu0 0
      %2287 = vmatprep.subr.bf16.mxu0 0
      %2288 = vmatpush1.bf16.msra.mxu0 0
      %2289 = vmatprep.subr.bf16.mxu0 0
      %2290 = vmatpush1.bf16.msra.mxu0 0
      %2291 = vmatprep.subr.bf16.mxu0 0
      %2292 = vmatpush1.bf16.msra.mxu0 0
      %2293 = vmatprep.subr.bf16.mxu0 0
      %2294 = vmatpush1.bf16.msra.mxu0 0
      %2295 = vmatprep.subr.bf16.mxu0 0
      %2296 = vmatpush1.bf16.msra.mxu0 0
      %2297 = vmatprep.subr.bf16.mxu0 0
      %2298 = vmatpush1.bf16.msra.mxu0 0
      %2299 = vmatprep.subr.bf16.mxu0 0
      %2300 = vmatpush1.bf16.msra.mxu0 0
      %2301 = vmatprep.subr.bf16.mxu0 0
      %2302 = vmatpush1.bf16.msra.mxu0 0
      %2303 = vmatprep.mubr.bf16.mxu0 0
      %2304 = vmatmul.mubr.bf16.gmra.mrb[0].mxu0 %v2245
      %v2305 = vpop.f32.mrb[0].mxu0
      %v2306 = vadd.f32 0.0, %v2305
      %v2307 = vpop.f32.mrb[0].mxu0
      %v2308 = vpop.f32.mrb[0].mxu0
      %v2309 = vadd.f32 0.0, %v2308
      %v2310 = vpop.f32.mrb[0].mxu0
      %2311 = vmatprep.mubr.bf16.mxu0 0
      %2312 = vmatmul.mubr.bf16.gmra.mrb[0].mxu0 %v2248
      %v2313 = vpop.f32.mrb[0].mxu0
      %v2314 = vadd.f32 0.0, %v2313
      %v2315 = vpop.f32.mrb[0].mxu0
      %v2316 = vpop.f32.mrb[0].mxu0
      %v2317 = vadd.f32 0.0, %v2316
      %v2318 = vpop.f32.mrb[0].mxu0
      %2319 = vmatprep.mubr.bf16.mxu0 0
      %2320 = vmatmul.mubr.bf16.gmra.mrb[0].mxu0 %v2251
      %v2321 = vpop.f32.mrb[0].mxu0
      %v2322 = vadd.f32 0.0, %v2321
      %v2323 = vpop.f32.mrb[0].mxu0
      %v2324 = vpop.f32.mrb[0].mxu0
      %v2325 = vadd.f32 0.0, %v2324
      %v2326 = vpop.f32.mrb[0].mxu0
      %2327 = vmatprep.mubr.bf16.mxu0 0
      %2328 = vmatmul.mubr.bf16.gmra.mrb[0].mxu0 %v2254
      %v2329 = vpop.f32.mrb[0].mxu0
      %v2330 = vadd.f32 0.0, %v2329
      %v2331 = vpop.f32.mrb[0].mxu0
      %v2332 = vpop.f32.mrb[0].mxu0
      %v2333 = vadd.f32 0.0, %v2332
      %v2334 = vpop.f32.mrb[0].mxu0
      %2335 = vmatprep.mubr.bf16.mxu0 0
      %2336 = vmatmul.mubr.bf16.gmra.mrb[0].mxu0 %v2257
      %v2337 = vpop.f32.mrb[0].mxu0
      %v2338 = vadd.f32 0.0, %v2337
      %v2339 = vpop.f32.mrb[0].mxu0
      %v2340 = vpop.f32.mrb[0].mxu0
      %v2341 = vadd.f32 0.0, %v2340
      %v2342 = vpop.f32.mrb[0].mxu0
      %2343 = vmatprep.mubr.bf16.mxu0 0
      %2344 = vmatmul.mubr.bf16.gmra.mrb[0].mxu0 %v2260
      %v2345 = vpop.f32.mrb[0].mxu0
      %v2346 = vadd.f32 0.0, %v2345
      %v2347 = vpop.f32.mrb[0].mxu0
      %v2348 = vpop.f32.mrb[0].mxu0
      %v2349 = vadd.f32 0.0, %v2348
      %v2350 = vpop.f32.mrb[0].mxu0
      %2351 = vmatprep.mubr.bf16.mxu0 0
      %2352 = vmatmul.mubr.bf16.gmra.mrb[0].mxu0 %v2263
      %v2353 = vpop.f32.mrb[0].mxu0
      %v2354 = vadd.f32 0.0, %v2353
      %v2355 = vpop.f32.mrb[0].mxu0
      %v2356 = vpop.f32.mrb[0].mxu0
      %v2357 = vadd.f32 0.0, %v2356
      %v2358 = vpop.f32.mrb[0].mxu0
      %2359 = vmatprep.mubr.bf16.mxu0 0
      %2360 = vmatmul.mubr.bf16.gmra.mrb[0].mxu0 %v2266
      %v2361 = vpop.f32.mrb[0].mxu0
      %v2362 = vadd.f32 0.0, %v2361
      %v2363 = vpop.f32.mrb[0].mxu0
      %v2364 = vpop.f32.mrb[0].mxu0
      %v2365 = vadd.f32 0.0, %v2364
      %v2366 = vpop.f32.mrb[0].mxu0
      %2367 = vdwg.mxu0
      %v2368 = vadd.f32 %v1986, %v2306
      %v2369 = vadd.f32 %v1987, %v2309
      %v2370 = vadd.f32 %v1988, %v2314
      %v2371 = vadd.f32 %v1989, %v2317
      %v2372 = vadd.f32 %v1990, %v2322
      %v2373 = vadd.f32 %v1991, %v2325
      %v2374 = vadd.f32 %v1992, %v2330
      %v2375 = vadd.f32 %v1993, %v2333
      %v2376 = vadd.f32 %v1994, %v2338
      %v2377 = vadd.f32 %v1995, %v2341
      %v2378 = vadd.f32 %v1996, %v2346
      %v2379 = vadd.f32 %v1997, %v2349
      %v2380 = vadd.f32 %v1998, %v2354
      %v2381 = vadd.f32 %v1999, %v2357
      %v2382 = vadd.f32 %v2000, %v2362
      %v2383 = vadd.f32 %v2001, %v2365
      %v2384 = vld [vmem:[%s1803] sm:$0xe]
      %v2385 = vld [vmem:[%s1803 + $0xc] sm:$0xe]
      %v2386 = vld [vmem:[%s1803 + $0x18] sm:$0xe]
      %v2387 = vld [vmem:[%s1803 + $0x24] sm:$0xe]
      %v2388 = vld [vmem:[%s1803 + $0x30] sm:$0xe]
      %v2389 = vld [vmem:[%s1803 + $0x3c] sm:$0xe]
      %v2390 = vld [vmem:[%s1803 + $0x48] sm:$0xe]
      %v2391 = vld [vmem:[%s1803 + $0x54] sm:$0xe]
      %v2416 = vrot.slane %v2384, 5
      %v2417 = vrot.slane %v2416, 4
      %v2418 = vrot.slane %v2003, 5
      %v2419 = vsel %vm745, %v2417, %v2418
      %v2420 = vrot.slane %v2418, 4
      %v2421 = vrot.slane %v2004, 5
      %v2422 = vsel %vm745, %v2420, %v2421
      %v2423 = vrot.slane %v2385, 5
      %v2424 = vrot.slane %v2423, 4
      %v2425 = vrot.slane %v2006, 5
      %v2426 = vsel %vm745, %v2424, %v2425
      %v2427 = vrot.slane %v2425, 4
      %v2428 = vrot.slane %v2007, 5
      %v2429 = vsel %vm745, %v2427, %v2428
      %v2430 = vrot.slane %v2386, 5
      %v2431 = vrot.slane %v2430, 4
      %v2432 = vrot.slane %v2009, 5
      %v2433 = vsel %vm745, %v2431, %v2432
      %v2434 = vrot.slane %v2432, 4
      %v2435 = vrot.slane %v2010, 5
      %v2436 = vsel %vm745, %v2434, %v2435
      %v2437 = vrot.slane %v2387, 5
      %v2438 = vrot.slane %v2437, 4
      %v2439 = vrot.slane %v2012, 5
      %v2440 = vsel %vm745, %v2438, %v2439
      %v2441 = vrot.slane %v2439, 4
      %v2442 = vrot.slane %v2013, 5
      %v2443 = vsel %vm745, %v2441, %v2442
      %v2444 = vrot.slane %v2388, 5
      %v2445 = vrot.slane %v2444, 4
      %v2446 = vrot.slane %v2015, 5
      %v2447 = vsel %vm745, %v2445, %v2446
      %v2448 = vrot.slane %v2446, 4
      %v2449 = vrot.slane %v2016, 5
      %v2450 = vsel %vm745, %v2448, %v2449
      %v2451 = vrot.slane %v2389, 5
      %v2452 = vrot.slane %v2451, 4
      %v2453 = vrot.slane %v2018, 5
      %v2454 = vsel %vm745, %v2452, %v2453
      %v2455 = vrot.slane %v2453, 4
      %v2456 = vrot.slane %v2019, 5
      %v2457 = vsel %vm745, %v2455, %v2456
      %v2458 = vrot.slane %v2390, 5
      %v2459 = vrot.slane %v2458, 4
      %v2460 = vrot.slane %v2021, 5
      %v2461 = vsel %vm745, %v2459, %v2460
      %v2462 = vrot.slane %v2460, 4
      %v2463 = vrot.slane %v2022, 5
      %v2464 = vsel %vm745, %v2462, %v2463
      %v2465 = vrot.slane %v2391, 5
      %v2466 = vrot.slane %v2465, 4
      %v2467 = vrot.slane %v2024, 5
      %v2468 = vsel %vm745, %v2466, %v2467
      %v2469 = vrot.slane %v2467, 4
      %v2470 = vrot.slane %v2025, 5
      %v2471 = vsel %vm745, %v2469, %v2470
      %s2472 = scalar_lea.vmem %s1, 16
      %v2473 = vld [vmem:[%s2472] sm:$0x3]
      %v2474 = vunpack.c.l.b16 %v2419
      %v2475 = vunpack.c.l.b16 %v2422
      %v2476 = vunpack.c.l.b16 %v2426
      %v2477 = vunpack.c.l.b16 %v2429
      %v2478 = vunpack.c.l.b16 %v2433
      %v2479 = vunpack.c.l.b16 %v2436
      %v2480 = vunpack.c.l.b16 %v2440
      %v2481 = vunpack.c.l.b16 %v2443
      %v2482 = vunpack.c.l.b16 %v2447
      %v2483 = vunpack.c.l.b16 %v2450
      %v2484 = vunpack.c.l.b16 %v2454
      %v2485 = vunpack.c.l.b16 %v2457
      %v2486 = vunpack.c.l.b16 %v2461
      %v2487 = vunpack.c.l.b16 %v2464
      %v2488 = vunpack.c.l.b16 %v2468
      %v2489 = vunpack.c.l.b16 %v2471
      %v2490 = vpack.c.b16 %v2475, %v2474
      %v2491 = vpack.c.b16 %v2477, %v2476
      %v2492 = vpack.c.b16 %v2479, %v2478
      %v2493 = vpack.c.b16 %v2481, %v2480
      %v2494 = vpack.c.b16 %v2483, %v2482
      %v2495 = vpack.c.b16 %v2485, %v2484
      %v2496 = vpack.c.b16 %v2487, %v2486
      %v2497 = vpack.c.b16 %v2489, %v2488
      %v2499 = vsel %vm429, %v2490, 0
      %v2502 = vsel %vm429, %v2491, 0
      %v2505 = vsel %vm429, %v2492, 0
      %v2508 = vsel %vm429, %v2493, 0
      %v2511 = vsel %vm429, %v2494, 0
      %v2514 = vsel %vm429, %v2495, 0
      %v2517 = vsel %vm429, %v2496, 0
      %v2520 = vsel %vm429, %v2497, 0
      %v2523 = vsel %vm454, %v2473, 0
      %2525 = vmatprep.subr.bf16.mxu0 0
      %2526 = vmatpush1.bf16.msra.mxu0 %v2523
      %2527 = vmatprep.subr.bf16.mxu0 0
      %2528 = vmatpush1.bf16.msra.mxu0 0
      %2529 = vmatprep.subr.bf16.mxu0 0
      %2530 = vmatpush1.bf16.msra.mxu0 0
      %2531 = vmatprep.subr.bf16.mxu0 0
      %2532 = vmatpush1.bf16.msra.mxu0 0
      %2533 = vmatprep.subr.bf16.mxu0 0
      %2534 = vmatpush1.bf16.msra.mxu0 0
      %2535 = vmatprep.subr.bf16.mxu0 0
      %2536 = vmatpush1.bf16.msra.mxu0 0
      %2537 = vmatprep.subr.bf16.mxu0 0
      %2538 = vmatpush1.bf16.msra.mxu0 0
      %2539 = vmatprep.subr.bf16.mxu0 0
      %2540 = vmatpush1.bf16.msra.mxu0 0
      %2541 = vmatprep.subr.bf16.mxu0 0
      %2542 = vmatpush1.bf16.msra.mxu0 0
      %2543 = vmatprep.subr.bf16.mxu0 0
      %2544 = vmatpush1.bf16.msra.mxu0 0
      %2545 = vmatprep.subr.bf16.mxu0 0
      %2546 = vmatpush1.bf16.msra.mxu0 0
      %2547 = vmatprep.subr.bf16.mxu0 0
      %2548 = vmatpush1.bf16.msra.mxu0 0
      %2549 = vmatprep.subr.bf16.mxu0 0
      %2550 = vmatpush1.bf16.msra.mxu0 0
      %2551 = vmatprep.subr.bf16.mxu0 0
      %2552 = vmatpush1.bf16.msra.mxu0 0
      %2553 = vmatprep.subr.bf16.mxu0 0
      %2554 = vmatpush1.bf16.msra.mxu0 0
      %2555 = vmatprep.subr.bf16.mxu0 0
      %2556 = vmatpush1.bf16.msra.mxu0 0
      %2557 = vmatprep.mubr.bf16.mxu0 0
      %2558 = vmatmul.mubr.bf16.gmra.mrb[0].mxu0 %v2499
      %v2559 = vpop.f32.mrb[0].mxu0
      %v2560 = vadd.f32 0.0, %v2559
      %v2561 = vpop.f32.mrb[0].mxu0
      %v2562 = vpop.f32.mrb[0].mxu0
      %v2563 = vadd.f32 0.0, %v2562
      %v2564 = vpop.f32.mrb[0].mxu0
      %2565 = vmatprep.mubr.bf16.mxu0 0
      %2566 = vmatmul.mubr.bf16.gmra.mrb[0].mxu0 %v2502
      %v2567 = vpop.f32.mrb[0].mxu0
      %v2568 = vadd.f32 0.0, %v2567
      %v2569 = vpop.f32.mrb[0].mxu0
      %v2570 = vpop.f32.mrb[0].mxu0
      %v2571 = vadd.f32 0.0, %v2570
      %v2572 = vpop.f32.mrb[0].mxu0
      %2573 = vmatprep.mubr.bf16.mxu0 0
      %2574 = vmatmul.mubr.bf16.gmra.mrb[0].mxu0 %v2505
      %v2575 = vpop.f32.mrb[0].mxu0
      %v2576 = vadd.f32 0.0, %v2575
      %v2577 = vpop.f32.mrb[0].mxu0
      %v2578 = vpop.f32.mrb[0].mxu0
      %v2579 = vadd.f32 0.0, %v2578
      %v2580 = vpop.f32.mrb[0].mxu0
      %2581 = vmatprep.mubr.bf16.mxu0 0
      %2582 = vmatmul.mubr.bf16.gmra.mrb[0].mxu0 %v2508
      %v2583 = vpop.f32.mrb[0].mxu0
      %v2584 = vadd.f32 0.0, %v2583
      %v2585 = vpop.f32.mrb[0].mxu0
      %v2586 = vpop.f32.mrb[0].mxu0
      %v2587 = vadd.f32 0.0, %v2586
      %v2588 = vpop.f32.mrb[0].mxu0
      %2589 = vmatprep.mubr.bf16.mxu0 0
      %2590 = vmatmul.mubr.bf16.gmra.mrb[0].mxu0 %v2511
      %v2591 = vpop.f32.mrb[0].mxu0
      %v2592 = vadd.f32 0.0, %v2591
      %v2593 = vpop.f32.mrb[0].mxu0
      %v2594 = vpop.f32.mrb[0].mxu0
      %v2595 = vadd.f32 0.0, %v2594
      %v2596 = vpop.f32.mrb[0].mxu0
      %2597 = vmatprep.mubr.bf16.mxu0 0
      %2598 = vmatmul.mubr.bf16.gmra.mrb[0].mxu0 %v2514
      %v2599 = vpop.f32.mrb[0].mxu0
      %v2600 = vadd.f32 0.0, %v2599
      %v2601 = vpop.f32.mrb[0].mxu0
      %v2602 = vpop.f32.mrb[0].mxu0
      %v2603 = vadd.f32 0.0, %v2602
      %v2604 = vpop.f32.mrb[0].mxu0
      %2605 = vmatprep.mubr.bf16.mxu0 0
      %2606 = vmatmul.mubr.bf16.gmra.mrb[0].mxu0 %v2517
      %v2607 = vpop.f32.mrb[0].mxu0
      %v2608 = vadd.f32 0.0, %v2607
      %v2609 = vpop.f32.mrb[0].mxu0
      %v2610 = vpop.f32.mrb[0].mxu0
      %v2611 = vadd.f32 0.0, %v2610
      %v2612 = vpop.f32.mrb[0].mxu0
      %2613 = vmatprep.mubr.bf16.mxu0 0
      %2614 = vmatmul.mubr.bf16.gmra.mrb[0].mxu0 %v2520
      %v2615 = vpop.f32.mrb[0].mxu0
      %v2616 = vadd.f32 0.0, %v2615
      %v2617 = vpop.f32.mrb[0].mxu0
      %v2618 = vpop.f32.mrb[0].mxu0
      %v2619 = vadd.f32 0.0, %v2618
      %v2620 = vpop.f32.mrb[0].mxu0
      %2621 = vdwg.mxu0
      %v2622 = vadd.f32 %v2368, %v2560
      %v2623 = vadd.f32 %v2369, %v2563
      %v2624 = vadd.f32 %v2370, %v2568
      %v2625 = vadd.f32 %v2371, %v2571
      %v2626 = vadd.f32 %v2372, %v2576
      %v2627 = vadd.f32 %v2373, %v2579
      %v2628 = vadd.f32 %v2374, %v2584
      %v2629 = vadd.f32 %v2375, %v2587
      %v2630 = vadd.f32 %v2376, %v2592
      %v2631 = vadd.f32 %v2377, %v2595
      %v2632 = vadd.f32 %v2378, %v2600
      %v2633 = vadd.f32 %v2379, %v2603
      %v2634 = vadd.f32 %v2380, %v2608
      %v2635 = vadd.f32 %v2381, %v2611
      %v2636 = vadd.f32 %v2382, %v2616
      %v2637 = vadd.f32 %v2383, %v2619
      %2638 = vst [vmem:[%s177] sm:$0xff] %v2622
      %2639 = vst [vmem:[%s177 + $0x8] sm:$0xff] %v2623
      %2640 = vst [vmem:[%s177 + $0x10] sm:$0xff] %v2624
      %2641 = vst [vmem:[%s177 + $0x18] sm:$0xff] %v2625
      %2642 = vst [vmem:[%s177 + $0x20] sm:$0xff] %v2626
      %2643 = vst [vmem:[%s177 + $0x28] sm:$0xff] %v2627
      %2644 = vst [vmem:[%s177 + $0x30] sm:$0xff] %v2628
      %2645 = vst [vmem:[%s177 + $0x38] sm:$0xff] %v2629
      %2646 = vst [vmem:[%s177 + $0x40] sm:$0xff] %v2630
      %2647 = vst [vmem:[%s177 + $0x48] sm:$0xff] %v2631
      %2648 = vst [vmem:[%s177 + $0x50] sm:$0xff] %v2632
      %2649 = vst [vmem:[%s177 + $0x58] sm:$0xff] %v2633
      %2650 = vst [vmem:[%s177 + $0x60] sm:$0xff] %v2634
      %2651 = vst [vmem:[%s177 + $0x68] sm:$0xff] %v2635
      %2652 = vst [vmem:[%s177 + $0x70] sm:$0xff] %v2636
      %2653 = vst [vmem:[%s177 + $0x78] sm:$0xff] %v2637
      %v2654 = vadd.f32 %v2622, %v2623
      %v2655 = vadd.f32 %v2654, %v2624
      %v2656 = vadd.f32 %v2655, %v2625
      %v2657 = vadd.f32 %v2656, %v2626
      %v2658 = vadd.f32 %v2657, %v2627
      %v2659 = vadd.f32 %v2658, %v2628
      %v2660 = vadd.f32 %v2659, %v2629
      %v2661 = vadd.f32 %v2660, %v2630
      %v2662 = vadd.f32 %v2661, %v2631
      %v2663 = vadd.f32 %v2662, %v2632
      %v2664 = vadd.f32 %v2663, %v2633
      %v2665 = vadd.f32 %v2664, %v2634
      %v2666 = vadd.f32 %v2665, %v2635
      %v2667 = vadd.f32 %v2666, %v2636
      %v2668 = vadd.f32 %v2667, %v2637
      %v2669 = vrot.slane %v2668, 4
      %v2670 = vadd.f32 %v2668, %v2669
      %v2671 = vrot.slane %v2670, 2
      %v2672 = vadd.f32 %v2670, %v2671
      %v2673 = vrot.slane %v2672, 1
      %v2674 = vadd.f32 %v2672, %v2673
      %2675 = vst [vmem:[%s181] sm:$0x1] %v2674
      %v2676 = vmul.f32 %v2622, %v2622
      %v2677 = vmul.f32 %v2623, %v2623
      %v2678 = vmul.f32 %v2624, %v2624
      %v2679 = vmul.f32 %v2625, %v2625
      %v2680 = vmul.f32 %v2626, %v2626
      %v2681 = vmul.f32 %v2627, %v2627
      %v2682 = vmul.f32 %v2628, %v2628
      %v2683 = vmul.f32 %v2629, %v2629
      %v2684 = vmul.f32 %v2630, %v2630
      %v2685 = vmul.f32 %v2631, %v2631
      %v2686 = vmul.f32 %v2632, %v2632
      %v2687 = vmul.f32 %v2633, %v2633
      %v2688 = vmul.f32 %v2634, %v2634
      %v2689 = vmul.f32 %v2635, %v2635
      %v2690 = vmul.f32 %v2636, %v2636
      %v2691 = vmul.f32 %v2637, %v2637
      %v2692 = vadd.f32 %v2676, %v2677
      %v2693 = vadd.f32 %v2692, %v2678
      %v2694 = vadd.f32 %v2693, %v2679
      %v2695 = vadd.f32 %v2694, %v2680
      %v2696 = vadd.f32 %v2695, %v2681
      %v2697 = vadd.f32 %v2696, %v2682
      %v2698 = vadd.f32 %v2697, %v2683
      %v2699 = vadd.f32 %v2698, %v2684
      %v2700 = vadd.f32 %v2699, %v2685
      %v2701 = vadd.f32 %v2700, %v2686
      %v2702 = vadd.f32 %v2701, %v2687
      %v2703 = vadd.f32 %v2702, %v2688
      %v2704 = vadd.f32 %v2703, %v2689
      %v2705 = vadd.f32 %v2704, %v2690
      %v2706 = vadd.f32 %v2705, %v2691
      %v2707 = vrot.slane %v2706, 4
      %v2708 = vadd.f32 %v2706, %v2707
      %v2709 = vrot.slane %v2708, 2
      %v2710 = vadd.f32 %v2708, %v2709
      %v2711 = vrot.slane %v2710, 1
      %v2712 = vadd.f32 %v2710, %v2711
      %2713 = vst [vmem:[%s181 + $0x1] sm:$0x1] %v2712
      %p2714 = scmp.lt.s32.totalorder %s15, 3
      %s2715 = scalar_select %p2714, %s15, 3
      %s2716 = smul.addr %s2715, 16
      %s2717 = smul.addr %s2716, 8
      %s2718 = scalar_lea.vmem %s2, %s2717
      %p2719 = scmp.lt.s32.totalorder %s15, 3
      %s2720 = scalar_select %p2719, %s15, 3
      %s2721 = smul.addr %s2720, 2
      %s2722 = scalar_lea.vmem %s3, %s2721
      // Predicated region
      $region29: #{_lambda_.4} parent=27 // pred_check
        %p2723 = pneg %p80
      $region30: #{_lambda_.4} parent=27 // pred_check_branch
        %2725 = sbr.rel (%p2723) target = $region32
      $region31: #{_lambda_.4} parent=27 // pred_region
        _
      $region32: #{_lambda_.4} parent=27 // pred_fallthru
        _
      // Predicated region
      $region33: #{_lambda_.4} parent=27 // pred_check
        %p2726 = pneg %p106
      $region34: #{_lambda_.4} parent=27 // pred_check_branch
        %2728 = sbr.rel (%p2726) target = $region36
      $region35: #{_lambda_.4} parent=27 // pred_region
        _
      $region36: #{_lambda_.4} parent=27 // pred_fallthru
        _
    $region28: #{_lambda_.4} parent=5 // pred_fallthru
      _
    %p2729 = scmp.le.s32.totalorder 2, %s10
    // Predicated region
    $region37: #{_lambda_.4} parent=5 // pred_check
      %p2730 = pneg %p2729
    $region38: #{_lambda_.4} parent=5 // pred_check_branch
      %2732 = sbr.rel (%p2730) target = $region40
    $region39: #{_lambda_.4} parent=5 // pred_region
      %s2733 = ssub.s32 %s10, 2
      // Predicated region
      $region41: #{_lambda_.4} parent=39 // pred_check
        %p2734 = pneg %p86
      $region42: #{_lambda_.4} parent=39 // pred_check_branch
        %2736 = sbr.rel (%p2734) target = $region44
      $region43: #{_lambda_.4} parent=39 // pred_region
        %p2737 = scmp.lt.s32.totalorder %s16, 3
        %s2738 = scalar_select %p2737, %s16, 3
        %s2739 = smul.addr %s2738, 16
        %s2740 = smul.addr %s2739, 8
        %s2741 = scalar_lea.vmem %s2, %s2740
      $region44: #{_lambda_.4} parent=39 // pred_fallthru
        _
      // Predicated region
      $region45: #{_lambda_.4} parent=39 // pred_check
        %p2742 = pneg %p112
      $region46: #{_lambda_.4} parent=39 // pred_check_branch
        %2744 = sbr.rel (%p2742) target = $region48
      $region47: #{_lambda_.4} parent=39 // pred_region
        %p2745 = scmp.lt.s32.totalorder %s16, 3
        %s2746 = scalar_select %p2745, %s16, 3
        %s2747 = smul.addr %s2746, 2
        %s2748 = scalar_lea.vmem %s3, %s2747
      $region48: #{_lambda_.4} parent=39 // pred_fallthru
        _
    $region40: #{_lambda_.4} parent=5 // pred_fallthru
      _
  $region6: #{_lambda_.4} parent=0 // loop_footer
    %s14 = sadd.s32 1, %s10
  $region7: #{_lambda_.4} parent=0 // loop_footer_branch
    %9 = sbr.rel target = $region3
  $region8: #{_lambda_.4} parent=0 // loop_exit
    _

// kernel: _lambda_.6
$region0: #{_lambda_.6}
  #allocation0 [shape = 'u32[]', space=smem, size = 0x4, offset = 0x4, fixed_abs, tag = 'smem constant byte address 0x4 - core index']
  #allocation1 [shape = 'u32[144,128]{1,0:T(1,128)}', space=vmem, size = 0x12000, scoped, tag = 'internal scratch']
  %s0 = inlined_call_operand.vmem [shape: bf16[4,10,18,8], index: 0, kind: input, shape index: {}]
  %s1 = inlined_call_operand.vmem [shape: bf16[9,8,128], index: 1, kind: input, shape index: {}]
  %s2 = inlined_call_operand.vmem [shape: f32[4,128,128], index: 2, kind: output, shape index: {0}]
  %s3 = inlined_call_operand.vmem [shape: f32[4,2,128], index: 3, kind: output, shape index: {1}]
  %4 = xla_tuple %s2, %s3
  %s5 = sld [smem:[#allocation0]]
  $region49: #{_lambda_.6} parent=0
    _
  %s7 = ssub.s32 1, %s5
  %s8 = scalar_select 0, %s7, %s5
  loop: start=0, step=1, limit=6
  $region2: #{_lambda_.6} parent=0 // loop_pre_header
    _
  $region3: #{_lambda_.6} parent=0 // loop_header
    %s10 = sphi 0, %s14
    %p11 = scmp.ge.s32.totalorder %s10, 6
    %s20 = sphi 0, %s22
    %s23 = sphi 0, %s20
    %s24 = sphi 0, %s23
    %s40 = sphi 0, %s24
    %s44 = sphi 0, %s44
    %s46 = sphi 0, %s44
    %s47 = sphi 0, %s46
    %s61 = sphi 0, %s47
    %s67 = sphi 0, %s69
    %s70 = sphi 0, %s67
    %s71 = sphi 0, %s70
    %s87 = sphi 0, %s71
    %s93 = sphi 0, %s95
    %s96 = sphi 0, %s93
    %s97 = sphi 0, %s96
    %s113 = sphi 0, %s97
  $region4: #{_lambda_.6} parent=0 // loop_header_branch
    %13 = sbr.rel (%p11) target = $region8
  $region5: #{_lambda_.6} parent=0 // loop_body
    %s15 = ssub.s32 %s10, 1
    %s16 = ssub.s32 %s10, 2
    %s17 = sadd.s32 %s10, 1
    %s18 = ssub.s32 %s10, %s17
    %p19 = scmp.eq.s32.totalorder %s18, 0
    %s21 = sadd.s32 %s20, 1
    %s22 = scalar_select %p19, %s20, %s21
    %p25 = pneg %p19
    %p26 = scmp.eq.s32.totalorder %s10, 3
    %p27 = por %p25, %p26
    %p28 = scmp.ne.s32.totalorder %s20, %s23
    %p29 = scmp.eq.s32.totalorder %s10, 0
    %p30 = por %p28, %p29
    %p31 = scmp.ne.s32.totalorder %s20, %s23
    %p32 = scmp.eq.s32.totalorder %s15, 3
    %p33 = por %p31, %p32
    %p34 = scmp.ne.s32.totalorder %s23, %s24
    %p35 = scmp.eq.s32.totalorder %s15, 0
    %p36 = por %p34, %p35
    %p37 = scmp.ne.s32.totalorder %s23, %s24
    %p38 = scmp.eq.s32.totalorder %s16, 3
    %p39 = por %p37, %p38
    %p41 = scmp.ne.s32.totalorder %s24, %s40
    %p42 = scmp.eq.s32.totalorder %s16, 0
    %p43 = por %p41, %p42
    %s45 = sadd.s32 %s44, 1
    %p48 = scmp.eq.s32.totalorder %s10, 3
    %p49 = scmp.ne.s32.totalorder %s44, %s46
    %p50 = scmp.eq.s32.totalorder %s10, 0
    %p51 = por %p49, %p50
    %p52 = scmp.ne.s32.totalorder %s44, %s46
    %p53 = scmp.eq.s32.totalorder %s15, 3
    %p54 = por %p52, %p53
    %p55 = scmp.ne.s32.totalorder %s46, %s47
    %p56 = scmp.eq.s32.totalorder %s15, 0
    %p57 = por %p55, %p56
    %p58 = scmp.ne.s32.totalorder %s46, %s47
    %p59 = scmp.eq.s32.totalorder %s16, 3
    %p60 = por %p58, %p59
    %p62 = scmp.ne.s32.totalorder %s47, %s61
    %p63 = scmp.eq.s32.totalorder %s16, 0
    %p64 = por %p62, %p63
    %s65 = ssub.s32 %s10, %s17
    %p66 = scmp.eq.s32.totalorder %s65, 0
    %s68 = sadd.s32 %s67, 1
    %s69 = scalar_select %p66, %s67, %s68
    %p72 = pneg %p66
    %p73 = scmp.eq.s32.totalorder %s10, 3
    %p74 = por %p72, %p73
    %p75 = scmp.ne.s32.totalorder %s67, %s70
    %p76 = scmp.eq.s32.totalorder %s10, 0
    %p77 = por %p75, %p76
    %p78 = scmp.ne.s32.totalorder %s67, %s70
    %p79 = scmp.eq.s32.totalorder %s15, 3
    %p80 = por %p78, %p79
    %p81 = scmp.ne.s32.totalorder %s70, %s71
    %p82 = scmp.eq.s32.totalorder %s15, 0
    %p83 = por %p81, %p82
    %p84 = scmp.ne.s32.totalorder %s70, %s71
    %p85 = scmp.eq.s32.totalorder %s16, 3
    %p86 = por %p84, %p85
    %p88 = scmp.ne.s32.totalorder %s71, %s87
    %p89 = scmp.eq.s32.totalorder %s16, 0
    %p90 = por %p88, %p89
    %s91 = ssub.s32 %s10, %s17
    %p92 = scmp.eq.s32.totalorder %s91, 0
    %s94 = sadd.s32 %s93, 1
    %s95 = scalar_select %p92, %s93, %s94
    %p98 = pneg %p92
    %p99 = scmp.eq.s32.totalorder %s10, 3
    %p100 = por %p98, %p99
    %p101 = scmp.ne.s32.totalorder %s93, %s96
    %p102 = scmp.eq.s32.totalorder %s10, 0
    %p103 = por %p101, %p102
    %p104 = scmp.ne.s32.totalorder %s93, %s96
    %p105 = scmp.eq.s32.totalorder %s15, 3
    %p106 = por %p104, %p105
    %p107 = scmp.ne.s32.totalorder %s96, %s97
    %p108 = scmp.eq.s32.totalorder %s15, 0
    %p109 = por %p107, %p108
    %p110 = scmp.ne.s32.totalorder %s96, %s97
    %p111 = scmp.eq.s32.totalorder %s16, 3
    %p112 = por %p110, %p111
    %p114 = scmp.ne.s32.totalorder %s97, %s113
    %p115 = scmp.eq.s32.totalorder %s16, 0
    %p116 = por %p114, %p115
    %p117 = scmp.le.s32.totalorder 1, %s10
    %p118 = scmp.lt.s32.totalorder %s10, 5
    %p119 = pnand %p117, %p118
    %p120 = pneg %p119
    // Predicated region
    $region9: #{_lambda_.6} parent=5 // pred_check
      _
    $region10: #{_lambda_.6} parent=5 // pred_check_branch
      %122 = sbr.rel (%p119) target = $region12
    $region11: #{_lambda_.6} parent=5 // pred_region
      %s123 = ssub.s32 %s10, 1
      // Predicated region
      $region13: #{_lambda_.6} parent=11 // pred_check
        %p124 = pneg %p57
      $region14: #{_lambda_.6} parent=11 // pred_check_branch
        %126 = sbr.rel (%p124) target = $region16
      $region15: #{_lambda_.6} parent=11 // pred_region
        _
      $region16: #{_lambda_.6} parent=11 // pred_fallthru
        _
    $region12: #{_lambda_.6} parent=5 // pred_fallthru
      _
    %p127 = scmp.lt.s32.totalorder %s10, 4
    // Predicated region
    $region17: #{_lambda_.6} parent=5 // pred_check
      %p128 = pneg %p127
    $region18: #{_lambda_.6} parent=5 // pred_check_branch
      %130 = sbr.rel (%p128) target = $region20
    $region19: #{_lambda_.6} parent=5 // pred_region
      // Predicated region
      $region21: #{_lambda_.6} parent=19 // pred_check
        %p131 = pneg %p30
      $region22: #{_lambda_.6} parent=19 // pred_check_branch
        %133 = sbr.rel (%p131) target = $region24
      $region23: #{_lambda_.6} parent=19 // pred_region
        %p134 = scmp.lt.s32.totalorder %s10, 3
        %s135 = scalar_select %p134, %s10, 3
        %s136 = smul.addr %s135, 30
        %s137 = smul.addr %s136, 4
        %s138 = scalar_lea.vmem %s0, %s137
      $region24: #{_lambda_.6} parent=19 // pred_fallthru
        _
    $region20: #{_lambda_.6} parent=5 // pred_fallthru
      _
    %p139 = scmp.le.s32.totalorder 1, %s10
    %p140 = scmp.lt.s32.totalorder %s10, 5
    %p141 = pnand %p139, %p140
    %p142 = pneg %p141
    // Predicated region
    $region25: #{_lambda_.6} parent=5 // pred_check
      _
    $region26: #{_lambda_.6} parent=5 // pred_check_branch
      %144 = sbr.rel (%p141) target = $region28
    $region27: #{_lambda_.6} parent=5 // pred_region
      %s145 = ssub.s32 %s10, 1
      %p146 = scmp.lt.s32.totalorder %s15, 3
      %s147 = scalar_select %p146, %s15, 3
      %s148 = smul.addr %s147, 30
      %s149 = smul.addr %s148, 4
      %s150 = scalar_lea.vmem %s0, %s149
      %p151 = pneg %p36
      %p152 = pneg %p33
      %p153 = pneg %p57
      %p154 = pneg %p54
      %p155 = pneg %p83
      %p156 = pneg %p80
      %p157 = scmp.lt.s32.totalorder %s15, 3
      %s158 = scalar_select %p157, %s15, 3
      %s159 = smul.addr %s158, 16
      %s160 = smul.addr %s159, 8
      %s161 = scalar_lea.vmem %s2, %s160
      %p162 = pneg %p109
      %p163 = pneg %p106
      %p164 = scmp.lt.s32.totalorder %s15, 3
      %s165 = scalar_select %p164, %s15, 3
      %s166 = smul.addr %s165, 2
      %s167 = scalar_lea.vmem %s3, %s166
      %p168 = scmp.lt.s32.totalorder %s15, 3
      %s169 = scalar_select %p168, %s15, 3
      %s170 = smul.addr %s169, 30
      %s171 = smul.addr %s170, 4
      %s172 = scalar_lea.vmem %s0, %s171
      %p173 = scmp.lt.s32.totalorder %s15, 3
      %s174 = scalar_select %p173, %s15, 3
      %s175 = smul.addr %s174, 16
      %s176 = smul.addr %s175, 8
      %s177 = scalar_lea.vmem %s2, %s176
      %p178 = scmp.lt.s32.totalorder %s15, 3
      %s179 = scalar_select %p178, %s15, 3
      %s180 = smul.addr %s179, 2
      %s181 = scalar_lea.vmem %s3, %s180
      %v183 = vld [vmem:[%s172] sm:$0xf]
      %v184 = vld [vmem:[%s172 + $0x4] sm:$0xf]
      %v185 = vld [vmem:[%s172 + $0xc] sm:$0xf]
      %v186 = vld [vmem:[%s172 + $0x10] sm:$0xf]
      %v187 = vld [vmem:[%s172 + $0x18] sm:$0xf]
      %v188 = vld [vmem:[%s172 + $0x1c] sm:$0xf]
      %v189 = vld [vmem:[%s172 + $0x24] sm:$0xf]
      %v190 = vld [vmem:[%s172 + $0x28] sm:$0xf]
      %v191 = vld [vmem:[%s172 + $0x30] sm:$0xf]
      %v192 = vld [vmem:[%s172 + $0x34] sm:$0xf]
      %v193 = vld [vmem:[%s172 + $0x3c] sm:$0xf]
      %v194 = vld [vmem:[%s172 + $0x40] sm:$0xf]
      %v195 = vld [vmem:[%s172 + $0x48] sm:$0xf]
      %v196 = vld [vmem:[%s172 + $0x4c] sm:$0xf]
      %v197 = vld [vmem:[%s172 + $0x54] sm:$0xf]
      %v198 = vld [vmem:[%s172 + $0x58] sm:$0xf]
      %v199 = vld [vmem:[%s1] sm:$0xf]
      %v200 = vld [vmem:[%s172 + $0x8] sm:$0x1]
      %v201 = vld [vmem:[%s172 + $0x14] sm:$0x1]
      %v202 = vld [vmem:[%s172 + $0x20] sm:$0x1]
      %v203 = vld [vmem:[%s172 + $0x2c] sm:$0x1]
      %v204 = vld [vmem:[%s172 + $0x38] sm:$0x1]
      %v205 = vld [vmem:[%s172 + $0x44] sm:$0x1]
      %v206 = vld [vmem:[%s172 + $0x50] sm:$0x1]
      %v207 = vld [vmem:[%s172 + $0x5c] sm:$0x1]
      %vm208 = vsmask.f32 3328
      %vm209 = vsmask.f32 7440
      %vm210 = vmor %vm208, %vm209
      %v212 = vshrl.u32 %v183, 16
      %v214 = vrot.slane %v212, 4
      %v215 = vshll.u32 %v183, 16
      %v217 = vrot.slane %v215, 5
      %v218 = vor.u32 %v214, %v217
      %v219 = vrot.slane %v218, 4
      %v221 = vshll.u32 %v184, 16
      %v223 = vrot.slane %v221, 5
      %v224 = vsel %vm210, %v219, %v223
      %v225 = vshrl.u32 %v184, 16
      %v227 = vrot.slane %v225, 4
      %v228 = vor.u32 %v227, %v223
      %v229 = vrot.slane %v228, 4
      %v231 = vshll.u32 %v200, 16
      %v233 = vrot.slane %v231, 5
      %v234 = vsel %vm210, %v229, %v233
      %v236 = vshrl.u32 %v185, 16
      %v238 = vrot.slane %v236, 4
      %v239 = vshll.u32 %v185, 16
      %v241 = vrot.slane %v239, 5
      %v242 = vor.u32 %v238, %v241
      %v243 = vrot.slane %v242, 4
      %v245 = vshll.u32 %v186, 16
      %v247 = vrot.slane %v245, 5
      %v248 = vsel %vm210, %v243, %v247
      %v249 = vshrl.u32 %v186, 16
      %v251 = vrot.slane %v249, 4
      %v252 = vor.u32 %v251, %v247
      %v253 = vrot.slane %v252, 4
      %v255 = vshll.u32 %v201, 16
      %v257 = vrot.slane %v255, 5
      %v258 = vsel %vm210, %v253, %v257
      %v260 = vshrl.u32 %v187, 16
      %v262 = vrot.slane %v260, 4
      %v263 = vshll.u32 %v187, 16
      %v265 = vrot.slane %v263, 5
      %v266 = vor.u32 %v262, %v265
      %v267 = vrot.slane %v266, 4
      %v269 = vshll.u32 %v188, 16
      %v271 = vrot.slane %v269, 5
      %v272 = vsel %vm210, %v267, %v271
      %v273 = vshrl.u32 %v188, 16
      %v275 = vrot.slane %v273, 4
      %v276 = vor.u32 %v275, %v271
      %v277 = vrot.slane %v276, 4
      %v279 = vshll.u32 %v202, 16
      %v281 = vrot.slane %v279, 5
      %v282 = vsel %vm210, %v277, %v281
      %v284 = vshrl.u32 %v189, 16
      %v286 = vrot.slane %v284, 4
      %v287 = vshll.u32 %v189, 16
      %v289 = vrot.slane %v287, 5
      %v290 = vor.u32 %v286, %v289
      %v291 = vrot.slane %v290, 4
      %v293 = vshll.u32 %v190, 16
      %v295 = vrot.slane %v293, 5
      %v296 = vsel %vm210, %v291, %v295
      %v297 = vshrl.u32 %v190, 16
      %v299 = vrot.slane %v297, 4
      %v300 = vor.u32 %v299, %v295
      %v301 = vrot.slane %v300, 4
      %v303 = vshll.u32 %v203, 16
      %v305 = vrot.slane %v303, 5
      %v306 = vsel %vm210, %v301, %v305
      %v308 = vshrl.u32 %v191, 16
      %v310 = vrot.slane %v308, 4
      %v311 = vshll.u32 %v191, 16
      %v313 = vrot.slane %v311, 5
      %v314 = vor.u32 %v310, %v313
      %v315 = vrot.slane %v314, 4
      %v317 = vshll.u32 %v192, 16
      %v319 = vrot.slane %v317, 5
      %v320 = vsel %vm210, %v315, %v319
      %v321 = vshrl.u32 %v192, 16
      %v323 = vrot.slane %v321, 4
      %v324 = vor.u32 %v323, %v319
      %v325 = vrot.slane %v324, 4
      %v327 = vshll.u32 %v204, 16
      %v329 = vrot.slane %v327, 5
      %v330 = vsel %vm210, %v325, %v329
      %v332 = vshrl.u32 %v193, 16
      %v334 = vrot.slane %v332, 4
      %v335 = vshll.u32 %v193, 16
      %v337 = vrot.slane %v335, 5
      %v338 = vor.u32 %v334, %v337
      %v339 = vrot.slane %v338, 4
      %v341 = vshll.u32 %v194, 16
      %v343 = vrot.slane %v341, 5
      %v344 = vsel %vm210, %v339, %v343
      %v345 = vshrl.u32 %v194, 16
      %v347 = vrot.slane %v345, 4
      %v348 = vor.u32 %v347, %v343
      %v349 = vrot.slane %v348, 4
      %v351 = vshll.u32 %v205, 16
      %v353 = vrot.slane %v351, 5
      %v354 = vsel %vm210, %v349, %v353
      %v356 = vshrl.u32 %v195, 16
      %v358 = vrot.slane %v356, 4
      %v359 = vshll.u32 %v195, 16
      %v361 = vrot.slane %v359, 5
      %v362 = vor.u32 %v358, %v361
      %v363 = vrot.slane %v362, 4
      %v365 = vshll.u32 %v196, 16
      %v367 = vrot.slane %v365, 5
      %v368 = vsel %vm210, %v363, %v367
      %v369 = vshrl.u32 %v196, 16
      %v371 = vrot.slane %v369, 4
      %v372 = vor.u32 %v371, %v367
      %v373 = vrot.slane %v372, 4
      %v375 = vshll.u32 %v206, 16
      %v377 = vrot.slane %v375, 5
      %v378 = vsel %vm210, %v373, %v377
      %v380 = vshrl.u32 %v197, 16
      %v382 = vrot.slane %v380, 4
      %v383 = vshll.u32 %v197, 16
      %v385 = vrot.slane %v383, 5
      %v386 = vor.u32 %v382, %v385
      %v387 = vrot.slane %v386, 4
      %v389 = vshll.u32 %v198, 16
      %v391 = vrot.slane %v389, 5
      %v392 = vsel %vm210, %v387, %v391
      %v393 = vshrl.u32 %v198, 16
      %v395 = vrot.slane %v393, 4
      %v396 = vor.u32 %v395, %v391
      %v397 = vrot.slane %v396, 4
      %v399 = vshll.u32 %v207, 16
      %v401 = vrot.slane %v399, 5
      %v402 = vsel %vm210, %v397, %v401
      %s403 = scalar_lea.vmem %s1, 4
      %v404 = vld [vmem:[%s403] sm:$0xf]
      %v405 = vunpack.c.l.b16 %v224
      %v406 = vunpack.c.l.b16 %v234
      %v407 = vunpack.c.l.b16 %v248
      %v408 = vunpack.c.l.b16 %v258
      %v409 = vunpack.c.l.b16 %v272
      %v410 = vunpack.c.l.b16 %v282
      %v411 = vunpack.c.l.b16 %v296
      %v412 = vunpack.c.l.b16 %v306
      %v413 = vunpack.c.l.b16 %v320
      %v414 = vunpack.c.l.b16 %v330
      %v415 = vunpack.c.l.b16 %v344
      %v416 = vunpack.c.l.b16 %v354
      %v417 = vunpack.c.l.b16 %v368
      %v418 = vunpack.c.l.b16 %v378
      %v419 = vunpack.c.l.b16 %v392
      %v420 = vunpack.c.l.b16 %v402
      %v421 = vpack.c.b16 %v406, %v405
      %v422 = vpack.c.b16 %v408, %v407
      %v423 = vpack.c.b16 %v410, %v409
      %v424 = vpack.c.b16 %v412, %v411
      %v425 = vpack.c.b16 %v414, %v413
      %v426 = vpack.c.b16 %v416, %v415
      %v427 = vpack.c.b16 %v418, %v417
      %v428 = vpack.c.b16 %v420, %v419
      %vm429 = vcmask 64512
      %v431 = vsel %vm429, %v421, 0
      %v434 = vsel %vm429, %v422, 0
      %v437 = vsel %vm429, %v423, 0
      %v440 = vsel %vm429, %v424, 0
      %v443 = vsel %vm429, %v425, 0
      %v446 = vsel %vm429, %v426, 0
      %v449 = vsel %vm429, %v427, 0
      %v452 = vsel %vm429, %v428, 0
      %vm454 = vcmask 1043456
      %v456 = vsel %vm454, %v404, 0
      %458 = vmatprep.subr.bf16.mxu0 0
      %459 = vmatpush1.bf16.msra.mxu0 %v456
      %460 = vmatprep.subr.bf16.mxu0 0
      %461 = vmatpush1.bf16.msra.mxu0 0
      %462 = vmatprep.subr.bf16.mxu0 0
      %463 = vmatpush1.bf16.msra.mxu0 0
      %464 = vmatprep.subr.bf16.mxu0 0
      %465 = vmatpush1.bf16.msra.mxu0 0
      %466 = vmatprep.subr.bf16.mxu0 0
      %467 = vmatpush1.bf16.msra.mxu0 0
      %468 = vmatprep.subr.bf16.mxu0 0
      %469 = vmatpush1.bf16.msra.mxu0 0
      %470 = vmatprep.subr.bf16.mxu0 0
      %471 = vmatpush1.bf16.msra.mxu0 0
      %472 = vmatprep.subr.bf16.mxu0 0
      %473 = vmatpush1.bf16.msra.mxu0 0
      %474 = vmatprep.subr.bf16.mxu0 0
      %475 = vmatpush1.bf16.msra.mxu0 0
      %476 = vmatprep.subr.bf16.mxu0 0
      %477 = vmatpush1.bf16.msra.mxu0 0
      %478 = vmatprep.subr.bf16.mxu0 0
      %479 = vmatpush1.bf16.msra.mxu0 0
      %480 = vmatprep.subr.bf16.mxu0 0
      %481 = vmatpush1.bf16.msra.mxu0 0
      %482 = vmatprep.subr.bf16.mxu0 0
      %483 = vmatpush1.bf16.msra.mxu0 0
      %484 = vmatprep.subr.bf16.mxu0 0
      %485 = vmatpush1.bf16.msra.mxu0 0
      %486 = vmatprep.subr.bf16.mxu0 0
      %487 = vmatpush1.bf16.msra.mxu0 0
      %488 = vmatprep.subr.bf16.mxu0 0
      %489 = vmatpush1.bf16.msra.mxu0 0
      %490 = vmatprep.mubr.bf16.mxu0 0
      %491 = vmatmul.mubr.bf16.gmra.mrb[0].mxu0 %v431
      %v492 = vpop.f32.mrb[0].mxu0
      %v493 = vadd.f32 0.0, %v492
      %v494 = vpop.f32.mrb[0].mxu0
      %v495 = vpop.f32.mrb[0].mxu0
      %v496 = vadd.f32 0.0, %v495
      %v497 = vpop.f32.mrb[0].mxu0
      %498 = vmatprep.mubr.bf16.mxu0 0
      %499 = vmatmul.mubr.bf16.gmra.mrb[0].mxu0 %v434
      %v500 = vpop.f32.mrb[0].mxu0
      %v501 = vadd.f32 0.0, %v500
      %v502 = vpop.f32.mrb[0].mxu0
      %v503 = vpop.f32.mrb[0].mxu0
      %v504 = vadd.f32 0.0, %v503
      %v505 = vpop.f32.mrb[0].mxu0
      %506 = vmatprep.mubr.bf16.mxu0 0
      %507 = vmatmul.mubr.bf16.gmra.mrb[0].mxu0 %v437
      %v508 = vpop.f32.mrb[0].mxu0
      %v509 = vadd.f32 0.0, %v508
      %v510 = vpop.f32.mrb[0].mxu0
      %v511 = vpop.f32.mrb[0].mxu0
      %v512 = vadd.f32 0.0, %v511
      %v513 = vpop.f32.mrb[0].mxu0
      %514 = vmatprep.mubr.bf16.mxu0 0
      %515 = vmatmul.mubr.bf16.gmra.mrb[0].mxu0 %v440
      %v516 = vpop.f32.mrb[0].mxu0
      %v517 = vadd.f32 0.0, %v516
      %v518 = vpop.f32.mrb[0].mxu0
      %v519 = vpop.f32.mrb[0].mxu0
      %v520 = vadd.f32 0.0, %v519
      %v521 = vpop.f32.mrb[0].mxu0
      %522 = vmatprep.mubr.bf16.mxu0 0
      %523 = vmatmul.mubr.bf16.gmra.mrb[0].mxu0 %v443
      %v524 = vpop.f32.mrb[0].mxu0
      %v525 = vadd.f32 0.0, %v524
      %v526 = vpop.f32.mrb[0].mxu0
      %v527 = vpop.f32.mrb[0].mxu0
      %v528 = vadd.f32 0.0, %v527
      %v529 = vpop.f32.mrb[0].mxu0
      %530 = vmatprep.mubr.bf16.mxu0 0
      %531 = vmatmul.mubr.bf16.gmra.mrb[0].mxu0 %v446
      %v532 = vpop.f32.mrb[0].mxu0
      %v533 = vadd.f32 0.0, %v532
      %v534 = vpop.f32.mrb[0].mxu0
      %v535 = vpop.f32.mrb[0].mxu0
      %v536 = vadd.f32 0.0, %v535
      %v537 = vpop.f32.mrb[0].mxu0
      %538 = vmatprep.mubr.bf16.mxu0 0
      %539 = vmatmul.mubr.bf16.gmra.mrb[0].mxu0 %v449
      %v540 = vpop.f32.mrb[0].mxu0
      %v541 = vadd.f32 0.0, %v540
      %v542 = vpop.f32.mrb[0].mxu0
      %v543 = vpop.f32.mrb[0].mxu0
      %v544 = vadd.f32 0.0, %v543
      %v545 = vpop.f32.mrb[0].mxu0
      %546 = vmatprep.mubr.bf16.mxu0 0
      %547 = vmatmul.mubr.bf16.gmra.mrb[0].mxu0 %v452
      %v548 = vpop.f32.mrb[0].mxu0
      %v549 = vadd.f32 0.0, %v548
      %v550 = vpop.f32.mrb[0].mxu0
      %v551 = vpop.f32.mrb[0].mxu0
      %v552 = vadd.f32 0.0, %v551
      %v553 = vpop.f32.mrb[0].mxu0
      %554 = vdwg.mxu0
      %v571 = vunpack.c.l.b16 %v183
      %v572 = vunpack.c.l.b16 %v184
      %v573 = vunpack.c.l.b16 %v185
      %v574 = vunpack.c.l.b16 %v186
      %v575 = vunpack.c.l.b16 %v187
      %v576 = vunpack.c.l.b16 %v188
      %v577 = vunpack.c.l.b16 %v189
      %v578 = vunpack.c.l.b16 %v190
      %v579 = vunpack.c.l.b16 %v191
      %v580 = vunpack.c.l.b16 %v192
      %v581 = vunpack.c.l.b16 %v193
      %v582 = vunpack.c.l.b16 %v194
      %v583 = vunpack.c.l.b16 %v195
      %v584 = vunpack.c.l.b16 %v196
      %v585 = vunpack.c.l.b16 %v197
      %v586 = vunpack.c.l.b16 %v198
      %v587 = vpack.c.b16 %v572, %v571
      %v588 = vpack.c.b16 %v574, %v573
      %v589 = vpack.c.b16 %v576, %v575
      %v590 = vpack.c.b16 %v578, %v577
      %v591 = vpack.c.b16 %v580, %v579
      %v592 = vpack.c.b16 %v582, %v581
      %v593 = vpack.c.b16 %v584, %v583
      %v594 = vpack.c.b16 %v586, %v585
      %v596 = vsel %vm429, %v587, 0
      %v599 = vsel %vm429, %v588, 0
      %v602 = vsel %vm429, %v589, 0
      %v605 = vsel %vm429, %v590, 0
      %v608 = vsel %vm429, %v591, 0
      %v611 = vsel %vm429, %v592, 0
      %v614 = vsel %vm429, %v593, 0
      %v617 = vsel %vm429, %v594, 0
      %v620 = vsel %vm454, %v199, 0
      %622 = vmatprep.subr.bf16.mxu0 0
      %623 = vmatpush1.bf16.msra.mxu0 %v620
      %624 = vmatprep.subr.bf16.mxu0 0
      %625 = vmatpush1.bf16.msra.mxu0 0
      %626 = vmatprep.subr.bf16.mxu0 0
      %627 = vmatpush1.bf16.msra.mxu0 0
      %628 = vmatprep.subr.bf16.mxu0 0
      %629 = vmatpush1.bf16.msra.mxu0 0
      %630 = vmatprep.subr.bf16.mxu0 0
      %631 = vmatpush1.bf16.msra.mxu0 0
      %632 = vmatprep.subr.bf16.mxu0 0
      %633 = vmatpush1.bf16.msra.mxu0 0
      %634 = vmatprep.subr.bf16.mxu0 0
      %635 = vmatpush1.bf16.msra.mxu0 0
      %636 = vmatprep.subr.bf16.mxu0 0
      %637 = vmatpush1.bf16.msra.mxu0 0
      %638 = vmatprep.subr.bf16.mxu0 0
      %639 = vmatpush1.bf16.msra.mxu0 0
      %640 = vmatprep.subr.bf16.mxu0 0
      %641 = vmatpush1.bf16.msra.mxu0 0
      %642 = vmatprep.subr.bf16.mxu0 0
      %643 = vmatpush1.bf16.msra.mxu0 0
      %644 = vmatprep.subr.bf16.mxu0 0
      %645 = vmatpush1.bf16.msra.mxu0 0
      %646 = vmatprep.subr.bf16.mxu0 0
      %647 = vmatpush1.bf16.msra.mxu0 0
      %648 = vmatprep.subr.bf16.mxu0 0
      %649 = vmatpush1.bf16.msra.mxu0 0
      %650 = vmatprep.subr.bf16.mxu0 0
      %651 = vmatpush1.bf16.msra.mxu0 0
      %652 = vmatprep.subr.bf16.mxu0 0
      %653 = vmatpush1.bf16.msra.mxu0 0
      %654 = vmatprep.mubr.bf16.mxu0 0
      %655 = vmatmul.mubr.bf16.gmra.mrb[0].mxu0 %v596
      %v656 = vpop.f32.mrb[0].mxu0
      %v657 = vadd.f32 %v493, %v656
      %v658 = vpop.f32.mrb[0].mxu0
      %v659 = vpop.f32.mrb[0].mxu0
      %v660 = vadd.f32 %v496, %v659
      %v661 = vpop.f32.mrb[0].mxu0
      %662 = vmatprep.mubr.bf16.mxu0 0
      %663 = vmatmul.mubr.bf16.gmra.mrb[0].mxu0 %v599
      %v664 = vpop.f32.mrb[0].mxu0
      %v665 = vadd.f32 %v501, %v664
      %v666 = vpop.f32.mrb[0].mxu0
      %v667 = vpop.f32.mrb[0].mxu0
      %v668 = vadd.f32 %v504, %v667
      %v669 = vpop.f32.mrb[0].mxu0
      %670 = vmatprep.mubr.bf16.mxu0 0
      %671 = vmatmul.mubr.bf16.gmra.mrb[0].mxu0 %v602
      %v672 = vpop.f32.mrb[0].mxu0
      %v673 = vadd.f32 %v509, %v672
      %v674 = vpop.f32.mrb[0].mxu0
      %v675 = vpop.f32.mrb[0].mxu0
      %v676 = vadd.f32 %v512, %v675
      %v677 = vpop.f32.mrb[0].mxu0
      %678 = vmatprep.mubr.bf16.mxu0 0
      %679 = vmatmul.mubr.bf16.gmra.mrb[0].mxu0 %v605
      %v680 = vpop.f32.mrb[0].mxu0
      %v681 = vadd.f32 %v517, %v680
      %v682 = vpop.f32.mrb[0].mxu0
      %v683 = vpop.f32.mrb[0].mxu0
      %v684 = vadd.f32 %v520, %v683
      %v685 = vpop.f32.mrb[0].mxu0
      %686 = vmatprep.mubr.bf16.mxu0 0
      %687 = vmatmul.mubr.bf16.gmra.mrb[0].mxu0 %v608
      %v688 = vpop.f32.mrb[0].mxu0
      %v689 = vadd.f32 %v525, %v688
      %v690 = vpop.f32.mrb[0].mxu0
      %v691 = vpop.f32.mrb[0].mxu0
      %v692 = vadd.f32 %v528, %v691
      %v693 = vpop.f32.mrb[0].mxu0
      %694 = vmatprep.mubr.bf16.mxu0 0
      %695 = vmatmul.mubr.bf16.gmra.mrb[0].mxu0 %v611
      %v696 = vpop.f32.mrb[0].mxu0
      %v697 = vadd.f32 %v533, %v696
      %v698 = vpop.f32.mrb[0].mxu0
      %v699 = vpop.f32.mrb[0].mxu0
      %v700 = vadd.f32 %v536, %v699
      %v701 = vpop.f32.mrb[0].mxu0
      %702 = vmatprep.mubr.bf16.mxu0 0
      %703 = vmatmul.mubr.bf16.gmra.mrb[0].mxu0 %v614
      %v704 = vpop.f32.mrb[0].mxu0
      %v705 = vadd.f32 %v541, %v704
      %v706 = vpop.f32.mrb[0].mxu0
      %v707 = vpop.f32.mrb[0].mxu0
      %v708 = vadd.f32 %v544, %v707
      %v709 = vpop.f32.mrb[0].mxu0
      %710 = vmatprep.mubr.bf16.mxu0 0
      %711 = vmatmul.mubr.bf16.gmra.mrb[0].mxu0 %v617
      %v712 = vpop.f32.mrb[0].mxu0
      %v713 = vadd.f32 %v549, %v712
      %v714 = vpop.f32.mrb[0].mxu0
      %v715 = vpop.f32.mrb[0].mxu0
      %v716 = vadd.f32 %v552, %v715
      %v717 = vpop.f32.mrb[0].mxu0
      %718 = vdwg.mxu0
      %v719 = vld [vmem:[%s172] sm:$0xe]
      %v720 = vld [vmem:[%s172 + $0xc] sm:$0xe]
      %v721 = vld [vmem:[%s172 + $0x18] sm:$0xe]
      %v722 = vld [vmem:[%s172 + $0x24] sm:$0xe]
      %v723 = vld [vmem:[%s172 + $0x30] sm:$0xe]
      %v724 = vld [vmem:[%s172 + $0x3c] sm:$0xe]
      %v725 = vld [vmem:[%s172 + $0x48] sm:$0xe]
      %v726 = vld [vmem:[%s172 + $0x54] sm:$0xe]
      %vm743 = vcmask 1042432
      %vm744 = vcmask 1046532
      %vm745 = vmor %vm743, %vm744
      %v746 = vrot.slane %v719, 5
      %v747 = vrot.slane %v746, 4
      %v748 = vrot.slane %v184, 5
      %v749 = vsel %vm745, %v747, %v748
      %v750 = vrot.slane %v748, 4
      %v751 = vrot.slane %v200, 5
      %v752 = vsel %vm745, %v750, %v751
      %v753 = vrot.slane %v720, 5
      %v754 = vrot.slane %v753, 4
      %v755 = vrot.slane %v186, 5
      %v756 = vsel %vm745, %v754, %v755
      %v757 = vrot.slane %v755, 4
      %v758 = vrot.slane %v201, 5
      %v759 = vsel %vm745, %v757, %v758
      %v760 = vrot.slane %v721, 5
      %v761 = vrot.slane %v760, 4
      %v762 = vrot.slane %v188, 5
      %v763 = vsel %vm745, %v761, %v762
      %v764 = vrot.slane %v762, 4
      %v765 = vrot.slane %v202, 5
      %v766 = vsel %vm745, %v764, %v765
      %v767 = vrot.slane %v722, 5
      %v768 = vrot.slane %v767, 4
      %v769 = vrot.slane %v190, 5
      %v770 = vsel %vm745, %v768, %v769
      %v771 = vrot.slane %v769, 4
      %v772 = vrot.slane %v203, 5
      %v773 = vsel %vm745, %v771, %v772
      %v774 = vrot.slane %v723, 5
      %v775 = vrot.slane %v774, 4
      %v776 = vrot.slane %v192, 5
      %v777 = vsel %vm745, %v775, %v776
      %v778 = vrot.slane %v776, 4
      %v779 = vrot.slane %v204, 5
      %v780 = vsel %vm745, %v778, %v779
      %v781 = vrot.slane %v724, 5
      %v782 = vrot.slane %v781, 4
      %v783 = vrot.slane %v194, 5
      %v784 = vsel %vm745, %v782, %v783
      %v785 = vrot.slane %v783, 4
      %v786 = vrot.slane %v205, 5
      %v787 = vsel %vm745, %v785, %v786
      %v788 = vrot.slane %v725, 5
      %v789 = vrot.slane %v788, 4
      %v790 = vrot.slane %v196, 5
      %v791 = vsel %vm745, %v789, %v790
      %v792 = vrot.slane %v790, 4
      %v793 = vrot.slane %v206, 5
      %v794 = vsel %vm745, %v792, %v793
      %v795 = vrot.slane %v726, 5
      %v796 = vrot.slane %v795, 4
      %v797 = vrot.slane %v198, 5
      %v798 = vsel %vm745, %v796, %v797
      %v799 = vrot.slane %v797, 4
      %v800 = vrot.slane %v207, 5
      %v801 = vsel %vm745, %v799, %v800
      %s802 = scalar_lea.vmem %s1, 8
      %v803 = vld [vmem:[%s802] sm:$0xf]
      %v804 = vunpack.c.l.b16 %v749
      %v805 = vunpack.c.l.b16 %v752
      %v806 = vunpack.c.l.b16 %v756
      %v807 = vunpack.c.l.b16 %v759
      %v808 = vunpack.c.l.b16 %v763
      %v809 = vunpack.c.l.b16 %v766
      %v810 = vunpack.c.l.b16 %v770
      %v811 = vunpack.c.l.b16 %v773
      %v812 = vunpack.c.l.b16 %v777
      %v813 = vunpack.c.l.b16 %v780
      %v814 = vunpack.c.l.b16 %v784
      %v815 = vunpack.c.l.b16 %v787
      %v816 = vunpack.c.l.b16 %v791
      %v817 = vunpack.c.l.b16 %v794
      %v818 = vunpack.c.l.b16 %v798
      %v819 = vunpack.c.l.b16 %v801
      %v820 = vpack.c.b16 %v805, %v804
      %v821 = vpack.c.b16 %v807, %v806
      %v822 = vpack.c.b16 %v809, %v808
      %v823 = vpack.c.b16 %v811, %v810
      %v824 = vpack.c.b16 %v813, %v812
      %v825 = vpack.c.b16 %v815, %v814
      %v826 = vpack.c.b16 %v817, %v816
      %v827 = vpack.c.b16 %v819, %v818
      %v829 = vsel %vm429, %v820, 0
      %v832 = vsel %vm429, %v821, 0
      %v835 = vsel %vm429, %v822, 0
      %v838 = vsel %vm429, %v823, 0
      %v841 = vsel %vm429, %v824, 0
      %v844 = vsel %vm429, %v825, 0
      %v847 = vsel %vm429, %v826, 0
      %v850 = vsel %vm429, %v827, 0
      %v853 = vsel %vm454, %v803, 0
      %855 = vmatprep.subr.bf16.mxu0 0
      %856 = vmatpush1.bf16.msra.mxu0 %v853
      %857 = vmatprep.subr.bf16.mxu0 0
      %858 = vmatpush1.bf16.msra.mxu0 0
      %859 = vmatprep.subr.bf16.mxu0 0
      %860 = vmatpush1.bf16.msra.mxu0 0
      %861 = vmatprep.subr.bf16.mxu0 0
      %862 = vmatpush1.bf16.msra.mxu0 0
      %863 = vmatprep.subr.bf16.mxu0 0
      %864 = vmatpush1.bf16.msra.mxu0 0
      %865 = vmatprep.subr.bf16.mxu0 0
      %866 = vmatpush1.bf16.msra.mxu0 0
      %867 = vmatprep.subr.bf16.mxu0 0
      %868 = vmatpush1.bf16.msra.mxu0 0
      %869 = vmatprep.subr.bf16.mxu0 0
      %870 = vmatpush1.bf16.msra.mxu0 0
      %871 = vmatprep.subr.bf16.mxu0 0
      %872 = vmatpush1.bf16.msra.mxu0 0
      %873 = vmatprep.subr.bf16.mxu0 0
      %874 = vmatpush1.bf16.msra.mxu0 0
      %875 = vmatprep.subr.bf16.mxu0 0
      %876 = vmatpush1.bf16.msra.mxu0 0
      %877 = vmatprep.subr.bf16.mxu0 0
      %878 = vmatpush1.bf16.msra.mxu0 0
      %879 = vmatprep.subr.bf16.mxu0 0
      %880 = vmatpush1.bf16.msra.mxu0 0
      %881 = vmatprep.subr.bf16.mxu0 0
      %882 = vmatpush1.bf16.msra.mxu0 0
      %883 = vmatprep.subr.bf16.mxu0 0
      %884 = vmatpush1.bf16.msra.mxu0 0
      %885 = vmatprep.subr.bf16.mxu0 0
      %886 = vmatpush1.bf16.msra.mxu0 0
      %887 = vmatprep.mubr.bf16.mxu0 0
      %888 = vmatmul.mubr.bf16.gmra.mrb[0].mxu0 %v829
      %v889 = vpop.f32.mrb[0].mxu0
      %v890 = vadd.f32 0.0, %v889
      %v891 = vpop.f32.mrb[0].mxu0
      %v892 = vpop.f32.mrb[0].mxu0
      %v893 = vadd.f32 0.0, %v892
      %v894 = vpop.f32.mrb[0].mxu0
      %895 = vmatprep.mubr.bf16.mxu0 0
      %896 = vmatmul.mubr.bf16.gmra.mrb[0].mxu0 %v832
      %v897 = vpop.f32.mrb[0].mxu0
      %v898 = vadd.f32 0.0, %v897
      %v899 = vpop.f32.mrb[0].mxu0
      %v900 = vpop.f32.mrb[0].mxu0
      %v901 = vadd.f32 0.0, %v900
      %v902 = vpop.f32.mrb[0].mxu0
      %903 = vmatprep.mubr.bf16.mxu0 0
      %904 = vmatmul.mubr.bf16.gmra.mrb[0].mxu0 %v835
      %v905 = vpop.f32.mrb[0].mxu0
      %v906 = vadd.f32 0.0, %v905
      %v907 = vpop.f32.mrb[0].mxu0
      %v908 = vpop.f32.mrb[0].mxu0
      %v909 = vadd.f32 0.0, %v908
      %v910 = vpop.f32.mrb[0].mxu0
      %911 = vmatprep.mubr.bf16.mxu0 0
      %912 = vmatmul.mubr.bf16.gmra.mrb[0].mxu0 %v838
      %v913 = vpop.f32.mrb[0].mxu0
      %v914 = vadd.f32 0.0, %v913
      %v915 = vpop.f32.mrb[0].mxu0
      %v916 = vpop.f32.mrb[0].mxu0
      %v917 = vadd.f32 0.0, %v916
      %v918 = vpop.f32.mrb[0].mxu0
      %919 = vmatprep.mubr.bf16.mxu0 0
      %920 = vmatmul.mubr.bf16.gmra.mrb[0].mxu0 %v841
      %v921 = vpop.f32.mrb[0].mxu0
      %v922 = vadd.f32 0.0, %v921
      %v923 = vpop.f32.mrb[0].mxu0
      %v924 = vpop.f32.mrb[0].mxu0
      %v925 = vadd.f32 0.0, %v924
      %v926 = vpop.f32.mrb[0].mxu0
      %927 = vmatprep.mubr.bf16.mxu0 0
      %928 = vmatmul.mubr.bf16.gmra.mrb[0].mxu0 %v844
      %v929 = vpop.f32.mrb[0].mxu0
      %v930 = vadd.f32 0.0, %v929
      %v931 = vpop.f32.mrb[0].mxu0
      %v932 = vpop.f32.mrb[0].mxu0
      %v933 = vadd.f32 0.0, %v932
      %v934 = vpop.f32.mrb[0].mxu0
      %935 = vmatprep.mubr.bf16.mxu0 0
      %936 = vmatmul.mubr.bf16.gmra.mrb[0].mxu0 %v847
      %v937 = vpop.f32.mrb[0].mxu0
      %v938 = vadd.f32 0.0, %v937
      %v939 = vpop.f32.mrb[0].mxu0
      %v940 = vpop.f32.mrb[0].mxu0
      %v941 = vadd.f32 0.0, %v940
      %v942 = vpop.f32.mrb[0].mxu0
      %943 = vmatprep.mubr.bf16.mxu0 0
      %944 = vmatmul.mubr.bf16.gmra.mrb[0].mxu0 %v850
      %v945 = vpop.f32.mrb[0].mxu0
      %v946 = vadd.f32 0.0, %v945
      %v947 = vpop.f32.mrb[0].mxu0
      %v948 = vpop.f32.mrb[0].mxu0
      %v949 = vadd.f32 0.0, %v948
      %v950 = vpop.f32.mrb[0].mxu0
      %951 = vdwg.mxu0
      %v952 = vadd.f32 %v657, %v890
      %v953 = vadd.f32 %v660, %v893
      %v954 = vadd.f32 %v665, %v898
      %v955 = vadd.f32 %v668, %v901
      %v956 = vadd.f32 %v673, %v906
      %v957 = vadd.f32 %v676, %v909
      %v958 = vadd.f32 %v681, %v914
      %v959 = vadd.f32 %v684, %v917
      %v960 = vadd.f32 %v689, %v922
      %v961 = vadd.f32 %v692, %v925
      %v962 = vadd.f32 %v697, %v930
      %v963 = vadd.f32 %v700, %v933
      %v964 = vadd.f32 %v705, %v938
      %v965 = vadd.f32 %v708, %v941
      %v966 = vadd.f32 %v713, %v946
      %v967 = vadd.f32 %v716, %v949
      %s968 = scalar_lea.vmem %s172, 12
      %v969 = vld [vmem:[%s968] sm:$0xf]
      %v970 = vld [vmem:[%s968 + $0x4] sm:$0xf]
      %v971 = vld [vmem:[%s968 + $0xc] sm:$0xf]
      %v972 = vld [vmem:[%s968 + $0x10] sm:$0xf]
      %v973 = vld [vmem:[%s968 + $0x18] sm:$0xf]
      %v974 = vld [vmem:[%s968 + $0x1c] sm:$0xf]
      %v975 = vld [vmem:[%s968 + $0x24] sm:$0xf]
      %v976 = vld [vmem:[%s968 + $0x28] sm:$0xf]
      %v977 = vld [vmem:[%s968 + $0x30] sm:$0xf]
      %v978 = vld [vmem:[%s968 + $0x34] sm:$0xf]
      %v979 = vld [vmem:[%s968 + $0x3c] sm:$0xf]
      %v980 = vld [vmem:[%s968 + $0x40] sm:$0xf]
      %v981 = vld [vmem:[%s968 + $0x48] sm:$0xf]
      %v982 = vld [vmem:[%s968 + $0x4c] sm:$0xf]
      %v983 = vld [vmem:[%s968 + $0x54] sm:$0xf]
      %v984 = vld [vmem:[%s968 + $0x58] sm:$0xf]
      %s985 = scalar_lea.vmem %s1, 12
      %v986 = vld [vmem:[%s985] sm:$0xf]
      %v1003 = vunpack.c.l.b16 %v969
      %v1004 = vunpack.c.l.b16 %v970
      %v1005 = vunpack.c.l.b16 %v971
      %v1006 = vunpack.c.l.b16 %v972
      %v1007 = vunpack.c.l.b16 %v973
      %v1008 = vunpack.c.l.b16 %v974
      %v1009 = vunpack.c.l.b16 %v975
      %v1010 = vunpack.c.l.b16 %v976
      %v1011 = vunpack.c.l.b16 %v977
      %v1012 = vunpack.c.l.b16 %v978
      %v1013 = vunpack.c.l.b16 %v979
      %v1014 = vunpack.c.l.b16 %v980
      %v1015 = vunpack.c.l.b16 %v981
      %v1016 = vunpack.c.l.b16 %v982
      %v1017 = vunpack.c.l.b16 %v983
      %v1018 = vunpack.c.l.b16 %v984
      %v1019 = vpack.c.b16 %v1004, %v1003
      %v1020 = vpack.c.b16 %v1006, %v1005
      %v1021 = vpack.c.b16 %v1008, %v1007
      %v1022 = vpack.c.b16 %v1010, %v1009
      %v1023 = vpack.c.b16 %v1012, %v1011
      %v1024 = vpack.c.b16 %v1014, %v1013
      %v1025 = vpack.c.b16 %v1016, %v1015
      %v1026 = vpack.c.b16 %v1018, %v1017
      %v1028 = vsel %vm429, %v1019, 0
      %v1031 = vsel %vm429, %v1020, 0
      %v1034 = vsel %vm429, %v1021, 0
      %v1037 = vsel %vm429, %v1022, 0
      %v1040 = vsel %vm429, %v1023, 0
      %v1043 = vsel %vm429, %v1024, 0
      %v1046 = vsel %vm429, %v1025, 0
      %v1049 = vsel %vm429, %v1026, 0
      %v1052 = vsel %vm454, %v986, 0
      %1054 = vmatprep.subr.bf16.mxu0 0
      %1055 = vmatpush1.bf16.msra.mxu0 %v1052
      %1056 = vmatprep.subr.bf16.mxu0 0
      %1057 = vmatpush1.bf16.msra.mxu0 0
      %1058 = vmatprep.subr.bf16.mxu0 0
      %1059 = vmatpush1.bf16.msra.mxu0 0
      %1060 = vmatprep.subr.bf16.mxu0 0
      %1061 = vmatpush1.bf16.msra.mxu0 0
      %1062 = vmatprep.subr.bf16.mxu0 0
      %1063 = vmatpush1.bf16.msra.mxu0 0
      %1064 = vmatprep.subr.bf16.mxu0 0
      %1065 = vmatpush1.bf16.msra.mxu0 0
      %1066 = vmatprep.subr.bf16.mxu0 0
      %1067 = vmatpush1.bf16.msra.mxu0 0
      %1068 = vmatprep.subr.bf16.mxu0 0
      %1069 = vmatpush1.bf16.msra.mxu0 0
      %1070 = vmatprep.subr.bf16.mxu0 0
      %1071 = vmatpush1.bf16.msra.mxu0 0
      %1072 = vmatprep.subr.bf16.mxu0 0
      %1073 = vmatpush1.bf16.msra.mxu0 0
      %1074 = vmatprep.subr.bf16.mxu0 0
      %1075 = vmatpush1.bf16.msra.mxu0 0
      %1076 = vmatprep.subr.bf16.mxu0 0
      %1077 = vmatpush1.bf16.msra.mxu0 0
      %1078 = vmatprep.subr.bf16.mxu0 0
      %1079 = vmatpush1.bf16.msra.mxu0 0
      %1080 = vmatprep.subr.bf16.mxu0 0
      %1081 = vmatpush1.bf16.msra.mxu0 0
      %1082 = vmatprep.subr.bf16.mxu0 0
      %1083 = vmatpush1.bf16.msra.mxu0 0
      %1084 = vmatprep.subr.bf16.mxu0 0
      %1085 = vmatpush1.bf16.msra.mxu0 0
      %1086 = vmatprep.mubr.bf16.mxu0 0
      %1087 = vmatmul.mubr.bf16.gmra.mrb[0].mxu0 %v1028
      %v1088 = vpop.f32.mrb[0].mxu0
      %v1089 = vadd.f32 0.0, %v1088
      %v1090 = vpop.f32.mrb[0].mxu0
      %v1091 = vpop.f32.mrb[0].mxu0
      %v1092 = vadd.f32 0.0, %v1091
      %v1093 = vpop.f32.mrb[0].mxu0
      %1094 = vmatprep.mubr.bf16.mxu0 0
      %1095 = vmatmul.mubr.bf16.gmra.mrb[0].mxu0 %v1031
      %v1096 = vpop.f32.mrb[0].mxu0
      %v1097 = vadd.f32 0.0, %v1096
      %v1098 = vpop.f32.mrb[0].mxu0
      %v1099 = vpop.f32.mrb[0].mxu0
      %v1100 = vadd.f32 0.0, %v1099
      %v1101 = vpop.f32.mrb[0].mxu0
      %1102 = vmatprep.mubr.bf16.mxu0 0
      %1103 = vmatmul.mubr.bf16.gmra.mrb[0].mxu0 %v1034
      %v1104 = vpop.f32.mrb[0].mxu0
      %v1105 = vadd.f32 0.0, %v1104
      %v1106 = vpop.f32.mrb[0].mxu0
      %v1107 = vpop.f32.mrb[0].mxu0
      %v1108 = vadd.f32 0.0, %v1107
      %v1109 = vpop.f32.mrb[0].mxu0
      %1110 = vmatprep.mubr.bf16.mxu0 0
      %1111 = vmatmul.mubr.bf16.gmra.mrb[0].mxu0 %v1037
      %v1112 = vpop.f32.mrb[0].mxu0
      %v1113 = vadd.f32 0.0, %v1112
      %v1114 = vpop.f32.mrb[0].mxu0
      %v1115 = vpop.f32.mrb[0].mxu0
      %v1116 = vadd.f32 0.0, %v1115
      %v1117 = vpop.f32.mrb[0].mxu0
      %1118 = vmatprep.mubr.bf16.mxu0 0
      %1119 = vmatmul.mubr.bf16.gmra.mrb[0].mxu0 %v1040
      %v1120 = vpop.f32.mrb[0].mxu0
      %v1121 = vadd.f32 0.0, %v1120
      %v1122 = vpop.f32.mrb[0].mxu0
      %v1123 = vpop.f32.mrb[0].mxu0
      %v1124 = vadd.f32 0.0, %v1123
      %v1125 = vpop.f32.mrb[0].mxu0
      %1126 = vmatprep.mubr.bf16.mxu0 0
      %1127 = vmatmul.mubr.bf16.gmra.mrb[0].mxu0 %v1043
      %v1128 = vpop.f32.mrb[0].mxu0
      %v1129 = vadd.f32 0.0, %v1128
      %v1130 = vpop.f32.mrb[0].mxu0
      %v1131 = vpop.f32.mrb[0].mxu0
      %v1132 = vadd.f32 0.0, %v1131
      %v1133 = vpop.f32.mrb[0].mxu0
      %1134 = vmatprep.mubr.bf16.mxu0 0
      %1135 = vmatmul.mubr.bf16.gmra.mrb[0].mxu0 %v1046
      %v1136 = vpop.f32.mrb[0].mxu0
      %v1137 = vadd.f32 0.0, %v1136
      %v1138 = vpop.f32.mrb[0].mxu0
      %v1139 = vpop.f32.mrb[0].mxu0
      %v1140 = vadd.f32 0.0, %v1139
      %v1141 = vpop.f32.mrb[0].mxu0
      %1142 = vmatprep.mubr.bf16.mxu0 0
      %1143 = vmatmul.mubr.bf16.gmra.mrb[0].mxu0 %v1049
      %v1144 = vpop.f32.mrb[0].mxu0
      %v1145 = vadd.f32 0.0, %v1144
      %v1146 = vpop.f32.mrb[0].mxu0
      %v1147 = vpop.f32.mrb[0].mxu0
      %v1148 = vadd.f32 0.0, %v1147
      %v1149 = vpop.f32.mrb[0].mxu0
      %1150 = vdwg.mxu0
      %v1151 = vadd.f32 %v952, %v1089
      %v1152 = vadd.f32 %v953, %v1092
      %v1153 = vadd.f32 %v954, %v1097
      %v1154 = vadd.f32 %v955, %v1100
      %v1155 = vadd.f32 %v956, %v1105
      %v1156 = vadd.f32 %v957, %v1108
      %v1157 = vadd.f32 %v958, %v1113
      %v1158 = vadd.f32 %v959, %v1116
      %v1159 = vadd.f32 %v960, %v1121
      %v1160 = vadd.f32 %v961, %v1124
      %v1161 = vadd.f32 %v962, %v1129
      %v1162 = vadd.f32 %v963, %v1132
      %v1163 = vadd.f32 %v964, %v1137
      %v1164 = vadd.f32 %v965, %v1140
      %v1165 = vadd.f32 %v966, %v1145
      %v1166 = vadd.f32 %v967, %v1148
      %v1167 = vld [vmem:[%s968] sm:$0xf]
      %v1168 = vld [vmem:[%s968 + $0x4] sm:$0xf]
      %v1169 = vld [vmem:[%s968 + $0x8] sm:$0x1]
      %v1170 = vld [vmem:[%s968 + $0xc] sm:$0xf]
      %v1171 = vld [vmem:[%s968 + $0x10] sm:$0xf]
      %v1172 = vld [vmem:[%s968 + $0x14] sm:$0x1]
      %v1173 = vld [vmem:[%s968 + $0x18] sm:$0xf]
      %v1174 = vld [vmem:[%s968 + $0x1c] sm:$0xf]
      %v1175 = vld [vmem:[%s968 + $0x20] sm:$0x1]
      %v1176 = vld [vmem:[%s968 + $0x24] sm:$0xf]
      %v1177 = vld [vmem:[%s968 + $0x28] sm:$0xf]
      %v1178 = vld [vmem:[%s968 + $0x2c] sm:$0x1]
      %v1179 = vld [vmem:[%s968 + $0x30] sm:$0xf]
      %v1180 = vld [vmem:[%s968 + $0x34] sm:$0xf]
      %v1181 = vld [vmem:[%s968 + $0x38] sm:$0x1]
      %v1182 = vld [vmem:[%s968 + $0x3c] sm:$0xf]
      %v1183 = vld [vmem:[%s968 + $0x40] sm:$0xf]
      %v1184 = vld [vmem:[%s968 + $0x44] sm:$0x1]
      %v1185 = vld [vmem:[%s968 + $0x48] sm:$0xf]
      %v1186 = vld [vmem:[%s968 + $0x4c] sm:$0xf]
      %v1187 = vld [vmem:[%s968 + $0x50] sm:$0x1]
      %v1188 = vld [vmem:[%s968 + $0x54] sm:$0xf]
      %v1189 = vld [vmem:[%s968 + $0x58] sm:$0xf]
      %v1190 = vld [vmem:[%s968 + $0x5c] sm:$0x1]
      %v1192 = vshrl.u32 %v1167, 16
      %v1194 = vrot.slane %v1192, 4
      %v1195 = vshll.u32 %v1167, 16
      %v1197 = vrot.slane %v1195, 5
      %v1198 = vor.u32 %v1194, %v1197
      %v1199 = vrot.slane %v1198, 4
      %v1201 = vshll.u32 %v1168, 16
      %v1203 = vrot.slane %v1201, 5
      %v1204 = vsel %vm210, %v1199, %v1203
      %v1205 = vshrl.u32 %v1168, 16
      %v1207 = vrot.slane %v1205, 4
      %v1208 = vor.u32 %v1207, %v1203
      %v1209 = vrot.slane %v1208, 4
      %v1211 = vshll.u32 %v1169, 16
      %v1213 = vrot.slane %v1211, 5
      %v1214 = vsel %vm210, %v1209, %v1213
      %v1216 = vshrl.u32 %v1170, 16
      %v1218 = vrot.slane %v1216, 4
      %v1219 = vshll.u32 %v1170, 16
      %v1221 = vrot.slane %v1219, 5
      %v1222 = vor.u32 %v1218, %v1221
      %v1223 = vrot.slane %v1222, 4
      %v1225 = vshll.u32 %v1171, 16
      %v1227 = vrot.slane %v1225, 5
      %v1228 = vsel %vm210, %v1223, %v1227
      %v1229 = vshrl.u32 %v1171, 16
      %v1231 = vrot.slane %v1229, 4
      %v1232 = vor.u32 %v1231, %v1227
      %v1233 = vrot.slane %v1232, 4
      %v1235 = vshll.u32 %v1172, 16
      %v1237 = vrot.slane %v1235, 5
      %v1238 = vsel %vm210, %v1233, %v1237
      %v1240 = vshrl.u32 %v1173, 16
      %v1242 = vrot.slane %v1240, 4
      %v1243 = vshll.u32 %v1173, 16
      %v1245 = vrot.slane %v1243, 5
      %v1246 = vor.u32 %v1242, %v1245
      %v1247 = vrot.slane %v1246, 4
      %v1249 = vshll.u32 %v1174, 16
      %v1251 = vrot.slane %v1249, 5
      %v1252 = vsel %vm210, %v1247, %v1251
      %v1253 = vshrl.u32 %v1174, 16
      %v1255 = vrot.slane %v1253, 4
      %v1256 = vor.u32 %v1255, %v1251
      %v1257 = vrot.slane %v1256, 4
      %v1259 = vshll.u32 %v1175, 16
      %v1261 = vrot.slane %v1259, 5
      %v1262 = vsel %vm210, %v1257, %v1261
      %v1264 = vshrl.u32 %v1176, 16
      %v1266 = vrot.slane %v1264, 4
      %v1267 = vshll.u32 %v1176, 16
      %v1269 = vrot.slane %v1267, 5
      %v1270 = vor.u32 %v1266, %v1269
      %v1271 = vrot.slane %v1270, 4
      %v1273 = vshll.u32 %v1177, 16
      %v1275 = vrot.slane %v1273, 5
      %v1276 = vsel %vm210, %v1271, %v1275
      %v1277 = vshrl.u32 %v1177, 16
      %v1279 = vrot.slane %v1277, 4
      %v1280 = vor.u32 %v1279, %v1275
      %v1281 = vrot.slane %v1280, 4
      %v1283 = vshll.u32 %v1178, 16
      %v1285 = vrot.slane %v1283, 5
      %v1286 = vsel %vm210, %v1281, %v1285
      %v1288 = vshrl.u32 %v1179, 16
      %v1290 = vrot.slane %v1288, 4
      %v1291 = vshll.u32 %v1179, 16
      %v1293 = vrot.slane %v1291, 5
      %v1294 = vor.u32 %v1290, %v1293
      %v1295 = vrot.slane %v1294, 4
      %v1297 = vshll.u32 %v1180, 16
      %v1299 = vrot.slane %v1297, 5
      %v1300 = vsel %vm210, %v1295, %v1299
      %v1301 = vshrl.u32 %v1180, 16
      %v1303 = vrot.slane %v1301, 4
      %v1304 = vor.u32 %v1303, %v1299
      %v1305 = vrot.slane %v1304, 4
      %v1307 = vshll.u32 %v1181, 16
      %v1309 = vrot.slane %v1307, 5
      %v1310 = vsel %vm210, %v1305, %v1309
      %v1312 = vshrl.u32 %v1182, 16
      %v1314 = vrot.slane %v1312, 4
      %v1315 = vshll.u32 %v1182, 16
      %v1317 = vrot.slane %v1315, 5
      %v1318 = vor.u32 %v1314, %v1317
      %v1319 = vrot.slane %v1318, 4
      %v1321 = vshll.u32 %v1183, 16
      %v1323 = vrot.slane %v1321, 5
      %v1324 = vsel %vm210, %v1319, %v1323
      %v1325 = vshrl.u32 %v1183, 16
      %v1327 = vrot.slane %v1325, 4
      %v1328 = vor.u32 %v1327, %v1323
      %v1329 = vrot.slane %v1328, 4
      %v1331 = vshll.u32 %v1184, 16
      %v1333 = vrot.slane %v1331, 5
      %v1334 = vsel %vm210, %v1329, %v1333
      %v1336 = vshrl.u32 %v1185, 16
      %v1338 = vrot.slane %v1336, 4
      %v1339 = vshll.u32 %v1185, 16
      %v1341 = vrot.slane %v1339, 5
      %v1342 = vor.u32 %v1338, %v1341
      %v1343 = vrot.slane %v1342, 4
      %v1345 = vshll.u32 %v1186, 16
      %v1347 = vrot.slane %v1345, 5
      %v1348 = vsel %vm210, %v1343, %v1347
      %v1349 = vshrl.u32 %v1186, 16
      %v1351 = vrot.slane %v1349, 4
      %v1352 = vor.u32 %v1351, %v1347
      %v1353 = vrot.slane %v1352, 4
      %v1355 = vshll.u32 %v1187, 16
      %v1357 = vrot.slane %v1355, 5
      %v1358 = vsel %vm210, %v1353, %v1357
      %v1360 = vshrl.u32 %v1188, 16
      %v1362 = vrot.slane %v1360, 4
      %v1363 = vshll.u32 %v1188, 16
      %v1365 = vrot.slane %v1363, 5
      %v1366 = vor.u32 %v1362, %v1365
      %v1367 = vrot.slane %v1366, 4
      %v1369 = vshll.u32 %v1189, 16
      %v1371 = vrot.slane %v1369, 5
      %v1372 = vsel %vm210, %v1367, %v1371
      %v1373 = vshrl.u32 %v1189, 16
      %v1375 = vrot.slane %v1373, 4
      %v1376 = vor.u32 %v1375, %v1371
      %v1377 = vrot.slane %v1376, 4
      %v1379 = vshll.u32 %v1190, 16
      %v1381 = vrot.slane %v1379, 5
      %v1382 = vsel %vm210, %v1377, %v1381
      %s1383 = scalar_lea.vmem %s1, 16
      %v1384 = vld [vmem:[%s1383] sm:$0xf]
      %v1385 = vunpack.c.l.b16 %v1204
      %v1386 = vunpack.c.l.b16 %v1214
      %v1387 = vunpack.c.l.b16 %v1228
      %v1388 = vunpack.c.l.b16 %v1238
      %v1389 = vunpack.c.l.b16 %v1252
      %v1390 = vunpack.c.l.b16 %v1262
      %v1391 = vunpack.c.l.b16 %v1276
      %v1392 = vunpack.c.l.b16 %v1286
      %v1393 = vunpack.c.l.b16 %v1300
      %v1394 = vunpack.c.l.b16 %v1310
      %v1395 = vunpack.c.l.b16 %v1324
      %v1396 = vunpack.c.l.b16 %v1334
      %v1397 = vunpack.c.l.b16 %v1348
      %v1398 = vunpack.c.l.b16 %v1358
      %v1399 = vunpack.c.l.b16 %v1372
      %v1400 = vunpack.c.l.b16 %v1382
      %v1401 = vpack.c.b16 %v1386, %v1385
      %v1402 = vpack.c.b16 %v1388, %v1387
      %v1403 = vpack.c.b16 %v1390, %v1389
      %v1404 = vpack.c.b16 %v1392, %v1391
      %v1405 = vpack.c.b16 %v1394, %v1393
      %v1406 = vpack.c.b16 %v1396, %v1395
      %v1407 = vpack.c.b16 %v1398, %v1397
      %v1408 = vpack.c.b16 %v1400, %v1399
      %v1410 = vsel %vm429, %v1401, 0
      %v1413 = vsel %vm429, %v1402, 0
      %v1416 = vsel %vm429, %v1403, 0
      %v1419 = vsel %vm429, %v1404, 0
      %v1422 = vsel %vm429, %v1405, 0
      %v1425 = vsel %vm429, %v1406, 0
      %v1428 = vsel %vm429, %v1407, 0
      %v1431 = vsel %vm429, %v1408, 0
      %v1434 = vsel %vm454, %v1384, 0
      %1436 = vmatprep.subr.bf16.mxu0 0
      %1437 = vmatpush1.bf16.msra.mxu0 %v1434
      %1438 = vmatprep.subr.bf16.mxu0 0
      %1439 = vmatpush1.bf16.msra.mxu0 0
      %1440 = vmatprep.subr.bf16.mxu0 0
      %1441 = vmatpush1.bf16.msra.mxu0 0
      %1442 = vmatprep.subr.bf16.mxu0 0
      %1443 = vmatpush1.bf16.msra.mxu0 0
      %1444 = vmatprep.subr.bf16.mxu0 0
      %1445 = vmatpush1.bf16.msra.mxu0 0
      %1446 = vmatprep.subr.bf16.mxu0 0
      %1447 = vmatpush1.bf16.msra.mxu0 0
      %1448 = vmatprep.subr.bf16.mxu0 0
      %1449 = vmatpush1.bf16.msra.mxu0 0
      %1450 = vmatprep.subr.bf16.mxu0 0
      %1451 = vmatpush1.bf16.msra.mxu0 0
      %1452 = vmatprep.subr.bf16.mxu0 0
      %1453 = vmatpush1.bf16.msra.mxu0 0
      %1454 = vmatprep.subr.bf16.mxu0 0
      %1455 = vmatpush1.bf16.msra.mxu0 0
      %1456 = vmatprep.subr.bf16.mxu0 0
      %1457 = vmatpush1.bf16.msra.mxu0 0
      %1458 = vmatprep.subr.bf16.mxu0 0
      %1459 = vmatpush1.bf16.msra.mxu0 0
      %1460 = vmatprep.subr.bf16.mxu0 0
      %1461 = vmatpush1.bf16.msra.mxu0 0
      %1462 = vmatprep.subr.bf16.mxu0 0
      %1463 = vmatpush1.bf16.msra.mxu0 0
      %1464 = vmatprep.subr.bf16.mxu0 0
      %1465 = vmatpush1.bf16.msra.mxu0 0
      %1466 = vmatprep.subr.bf16.mxu0 0
      %1467 = vmatpush1.bf16.msra.mxu0 0
      %1468 = vmatprep.mubr.bf16.mxu0 0
      %1469 = vmatmul.mubr.bf16.gmra.mrb[0].mxu0 %v1410
      %v1470 = vpop.f32.mrb[0].mxu0
      %v1471 = vadd.f32 0.0, %v1470
      %v1472 = vpop.f32.mrb[0].mxu0
      %v1473 = vpop.f32.mrb[0].mxu0
      %v1474 = vadd.f32 0.0, %v1473
      %v1475 = vpop.f32.mrb[0].mxu0
      %1476 = vmatprep.mubr.bf16.mxu0 0
      %1477 = vmatmul.mubr.bf16.gmra.mrb[0].mxu0 %v1413
      %v1478 = vpop.f32.mrb[0].mxu0
      %v1479 = vadd.f32 0.0, %v1478
      %v1480 = vpop.f32.mrb[0].mxu0
      %v1481 = vpop.f32.mrb[0].mxu0
      %v1482 = vadd.f32 0.0, %v1481
      %v1483 = vpop.f32.mrb[0].mxu0
      %1484 = vmatprep.mubr.bf16.mxu0 0
      %1485 = vmatmul.mubr.bf16.gmra.mrb[0].mxu0 %v1416
      %v1486 = vpop.f32.mrb[0].mxu0
      %v1487 = vadd.f32 0.0, %v1486
      %v1488 = vpop.f32.mrb[0].mxu0
      %v1489 = vpop.f32.mrb[0].mxu0
      %v1490 = vadd.f32 0.0, %v1489
      %v1491 = vpop.f32.mrb[0].mxu0
      %1492 = vmatprep.mubr.bf16.mxu0 0
      %1493 = vmatmul.mubr.bf16.gmra.mrb[0].mxu0 %v1419
      %v1494 = vpop.f32.mrb[0].mxu0
      %v1495 = vadd.f32 0.0, %v1494
      %v1496 = vpop.f32.mrb[0].mxu0
      %v1497 = vpop.f32.mrb[0].mxu0
      %v1498 = vadd.f32 0.0, %v1497
      %v1499 = vpop.f32.mrb[0].mxu0
      %1500 = vmatprep.mubr.bf16.mxu0 0
      %1501 = vmatmul.mubr.bf16.gmra.mrb[0].mxu0 %v1422
      %v1502 = vpop.f32.mrb[0].mxu0
      %v1503 = vadd.f32 0.0, %v1502
      %v1504 = vpop.f32.mrb[0].mxu0
      %v1505 = vpop.f32.mrb[0].mxu0
      %v1506 = vadd.f32 0.0, %v1505
      %v1507 = vpop.f32.mrb[0].mxu0
      %1508 = vmatprep.mubr.bf16.mxu0 0
      %1509 = vmatmul.mubr.bf16.gmra.mrb[0].mxu0 %v1425
      %v1510 = vpop.f32.mrb[0].mxu0
      %v1511 = vadd.f32 0.0, %v1510
      %v1512 = vpop.f32.mrb[0].mxu0
      %v1513 = vpop.f32.mrb[0].mxu0
      %v1514 = vadd.f32 0.0, %v1513
      %v1515 = vpop.f32.mrb[0].mxu0
      %1516 = vmatprep.mubr.bf16.mxu0 0
      %1517 = vmatmul.mubr.bf16.gmra.mrb[0].mxu0 %v1428
      %v1518 = vpop.f32.mrb[0].mxu0
      %v1519 = vadd.f32 0.0, %v1518
      %v1520 = vpop.f32.mrb[0].mxu0
      %v1521 = vpop.f32.mrb[0].mxu0
      %v1522 = vadd.f32 0.0, %v1521
      %v1523 = vpop.f32.mrb[0].mxu0
      %1524 = vmatprep.mubr.bf16.mxu0 0
      %1525 = vmatmul.mubr.bf16.gmra.mrb[0].mxu0 %v1431
      %v1526 = vpop.f32.mrb[0].mxu0
      %v1527 = vadd.f32 0.0, %v1526
      %v1528 = vpop.f32.mrb[0].mxu0
      %v1529 = vpop.f32.mrb[0].mxu0
      %v1530 = vadd.f32 0.0, %v1529
      %v1531 = vpop.f32.mrb[0].mxu0
      %1532 = vdwg.mxu0
      %v1533 = vadd.f32 %v1151, %v1471
      %v1534 = vadd.f32 %v1152, %v1474
      %v1535 = vadd.f32 %v1153, %v1479
      %v1536 = vadd.f32 %v1154, %v1482
      %v1537 = vadd.f32 %v1155, %v1487
      %v1538 = vadd.f32 %v1156, %v1490
      %v1539 = vadd.f32 %v1157, %v1495
      %v1540 = vadd.f32 %v1158, %v1498
      %v1541 = vadd.f32 %v1159, %v1503
      %v1542 = vadd.f32 %v1160, %v1506
      %v1543 = vadd.f32 %v1161, %v1511
      %v1544 = vadd.f32 %v1162, %v1514
      %v1545 = vadd.f32 %v1163, %v1519
      %v1546 = vadd.f32 %v1164, %v1522
      %v1547 = vadd.f32 %v1165, %v1527
      %v1548 = vadd.f32 %v1166, %v1530
      %v1549 = vld [vmem:[%s968] sm:$0xe]
      %v1550 = vld [vmem:[%s968 + $0xc] sm:$0xe]
      %v1551 = vld [vmem:[%s968 + $0x18] sm:$0xe]
      %v1552 = vld [vmem:[%s968 + $0x24] sm:$0xe]
      %v1553 = vld [vmem:[%s968 + $0x30] sm:$0xe]
      %v1554 = vld [vmem:[%s968 + $0x3c] sm:$0xe]
      %v1555 = vld [vmem:[%s968 + $0x48] sm:$0xe]
      %v1556 = vld [vmem:[%s968 + $0x54] sm:$0xe]
      %v1581 = vrot.slane %v1549, 5
      %v1582 = vrot.slane %v1581, 4
      %v1583 = vrot.slane %v1168, 5
      %v1584 = vsel %vm745, %v1582, %v1583
      %v1585 = vrot.slane %v1583, 4
      %v1586 = vrot.slane %v1169, 5
      %v1587 = vsel %vm745, %v1585, %v1586
      %v1588 = vrot.slane %v1550, 5
      %v1589 = vrot.slane %v1588, 4
      %v1590 = vrot.slane %v1171, 5
      %v1591 = vsel %vm745, %v1589, %v1590
      %v1592 = vrot.slane %v1590, 4
      %v1593 = vrot.slane %v1172, 5
      %v1594 = vsel %vm745, %v1592, %v1593
      %v1595 = vrot.slane %v1551, 5
      %v1596 = vrot.slane %v1595, 4
      %v1597 = vrot.slane %v1174, 5
      %v1598 = vsel %vm745, %v1596, %v1597
      %v1599 = vrot.slane %v1597, 4
      %v1600 = vrot.slane %v1175, 5
      %v1601 = vsel %vm745, %v1599, %v1600
      %v1602 = vrot.slane %v1552, 5
      %v1603 = vrot.slane %v1602, 4
      %v1604 = vrot.slane %v1177, 5
      %v1605 = vsel %vm745, %v1603, %v1604
      %v1606 = vrot.slane %v1604, 4
      %v1607 = vrot.slane %v1178, 5
      %v1608 = vsel %vm745, %v1606, %v1607
      %v1609 = vrot.slane %v1553, 5
      %v1610 = vrot.slane %v1609, 4
      %v1611 = vrot.slane %v1180, 5
      %v1612 = vsel %vm745, %v1610, %v1611
      %v1613 = vrot.slane %v1611, 4
      %v1614 = vrot.slane %v1181, 5
      %v1615 = vsel %vm745, %v1613, %v1614
      %v1616 = vrot.slane %v1554, 5
      %v1617 = vrot.slane %v1616, 4
      %v1618 = vrot.slane %v1183, 5
      %v1619 = vsel %vm745, %v1617, %v1618
      %v1620 = vrot.slane %v1618, 4
      %v1621 = vrot.slane %v1184, 5
      %v1622 = vsel %vm745, %v1620, %v1621
      %v1623 = vrot.slane %v1555, 5
      %v1624 = vrot.slane %v1623, 4
      %v1625 = vrot.slane %v1186, 5
      %v1626 = vsel %vm745, %v1624, %v1625
      %v1627 = vrot.slane %v1625, 4
      %v1628 = vrot.slane %v1187, 5
      %v1629 = vsel %vm745, %v1627, %v1628
      %v1630 = vrot.slane %v1556, 5
      %v1631 = vrot.slane %v1630, 4
      %v1632 = vrot.slane %v1189, 5
      %v1633 = vsel %vm745, %v1631, %v1632
      %v1634 = vrot.slane %v1632, 4
      %v1635 = vrot.slane %v1190, 5
      %v1636 = vsel %vm745, %v1634, %v1635
      %s1637 = scalar_lea.vmem %s1, 20
      %v1638 = vld [vmem:[%s1637] sm:$0xf]
      %v1639 = vunpack.c.l.b16 %v1584
      %v1640 = vunpack.c.l.b16 %v1587
      %v1641 = vunpack.c.l.b16 %v1591
      %v1642 = vunpack.c.l.b16 %v1594
      %v1643 = vunpack.c.l.b16 %v1598
      %v1644 = vunpack.c.l.b16 %v1601
      %v1645 = vunpack.c.l.b16 %v1605
      %v1646 = vunpack.c.l.b16 %v1608
      %v1647 = vunpack.c.l.b16 %v1612
      %v1648 = vunpack.c.l.b16 %v1615
      %v1649 = vunpack.c.l.b16 %v1619
      %v1650 = vunpack.c.l.b16 %v1622
      %v1651 = vunpack.c.l.b16 %v1626
      %v1652 = vunpack.c.l.b16 %v1629
      %v1653 = vunpack.c.l.b16 %v1633
      %v1654 = vunpack.c.l.b16 %v1636
      %v1655 = vpack.c.b16 %v1640, %v1639
      %v1656 = vpack.c.b16 %v1642, %v1641
      %v1657 = vpack.c.b16 %v1644, %v1643
      %v1658 = vpack.c.b16 %v1646, %v1645
      %v1659 = vpack.c.b16 %v1648, %v1647
      %v1660 = vpack.c.b16 %v1650, %v1649
      %v1661 = vpack.c.b16 %v1652, %v1651
      %v1662 = vpack.c.b16 %v1654, %v1653
      %v1664 = vsel %vm429, %v1655, 0
      %v1667 = vsel %vm429, %v1656, 0
      %v1670 = vsel %vm429, %v1657, 0
      %v1673 = vsel %vm429, %v1658, 0
      %v1676 = vsel %vm429, %v1659, 0
      %v1679 = vsel %vm429, %v1660, 0
      %v1682 = vsel %vm429, %v1661, 0
      %v1685 = vsel %vm429, %v1662, 0
      %v1688 = vsel %vm454, %v1638, 0
      %1690 = vmatprep.subr.bf16.mxu0 0
      %1691 = vmatpush1.bf16.msra.mxu0 %v1688
      %1692 = vmatprep.subr.bf16.mxu0 0
      %1693 = vmatpush1.bf16.msra.mxu0 0
      %1694 = vmatprep.subr.bf16.mxu0 0
      %1695 = vmatpush1.bf16.msra.mxu0 0
      %1696 = vmatprep.subr.bf16.mxu0 0
      %1697 = vmatpush1.bf16.msra.mxu0 0
      %1698 = vmatprep.subr.bf16.mxu0 0
      %1699 = vmatpush1.bf16.msra.mxu0 0
      %1700 = vmatprep.subr.bf16.mxu0 0
      %1701 = vmatpush1.bf16.msra.mxu0 0
      %1702 = vmatprep.subr.bf16.mxu0 0
      %1703 = vmatpush1.bf16.msra.mxu0 0
      %1704 = vmatprep.subr.bf16.mxu0 0
      %1705 = vmatpush1.bf16.msra.mxu0 0
      %1706 = vmatprep.subr.bf16.mxu0 0
      %1707 = vmatpush1.bf16.msra.mxu0 0
      %1708 = vmatprep.subr.bf16.mxu0 0
      %1709 = vmatpush1.bf16.msra.mxu0 0
      %1710 = vmatprep.subr.bf16.mxu0 0
      %1711 = vmatpush1.bf16.msra.mxu0 0
      %1712 = vmatprep.subr.bf16.mxu0 0
      %1713 = vmatpush1.bf16.msra.mxu0 0
      %1714 = vmatprep.subr.bf16.mxu0 0
      %1715 = vmatpush1.bf16.msra.mxu0 0
      %1716 = vmatprep.subr.bf16.mxu0 0
      %1717 = vmatpush1.bf16.msra.mxu0 0
      %1718 = vmatprep.subr.bf16.mxu0 0
      %1719 = vmatpush1.bf16.msra.mxu0 0
      %1720 = vmatprep.subr.bf16.mxu0 0
      %1721 = vmatpush1.bf16.msra.mxu0 0
      %1722 = vmatprep.mubr.bf16.mxu0 0
      %1723 = vmatmul.mubr.bf16.gmra.mrb[0].mxu0 %v1664
      %v1724 = vpop.f32.mrb[0].mxu0
      %v1725 = vadd.f32 0.0, %v1724
      %v1726 = vpop.f32.mrb[0].mxu0
      %v1727 = vpop.f32.mrb[0].mxu0
      %v1728 = vadd.f32 0.0, %v1727
      %v1729 = vpop.f32.mrb[0].mxu0
      %1730 = vmatprep.mubr.bf16.mxu0 0
      %1731 = vmatmul.mubr.bf16.gmra.mrb[0].mxu0 %v1667
      %v1732 = vpop.f32.mrb[0].mxu0
      %v1733 = vadd.f32 0.0, %v1732
      %v1734 = vpop.f32.mrb[0].mxu0
      %v1735 = vpop.f32.mrb[0].mxu0
      %v1736 = vadd.f32 0.0, %v1735
      %v1737 = vpop.f32.mrb[0].mxu0
      %1738 = vmatprep.mubr.bf16.mxu0 0
      %1739 = vmatmul.mubr.bf16.gmra.mrb[0].mxu0 %v1670
      %v1740 = vpop.f32.mrb[0].mxu0
      %v1741 = vadd.f32 0.0, %v1740
      %v1742 = vpop.f32.mrb[0].mxu0
      %v1743 = vpop.f32.mrb[0].mxu0
      %v1744 = vadd.f32 0.0, %v1743
      %v1745 = vpop.f32.mrb[0].mxu0
      %1746 = vmatprep.mubr.bf16.mxu0 0
      %1747 = vmatmul.mubr.bf16.gmra.mrb[0].mxu0 %v1673
      %v1748 = vpop.f32.mrb[0].mxu0
      %v1749 = vadd.f32 0.0, %v1748
      %v1750 = vpop.f32.mrb[0].mxu0
      %v1751 = vpop.f32.mrb[0].mxu0
      %v1752 = vadd.f32 0.0, %v1751
      %v1753 = vpop.f32.mrb[0].mxu0
      %1754 = vmatprep.mubr.bf16.mxu0 0
      %1755 = vmatmul.mubr.bf16.gmra.mrb[0].mxu0 %v1676
      %v1756 = vpop.f32.mrb[0].mxu0
      %v1757 = vadd.f32 0.0, %v1756
      %v1758 = vpop.f32.mrb[0].mxu0
      %v1759 = vpop.f32.mrb[0].mxu0
      %v1760 = vadd.f32 0.0, %v1759
      %v1761 = vpop.f32.mrb[0].mxu0
      %1762 = vmatprep.mubr.bf16.mxu0 0
      %1763 = vmatmul.mubr.bf16.gmra.mrb[0].mxu0 %v1679
      %v1764 = vpop.f32.mrb[0].mxu0
      %v1765 = vadd.f32 0.0, %v1764
      %v1766 = vpop.f32.mrb[0].mxu0
      %v1767 = vpop.f32.mrb[0].mxu0
      %v1768 = vadd.f32 0.0, %v1767
      %v1769 = vpop.f32.mrb[0].mxu0
      %1770 = vmatprep.mubr.bf16.mxu0 0
      %1771 = vmatmul.mubr.bf16.gmra.mrb[0].mxu0 %v1682
      %v1772 = vpop.f32.mrb[0].mxu0
      %v1773 = vadd.f32 0.0, %v1772
      %v1774 = vpop.f32.mrb[0].mxu0
      %v1775 = vpop.f32.mrb[0].mxu0
      %v1776 = vadd.f32 0.0, %v1775
      %v1777 = vpop.f32.mrb[0].mxu0
      %1778 = vmatprep.mubr.bf16.mxu0 0
      %1779 = vmatmul.mubr.bf16.gmra.mrb[0].mxu0 %v1685
      %v1780 = vpop.f32.mrb[0].mxu0
      %v1781 = vadd.f32 0.0, %v1780
      %v1782 = vpop.f32.mrb[0].mxu0
      %v1783 = vpop.f32.mrb[0].mxu0
      %v1784 = vadd.f32 0.0, %v1783
      %v1785 = vpop.f32.mrb[0].mxu0
      %1786 = vdwg.mxu0
      %v1787 = vadd.f32 %v1533, %v1725
      %v1788 = vadd.f32 %v1534, %v1728
      %v1789 = vadd.f32 %v1535, %v1733
      %v1790 = vadd.f32 %v1536, %v1736
      %v1791 = vadd.f32 %v1537, %v1741
      %v1792 = vadd.f32 %v1538, %v1744
      %v1793 = vadd.f32 %v1539, %v1749
      %v1794 = vadd.f32 %v1540, %v1752
      %v1795 = vadd.f32 %v1541, %v1757
      %v1796 = vadd.f32 %v1542, %v1760
      %v1797 = vadd.f32 %v1543, %v1765
      %v1798 = vadd.f32 %v1544, %v1768
      %v1799 = vadd.f32 %v1545, %v1773
      %v1800 = vadd.f32 %v1546, %v1776
      %v1801 = vadd.f32 %v1547, %v1781
      %v1802 = vadd.f32 %v1548, %v1784
      %s1803 = scalar_lea.vmem %s172, 24
      %v1804 = vld [vmem:[%s1803] sm:$0xf]
      %v1805 = vld [vmem:[%s1803 + $0x4] sm:$0xf]
      %v1806 = vld [vmem:[%s1803 + $0xc] sm:$0xf]
      %v1807 = vld [vmem:[%s1803 + $0x10] sm:$0xf]
      %v1808 = vld [vmem:[%s1803 + $0x18] sm:$0xf]
      %v1809 = vld [vmem:[%s1803 + $0x1c] sm:$0xf]
      %v1810 = vld [vmem:[%s1803 + $0x24] sm:$0xf]
      %v1811 = vld [vmem:[%s1803 + $0x28] sm:$0xf]
      %v1812 = vld [vmem:[%s1803 + $0x30] sm:$0xf]
      %v1813 = vld [vmem:[%s1803 + $0x34] sm:$0xf]
      %v1814 = vld [vmem:[%s1803 + $0x3c] sm:$0xf]
      %v1815 = vld [vmem:[%s1803 + $0x40] sm:$0xf]
      %v1816 = vld [vmem:[%s1803 + $0x48] sm:$0xf]
      %v1817 = vld [vmem:[%s1803 + $0x4c] sm:$0xf]
      %v1818 = vld [vmem:[%s1803 + $0x54] sm:$0xf]
      %v1819 = vld [vmem:[%s1803 + $0x58] sm:$0xf]
      %s1820 = scalar_lea.vmem %s1, 24
      %v1821 = vld [vmem:[%s1820] sm:$0xf]
      %v1838 = vunpack.c.l.b16 %v1804
      %v1839 = vunpack.c.l.b16 %v1805
      %v1840 = vunpack.c.l.b16 %v1806
      %v1841 = vunpack.c.l.b16 %v1807
      %v1842 = vunpack.c.l.b16 %v1808
      %v1843 = vunpack.c.l.b16 %v1809
      %v1844 = vunpack.c.l.b16 %v1810
      %v1845 = vunpack.c.l.b16 %v1811
      %v1846 = vunpack.c.l.b16 %v1812
      %v1847 = vunpack.c.l.b16 %v1813
      %v1848 = vunpack.c.l.b16 %v1814
      %v1849 = vunpack.c.l.b16 %v1815
      %v1850 = vunpack.c.l.b16 %v1816
      %v1851 = vunpack.c.l.b16 %v1817
      %v1852 = vunpack.c.l.b16 %v1818
      %v1853 = vunpack.c.l.b16 %v1819
      %v1854 = vpack.c.b16 %v1839, %v1838
      %v1855 = vpack.c.b16 %v1841, %v1840
      %v1856 = vpack.c.b16 %v1843, %v1842
      %v1857 = vpack.c.b16 %v1845, %v1844
      %v1858 = vpack.c.b16 %v1847, %v1846
      %v1859 = vpack.c.b16 %v1849, %v1848
      %v1860 = vpack.c.b16 %v1851, %v1850
      %v1861 = vpack.c.b16 %v1853, %v1852
      %v1863 = vsel %vm429, %v1854, 0
      %v1866 = vsel %vm429, %v1855, 0
      %v1869 = vsel %vm429, %v1856, 0
      %v1872 = vsel %vm429, %v1857, 0
      %v1875 = vsel %vm429, %v1858, 0
      %v1878 = vsel %vm429, %v1859, 0
      %v1881 = vsel %vm429, %v1860, 0
      %v1884 = vsel %vm429, %v1861, 0
      %v1887 = vsel %vm454, %v1821, 0
      %1889 = vmatprep.subr.bf16.mxu0 0
      %1890 = vmatpush1.bf16.msra.mxu0 %v1887
      %1891 = vmatprep.subr.bf16.mxu0 0
      %1892 = vmatpush1.bf16.msra.mxu0 0
      %1893 = vmatprep.subr.bf16.mxu0 0
      %1894 = vmatpush1.bf16.msra.mxu0 0
      %1895 = vmatprep.subr.bf16.mxu0 0
      %1896 = vmatpush1.bf16.msra.mxu0 0
      %1897 = vmatprep.subr.bf16.mxu0 0
      %1898 = vmatpush1.bf16.msra.mxu0 0
      %1899 = vmatprep.subr.bf16.mxu0 0
      %1900 = vmatpush1.bf16.msra.mxu0 0
      %1901 = vmatprep.subr.bf16.mxu0 0
      %1902 = vmatpush1.bf16.msra.mxu0 0
      %1903 = vmatprep.subr.bf16.mxu0 0
      %1904 = vmatpush1.bf16.msra.mxu0 0
      %1905 = vmatprep.subr.bf16.mxu0 0
      %1906 = vmatpush1.bf16.msra.mxu0 0
      %1907 = vmatprep.subr.bf16.mxu0 0
      %1908 = vmatpush1.bf16.msra.mxu0 0
      %1909 = vmatprep.subr.bf16.mxu0 0
      %1910 = vmatpush1.bf16.msra.mxu0 0
      %1911 = vmatprep.subr.bf16.mxu0 0
      %1912 = vmatpush1.bf16.msra.mxu0 0
      %1913 = vmatprep.subr.bf16.mxu0 0
      %1914 = vmatpush1.bf16.msra.mxu0 0
      %1915 = vmatprep.subr.bf16.mxu0 0
      %1916 = vmatpush1.bf16.msra.mxu0 0
      %1917 = vmatprep.subr.bf16.mxu0 0
      %1918 = vmatpush1.bf16.msra.mxu0 0
      %1919 = vmatprep.subr.bf16.mxu0 0
      %1920 = vmatpush1.bf16.msra.mxu0 0
      %1921 = vmatprep.mubr.bf16.mxu0 0
      %1922 = vmatmul.mubr.bf16.gmra.mrb[0].mxu0 %v1863
      %v1923 = vpop.f32.mrb[0].mxu0
      %v1924 = vadd.f32 0.0, %v1923
      %v1925 = vpop.f32.mrb[0].mxu0
      %v1926 = vpop.f32.mrb[0].mxu0
      %v1927 = vadd.f32 0.0, %v1926
      %v1928 = vpop.f32.mrb[0].mxu0
      %1929 = vmatprep.mubr.bf16.mxu0 0
      %1930 = vmatmul.mubr.bf16.gmra.mrb[0].mxu0 %v1866
      %v1931 = vpop.f32.mrb[0].mxu0
      %v1932 = vadd.f32 0.0, %v1931
      %v1933 = vpop.f32.mrb[0].mxu0
      %v1934 = vpop.f32.mrb[0].mxu0
      %v1935 = vadd.f32 0.0, %v1934
      %v1936 = vpop.f32.mrb[0].mxu0
      %1937 = vmatprep.mubr.bf16.mxu0 0
      %1938 = vmatmul.mubr.bf16.gmra.mrb[0].mxu0 %v1869
      %v1939 = vpop.f32.mrb[0].mxu0
      %v1940 = vadd.f32 0.0, %v1939
      %v1941 = vpop.f32.mrb[0].mxu0
      %v1942 = vpop.f32.mrb[0].mxu0
      %v1943 = vadd.f32 0.0, %v1942
      %v1944 = vpop.f32.mrb[0].mxu0
      %1945 = vmatprep.mubr.bf16.mxu0 0
      %1946 = vmatmul.mubr.bf16.gmra.mrb[0].mxu0 %v1872
      %v1947 = vpop.f32.mrb[0].mxu0
      %v1948 = vadd.f32 0.0, %v1947
      %v1949 = vpop.f32.mrb[0].mxu0
      %v1950 = vpop.f32.mrb[0].mxu0
      %v1951 = vadd.f32 0.0, %v1950
      %v1952 = vpop.f32.mrb[0].mxu0
      %1953 = vmatprep.mubr.bf16.mxu0 0
      %1954 = vmatmul.mubr.bf16.gmra.mrb[0].mxu0 %v1875
      %v1955 = vpop.f32.mrb[0].mxu0
      %v1956 = vadd.f32 0.0, %v1955
      %v1957 = vpop.f32.mrb[0].mxu0
      %v1958 = vpop.f32.mrb[0].mxu0
      %v1959 = vadd.f32 0.0, %v1958
      %v1960 = vpop.f32.mrb[0].mxu0
      %1961 = vmatprep.mubr.bf16.mxu0 0
      %1962 = vmatmul.mubr.bf16.gmra.mrb[0].mxu0 %v1878
      %v1963 = vpop.f32.mrb[0].mxu0
      %v1964 = vadd.f32 0.0, %v1963
      %v1965 = vpop.f32.mrb[0].mxu0
      %v1966 = vpop.f32.mrb[0].mxu0
      %v1967 = vadd.f32 0.0, %v1966
      %v1968 = vpop.f32.mrb[0].mxu0
      %1969 = vmatprep.mubr.bf16.mxu0 0
      %1970 = vmatmul.mubr.bf16.gmra.mrb[0].mxu0 %v1881
      %v1971 = vpop.f32.mrb[0].mxu0
      %v1972 = vadd.f32 0.0, %v1971
      %v1973 = vpop.f32.mrb[0].mxu0
      %v1974 = vpop.f32.mrb[0].mxu0
      %v1975 = vadd.f32 0.0, %v1974
      %v1976 = vpop.f32.mrb[0].mxu0
      %1977 = vmatprep.mubr.bf16.mxu0 0
      %1978 = vmatmul.mubr.bf16.gmra.mrb[0].mxu0 %v1884
      %v1979 = vpop.f32.mrb[0].mxu0
      %v1980 = vadd.f32 0.0, %v1979
      %v1981 = vpop.f32.mrb[0].mxu0
      %v1982 = vpop.f32.mrb[0].mxu0
      %v1983 = vadd.f32 0.0, %v1982
      %v1984 = vpop.f32.mrb[0].mxu0
      %1985 = vdwg.mxu0
      %v1986 = vadd.f32 %v1787, %v1924
      %v1987 = vadd.f32 %v1788, %v1927
      %v1988 = vadd.f32 %v1789, %v1932
      %v1989 = vadd.f32 %v1790, %v1935
      %v1990 = vadd.f32 %v1791, %v1940
      %v1991 = vadd.f32 %v1792, %v1943
      %v1992 = vadd.f32 %v1793, %v1948
      %v1993 = vadd.f32 %v1794, %v1951
      %v1994 = vadd.f32 %v1795, %v1956
      %v1995 = vadd.f32 %v1796, %v1959
      %v1996 = vadd.f32 %v1797, %v1964
      %v1997 = vadd.f32 %v1798, %v1967
      %v1998 = vadd.f32 %v1799, %v1972
      %v1999 = vadd.f32 %v1800, %v1975
      %v2000 = vadd.f32 %v1801, %v1980
      %v2001 = vadd.f32 %v1802, %v1983
      %v2002 = vld [vmem:[%s1803] sm:$0xf]
      %v2003 = vld [vmem:[%s1803 + $0x4] sm:$0xf]
      %v2004 = vld [vmem:[%s1803 + $0x8] sm:$0x1]
      %v2005 = vld [vmem:[%s1803 + $0xc] sm:$0xf]
      %v2006 = vld [vmem:[%s1803 + $0x10] sm:$0xf]
      %v2007 = vld [vmem:[%s1803 + $0x14] sm:$0x1]
      %v2008 = vld [vmem:[%s1803 + $0x18] sm:$0xf]
      %v2009 = vld [vmem:[%s1803 + $0x1c] sm:$0xf]
      %v2010 = vld [vmem:[%s1803 + $0x20] sm:$0x1]
      %v2011 = vld [vmem:[%s1803 + $0x24] sm:$0xf]
      %v2012 = vld [vmem:[%s1803 + $0x28] sm:$0xf]
      %v2013 = vld [vmem:[%s1803 + $0x2c] sm:$0x1]
      %v2014 = vld [vmem:[%s1803 + $0x30] sm:$0xf]
      %v2015 = vld [vmem:[%s1803 + $0x34] sm:$0xf]
      %v2016 = vld [vmem:[%s1803 + $0x38] sm:$0x1]
      %v2017 = vld [vmem:[%s1803 + $0x3c] sm:$0xf]
      %v2018 = vld [vmem:[%s1803 + $0x40] sm:$0xf]
      %v2019 = vld [vmem:[%s1803 + $0x44] sm:$0x1]
      %v2020 = vld [vmem:[%s1803 + $0x48] sm:$0xf]
      %v2021 = vld [vmem:[%s1803 + $0x4c] sm:$0xf]
      %v2022 = vld [vmem:[%s1803 + $0x50] sm:$0x1]
      %v2023 = vld [vmem:[%s1803 + $0x54] sm:$0xf]
      %v2024 = vld [vmem:[%s1803 + $0x58] sm:$0xf]
      %v2025 = vld [vmem:[%s1803 + $0x5c] sm:$0x1]
      %v2027 = vshrl.u32 %v2002, 16
      %v2029 = vrot.slane %v2027, 4
      %v2030 = vshll.u32 %v2002, 16
      %v2032 = vrot.slane %v2030, 5
      %v2033 = vor.u32 %v2029, %v2032
      %v2034 = vrot.slane %v2033, 4
      %v2036 = vshll.u32 %v2003, 16
      %v2038 = vrot.slane %v2036, 5
      %v2039 = vsel %vm210, %v2034, %v2038
      %v2040 = vshrl.u32 %v2003, 16
      %v2042 = vrot.slane %v2040, 4
      %v2043 = vor.u32 %v2042, %v2038
      %v2044 = vrot.slane %v2043, 4
      %v2046 = vshll.u32 %v2004, 16
      %v2048 = vrot.slane %v2046, 5
      %v2049 = vsel %vm210, %v2044, %v2048
      %v2051 = vshrl.u32 %v2005, 16
      %v2053 = vrot.slane %v2051, 4
      %v2054 = vshll.u32 %v2005, 16
      %v2056 = vrot.slane %v2054, 5
      %v2057 = vor.u32 %v2053, %v2056
      %v2058 = vrot.slane %v2057, 4
      %v2060 = vshll.u32 %v2006, 16
      %v2062 = vrot.slane %v2060, 5
      %v2063 = vsel %vm210, %v2058, %v2062
      %v2064 = vshrl.u32 %v2006, 16
      %v2066 = vrot.slane %v2064, 4
      %v2067 = vor.u32 %v2066, %v2062
      %v2068 = vrot.slane %v2067, 4
      %v2070 = vshll.u32 %v2007, 16
      %v2072 = vrot.slane %v2070, 5
      %v2073 = vsel %vm210, %v2068, %v2072
      %v2075 = vshrl.u32 %v2008, 16
      %v2077 = vrot.slane %v2075, 4
      %v2078 = vshll.u32 %v2008, 16
      %v2080 = vrot.slane %v2078, 5
      %v2081 = vor.u32 %v2077, %v2080
      %v2082 = vrot.slane %v2081, 4
      %v2084 = vshll.u32 %v2009, 16
      %v2086 = vrot.slane %v2084, 5
      %v2087 = vsel %vm210, %v2082, %v2086
      %v2088 = vshrl.u32 %v2009, 16
      %v2090 = vrot.slane %v2088, 4
      %v2091 = vor.u32 %v2090, %v2086
      %v2092 = vrot.slane %v2091, 4
      %v2094 = vshll.u32 %v2010, 16
      %v2096 = vrot.slane %v2094, 5
      %v2097 = vsel %vm210, %v2092, %v2096
      %v2099 = vshrl.u32 %v2011, 16
      %v2101 = vrot.slane %v2099, 4
      %v2102 = vshll.u32 %v2011, 16
      %v2104 = vrot.slane %v2102, 5
      %v2105 = vor.u32 %v2101, %v2104
      %v2106 = vrot.slane %v2105, 4
      %v2108 = vshll.u32 %v2012, 16
      %v2110 = vrot.slane %v2108, 5
      %v2111 = vsel %vm210, %v2106, %v2110
      %v2112 = vshrl.u32 %v2012, 16
      %v2114 = vrot.slane %v2112, 4
      %v2115 = vor.u32 %v2114, %v2110
      %v2116 = vrot.slane %v2115, 4
      %v2118 = vshll.u32 %v2013, 16
      %v2120 = vrot.slane %v2118, 5
      %v2121 = vsel %vm210, %v2116, %v2120
      %v2123 = vshrl.u32 %v2014, 16
      %v2125 = vrot.slane %v2123, 4
      %v2126 = vshll.u32 %v2014, 16
      %v2128 = vrot.slane %v2126, 5
      %v2129 = vor.u32 %v2125, %v2128
      %v2130 = vrot.slane %v2129, 4
      %v2132 = vshll.u32 %v2015, 16
      %v2134 = vrot.slane %v2132, 5
      %v2135 = vsel %vm210, %v2130, %v2134
      %v2136 = vshrl.u32 %v2015, 16
      %v2138 = vrot.slane %v2136, 4
      %v2139 = vor.u32 %v2138, %v2134
      %v2140 = vrot.slane %v2139, 4
      %v2142 = vshll.u32 %v2016, 16
      %v2144 = vrot.slane %v2142, 5
      %v2145 = vsel %vm210, %v2140, %v2144
      %v2147 = vshrl.u32 %v2017, 16
      %v2149 = vrot.slane %v2147, 4
      %v2150 = vshll.u32 %v2017, 16
      %v2152 = vrot.slane %v2150, 5
      %v2153 = vor.u32 %v2149, %v2152
      %v2154 = vrot.slane %v2153, 4
      %v2156 = vshll.u32 %v2018, 16
      %v2158 = vrot.slane %v2156, 5
      %v2159 = vsel %vm210, %v2154, %v2158
      %v2160 = vshrl.u32 %v2018, 16
      %v2162 = vrot.slane %v2160, 4
      %v2163 = vor.u32 %v2162, %v2158
      %v2164 = vrot.slane %v2163, 4
      %v2166 = vshll.u32 %v2019, 16
      %v2168 = vrot.slane %v2166, 5
      %v2169 = vsel %vm210, %v2164, %v2168
      %v2171 = vshrl.u32 %v2020, 16
      %v2173 = vrot.slane %v2171, 4
      %v2174 = vshll.u32 %v2020, 16
      %v2176 = vrot.slane %v2174, 5
      %v2177 = vor.u32 %v2173, %v2176
      %v2178 = vrot.slane %v2177, 4
      %v2180 = vshll.u32 %v2021, 16
      %v2182 = vrot.slane %v2180, 5
      %v2183 = vsel %vm210, %v2178, %v2182
      %v2184 = vshrl.u32 %v2021, 16
      %v2186 = vrot.slane %v2184, 4
      %v2187 = vor.u32 %v2186, %v2182
      %v2188 = vrot.slane %v2187, 4
      %v2190 = vshll.u32 %v2022, 16
      %v2192 = vrot.slane %v2190, 5
      %v2193 = vsel %vm210, %v2188, %v2192
      %v2195 = vshrl.u32 %v2023, 16
      %v2197 = vrot.slane %v2195, 4
      %v2198 = vshll.u32 %v2023, 16
      %v2200 = vrot.slane %v2198, 5
      %v2201 = vor.u32 %v2197, %v2200
      %v2202 = vrot.slane %v2201, 4
      %v2204 = vshll.u32 %v2024, 16
      %v2206 = vrot.slane %v2204, 5
      %v2207 = vsel %vm210, %v2202, %v2206
      %v2208 = vshrl.u32 %v2024, 16
      %v2210 = vrot.slane %v2208, 4
      %v2211 = vor.u32 %v2210, %v2206
      %v2212 = vrot.slane %v2211, 4
      %v2214 = vshll.u32 %v2025, 16
      %v2216 = vrot.slane %v2214, 5
      %v2217 = vsel %vm210, %v2212, %v2216
      %s2218 = scalar_lea.vmem %s1, 28
      %v2219 = vld [vmem:[%s2218] sm:$0xf]
      %v2220 = vunpack.c.l.b16 %v2039
      %v2221 = vunpack.c.l.b16 %v2049
      %v2222 = vunpack.c.l.b16 %v2063
      %v2223 = vunpack.c.l.b16 %v2073
      %v2224 = vunpack.c.l.b16 %v2087
      %v2225 = vunpack.c.l.b16 %v2097
      %v2226 = vunpack.c.l.b16 %v2111
      %v2227 = vunpack.c.l.b16 %v2121
      %v2228 = vunpack.c.l.b16 %v2135
      %v2229 = vunpack.c.l.b16 %v2145
      %v2230 = vunpack.c.l.b16 %v2159
      %v2231 = vunpack.c.l.b16 %v2169
      %v2232 = vunpack.c.l.b16 %v2183
      %v2233 = vunpack.c.l.b16 %v2193
      %v2234 = vunpack.c.l.b16 %v2207
      %v2235 = vunpack.c.l.b16 %v2217
      %v2236 = vpack.c.b16 %v2221, %v2220
      %v2237 = vpack.c.b16 %v2223, %v2222
      %v2238 = vpack.c.b16 %v2225, %v2224
      %v2239 = vpack.c.b16 %v2227, %v2226
      %v2240 = vpack.c.b16 %v2229, %v2228
      %v2241 = vpack.c.b16 %v2231, %v2230
      %v2242 = vpack.c.b16 %v2233, %v2232
      %v2243 = vpack.c.b16 %v2235, %v2234
      %v2245 = vsel %vm429, %v2236, 0
      %v2248 = vsel %vm429, %v2237, 0
      %v2251 = vsel %vm429, %v2238, 0
      %v2254 = vsel %vm429, %v2239, 0
      %v2257 = vsel %vm429, %v2240, 0
      %v2260 = vsel %vm429, %v2241, 0
      %v2263 = vsel %vm429, %v2242, 0
      %v2266 = vsel %vm429, %v2243, 0
      %v2269 = vsel %vm454, %v2219, 0
      %2271 = vmatprep.subr.bf16.mxu0 0
      %2272 = vmatpush1.bf16.msra.mxu0 %v2269
      %2273 = vmatprep.subr.bf16.mxu0 0
      %2274 = vmatpush1.bf16.msra.mxu0 0
      %2275 = vmatprep.subr.bf16.mxu0 0
      %2276 = vmatpush1.bf16.msra.mxu0 0
      %2277 = vmatprep.subr.bf16.mxu0 0
      %2278 = vmatpush1.bf16.msra.mxu0 0
      %2279 = vmatprep.subr.bf16.mxu0 0
      %2280 = vmatpush1.bf16.msra.mxu0 0
      %2281 = vmatprep.subr.bf16.mxu0 0
      %2282 = vmatpush1.bf16.msra.mxu0 0
      %2283 = vmatprep.subr.bf16.mxu0 0
      %2284 = vmatpush1.bf16.msra.mxu0 0
      %2285 = vmatprep.subr.bf16.mxu0 0
      %2286 = vmatpush1.bf16.msra.mxu0 0
      %2287 = vmatprep.subr.bf16.mxu0 0
      %2288 = vmatpush1.bf16.msra.mxu0 0
      %2289 = vmatprep.subr.bf16.mxu0 0
      %2290 = vmatpush1.bf16.msra.mxu0 0
      %2291 = vmatprep.subr.bf16.mxu0 0
      %2292 = vmatpush1.bf16.msra.mxu0 0
      %2293 = vmatprep.subr.bf16.mxu0 0
      %2294 = vmatpush1.bf16.msra.mxu0 0
      %2295 = vmatprep.subr.bf16.mxu0 0
      %2296 = vmatpush1.bf16.msra.mxu0 0
      %2297 = vmatprep.subr.bf16.mxu0 0
      %2298 = vmatpush1.bf16.msra.mxu0 0
      %2299 = vmatprep.subr.bf16.mxu0 0
      %2300 = vmatpush1.bf16.msra.mxu0 0
      %2301 = vmatprep.subr.bf16.mxu0 0
      %2302 = vmatpush1.bf16.msra.mxu0 0
      %2303 = vmatprep.mubr.bf16.mxu0 0
      %2304 = vmatmul.mubr.bf16.gmra.mrb[0].mxu0 %v2245
      %v2305 = vpop.f32.mrb[0].mxu0
      %v2306 = vadd.f32 0.0, %v2305
      %v2307 = vpop.f32.mrb[0].mxu0
      %v2308 = vpop.f32.mrb[0].mxu0
      %v2309 = vadd.f32 0.0, %v2308
      %v2310 = vpop.f32.mrb[0].mxu0
      %2311 = vmatprep.mubr.bf16.mxu0 0
      %2312 = vmatmul.mubr.bf16.gmra.mrb[0].mxu0 %v2248
      %v2313 = vpop.f32.mrb[0].mxu0
      %v2314 = vadd.f32 0.0, %v2313
      %v2315 = vpop.f32.mrb[0].mxu0
      %v2316 = vpop.f32.mrb[0].mxu0
      %v2317 = vadd.f32 0.0, %v2316
      %v2318 = vpop.f32.mrb[0].mxu0
      %2319 = vmatprep.mubr.bf16.mxu0 0
      %2320 = vmatmul.mubr.bf16.gmra.mrb[0].mxu0 %v2251
      %v2321 = vpop.f32.mrb[0].mxu0
      %v2322 = vadd.f32 0.0, %v2321
      %v2323 = vpop.f32.mrb[0].mxu0
      %v2324 = vpop.f32.mrb[0].mxu0
      %v2325 = vadd.f32 0.0, %v2324
      %v2326 = vpop.f32.mrb[0].mxu0
      %2327 = vmatprep.mubr.bf16.mxu0 0
      %2328 = vmatmul.mubr.bf16.gmra.mrb[0].mxu0 %v2254
      %v2329 = vpop.f32.mrb[0].mxu0
      %v2330 = vadd.f32 0.0, %v2329
      %v2331 = vpop.f32.mrb[0].mxu0
      %v2332 = vpop.f32.mrb[0].mxu0
      %v2333 = vadd.f32 0.0, %v2332
      %v2334 = vpop.f32.mrb[0].mxu0
      %2335 = vmatprep.mubr.bf16.mxu0 0
      %2336 = vmatmul.mubr.bf16.gmra.mrb[0].mxu0 %v2257
      %v2337 = vpop.f32.mrb[0].mxu0
      %v2338 = vadd.f32 0.0, %v2337
      %v2339 = vpop.f32.mrb[0].mxu0
      %v2340 = vpop.f32.mrb[0].mxu0
      %v2341 = vadd.f32 0.0, %v2340
      %v2342 = vpop.f32.mrb[0].mxu0
      %2343 = vmatprep.mubr.bf16.mxu0 0
      %2344 = vmatmul.mubr.bf16.gmra.mrb[0].mxu0 %v2260
      %v2345 = vpop.f32.mrb[0].mxu0
      %v2346 = vadd.f32 0.0, %v2345
      %v2347 = vpop.f32.mrb[0].mxu0
      %v2348 = vpop.f32.mrb[0].mxu0
      %v2349 = vadd.f32 0.0, %v2348
      %v2350 = vpop.f32.mrb[0].mxu0
      %2351 = vmatprep.mubr.bf16.mxu0 0
      %2352 = vmatmul.mubr.bf16.gmra.mrb[0].mxu0 %v2263
      %v2353 = vpop.f32.mrb[0].mxu0
      %v2354 = vadd.f32 0.0, %v2353
      %v2355 = vpop.f32.mrb[0].mxu0
      %v2356 = vpop.f32.mrb[0].mxu0
      %v2357 = vadd.f32 0.0, %v2356
      %v2358 = vpop.f32.mrb[0].mxu0
      %2359 = vmatprep.mubr.bf16.mxu0 0
      %2360 = vmatmul.mubr.bf16.gmra.mrb[0].mxu0 %v2266
      %v2361 = vpop.f32.mrb[0].mxu0
      %v2362 = vadd.f32 0.0, %v2361
      %v2363 = vpop.f32.mrb[0].mxu0
      %v2364 = vpop.f32.mrb[0].mxu0
      %v2365 = vadd.f32 0.0, %v2364
      %v2366 = vpop.f32.mrb[0].mxu0
      %2367 = vdwg.mxu0
      %v2368 = vadd.f32 %v1986, %v2306
      %v2369 = vadd.f32 %v1987, %v2309
      %v2370 = vadd.f32 %v1988, %v2314
      %v2371 = vadd.f32 %v1989, %v2317
      %v2372 = vadd.f32 %v1990, %v2322
      %v2373 = vadd.f32 %v1991, %v2325
      %v2374 = vadd.f32 %v1992, %v2330
      %v2375 = vadd.f32 %v1993, %v2333
      %v2376 = vadd.f32 %v1994, %v2338
      %v2377 = vadd.f32 %v1995, %v2341
      %v2378 = vadd.f32 %v1996, %v2346
      %v2379 = vadd.f32 %v1997, %v2349
      %v2380 = vadd.f32 %v1998, %v2354
      %v2381 = vadd.f32 %v1999, %v2357
      %v2382 = vadd.f32 %v2000, %v2362
      %v2383 = vadd.f32 %v2001, %v2365
      %v2384 = vld [vmem:[%s1803] sm:$0xe]
      %v2385 = vld [vmem:[%s1803 + $0xc] sm:$0xe]
      %v2386 = vld [vmem:[%s1803 + $0x18] sm:$0xe]
      %v2387 = vld [vmem:[%s1803 + $0x24] sm:$0xe]
      %v2388 = vld [vmem:[%s1803 + $0x30] sm:$0xe]
      %v2389 = vld [vmem:[%s1803 + $0x3c] sm:$0xe]
      %v2390 = vld [vmem:[%s1803 + $0x48] sm:$0xe]
      %v2391 = vld [vmem:[%s1803 + $0x54] sm:$0xe]
      %v2416 = vrot.slane %v2384, 5
      %v2417 = vrot.slane %v2416, 4
      %v2418 = vrot.slane %v2003, 5
      %v2419 = vsel %vm745, %v2417, %v2418
      %v2420 = vrot.slane %v2418, 4
      %v2421 = vrot.slane %v2004, 5
      %v2422 = vsel %vm745, %v2420, %v2421
      %v2423 = vrot.slane %v2385, 5
      %v2424 = vrot.slane %v2423, 4
      %v2425 = vrot.slane %v2006, 5
      %v2426 = vsel %vm745, %v2424, %v2425
      %v2427 = vrot.slane %v2425, 4
      %v2428 = vrot.slane %v2007, 5
      %v2429 = vsel %vm745, %v2427, %v2428
      %v2430 = vrot.slane %v2386, 5
      %v2431 = vrot.slane %v2430, 4
      %v2432 = vrot.slane %v2009, 5
      %v2433 = vsel %vm745, %v2431, %v2432
      %v2434 = vrot.slane %v2432, 4
      %v2435 = vrot.slane %v2010, 5
      %v2436 = vsel %vm745, %v2434, %v2435
      %v2437 = vrot.slane %v2387, 5
      %v2438 = vrot.slane %v2437, 4
      %v2439 = vrot.slane %v2012, 5
      %v2440 = vsel %vm745, %v2438, %v2439
      %v2441 = vrot.slane %v2439, 4
      %v2442 = vrot.slane %v2013, 5
      %v2443 = vsel %vm745, %v2441, %v2442
      %v2444 = vrot.slane %v2388, 5
      %v2445 = vrot.slane %v2444, 4
      %v2446 = vrot.slane %v2015, 5
      %v2447 = vsel %vm745, %v2445, %v2446
      %v2448 = vrot.slane %v2446, 4
      %v2449 = vrot.slane %v2016, 5
      %v2450 = vsel %vm745, %v2448, %v2449
      %v2451 = vrot.slane %v2389, 5
      %v2452 = vrot.slane %v2451, 4
      %v2453 = vrot.slane %v2018, 5
      %v2454 = vsel %vm745, %v2452, %v2453
      %v2455 = vrot.slane %v2453, 4
      %v2456 = vrot.slane %v2019, 5
      %v2457 = vsel %vm745, %v2455, %v2456
      %v2458 = vrot.slane %v2390, 5
      %v2459 = vrot.slane %v2458, 4
      %v2460 = vrot.slane %v2021, 5
      %v2461 = vsel %vm745, %v2459, %v2460
      %v2462 = vrot.slane %v2460, 4
      %v2463 = vrot.slane %v2022, 5
      %v2464 = vsel %vm745, %v2462, %v2463
      %v2465 = vrot.slane %v2391, 5
      %v2466 = vrot.slane %v2465, 4
      %v2467 = vrot.slane %v2024, 5
      %v2468 = vsel %vm745, %v2466, %v2467
      %v2469 = vrot.slane %v2467, 4
      %v2470 = vrot.slane %v2025, 5
      %v2471 = vsel %vm745, %v2469, %v2470
      %s2472 = scalar_lea.vmem %s1, 32
      %v2473 = vld [vmem:[%s2472] sm:$0xf]
      %v2474 = vunpack.c.l.b16 %v2419
      %v2475 = vunpack.c.l.b16 %v2422
      %v2476 = vunpack.c.l.b16 %v2426
      %v2477 = vunpack.c.l.b16 %v2429
      %v2478 = vunpack.c.l.b16 %v2433
      %v2479 = vunpack.c.l.b16 %v2436
      %v2480 = vunpack.c.l.b16 %v2440
      %v2481 = vunpack.c.l.b16 %v2443
      %v2482 = vunpack.c.l.b16 %v2447
      %v2483 = vunpack.c.l.b16 %v2450
      %v2484 = vunpack.c.l.b16 %v2454
      %v2485 = vunpack.c.l.b16 %v2457
      %v2486 = vunpack.c.l.b16 %v2461
      %v2487 = vunpack.c.l.b16 %v2464
      %v2488 = vunpack.c.l.b16 %v2468
      %v2489 = vunpack.c.l.b16 %v2471
      %v2490 = vpack.c.b16 %v2475, %v2474
      %v2491 = vpack.c.b16 %v2477, %v2476
      %v2492 = vpack.c.b16 %v2479, %v2478
      %v2493 = vpack.c.b16 %v2481, %v2480
      %v2494 = vpack.c.b16 %v2483, %v2482
      %v2495 = vpack.c.b16 %v2485, %v2484
      %v2496 = vpack.c.b16 %v2487, %v2486
      %v2497 = vpack.c.b16 %v2489, %v2488
      %v2499 = vsel %vm429, %v2490, 0
      %v2502 = vsel %vm429, %v2491, 0
      %v2505 = vsel %vm429, %v2492, 0
      %v2508 = vsel %vm429, %v2493, 0
      %v2511 = vsel %vm429, %v2494, 0
      %v2514 = vsel %vm429, %v2495, 0
      %v2517 = vsel %vm429, %v2496, 0
      %v2520 = vsel %vm429, %v2497, 0
      %v2523 = vsel %vm454, %v2473, 0
      %2525 = vmatprep.subr.bf16.mxu0 0
      %2526 = vmatpush1.bf16.msra.mxu0 %v2523
      %2527 = vmatprep.subr.bf16.mxu0 0
      %2528 = vmatpush1.bf16.msra.mxu0 0
      %2529 = vmatprep.subr.bf16.mxu0 0
      %2530 = vmatpush1.bf16.msra.mxu0 0
      %2531 = vmatprep.subr.bf16.mxu0 0
      %2532 = vmatpush1.bf16.msra.mxu0 0
      %2533 = vmatprep.subr.bf16.mxu0 0
      %2534 = vmatpush1.bf16.msra.mxu0 0
      %2535 = vmatprep.subr.bf16.mxu0 0
      %2536 = vmatpush1.bf16.msra.mxu0 0
      %2537 = vmatprep.subr.bf16.mxu0 0
      %2538 = vmatpush1.bf16.msra.mxu0 0
      %2539 = vmatprep.subr.bf16.mxu0 0
      %2540 = vmatpush1.bf16.msra.mxu0 0
      %2541 = vmatprep.subr.bf16.mxu0 0
      %2542 = vmatpush1.bf16.msra.mxu0 0
      %2543 = vmatprep.subr.bf16.mxu0 0
      %2544 = vmatpush1.bf16.msra.mxu0 0
      %2545 = vmatprep.subr.bf16.mxu0 0
      %2546 = vmatpush1.bf16.msra.mxu0 0
      %2547 = vmatprep.subr.bf16.mxu0 0
      %2548 = vmatpush1.bf16.msra.mxu0 0
      %2549 = vmatprep.subr.bf16.mxu0 0
      %2550 = vmatpush1.bf16.msra.mxu0 0
      %2551 = vmatprep.subr.bf16.mxu0 0
      %2552 = vmatpush1.bf16.msra.mxu0 0
      %2553 = vmatprep.subr.bf16.mxu0 0
      %2554 = vmatpush1.bf16.msra.mxu0 0
      %2555 = vmatprep.subr.bf16.mxu0 0
      %2556 = vmatpush1.bf16.msra.mxu0 0
      %2557 = vmatprep.mubr.bf16.mxu0 0
      %2558 = vmatmul.mubr.bf16.gmra.mrb[0].mxu0 %v2499
      %v2559 = vpop.f32.mrb[0].mxu0
      %v2560 = vadd.f32 0.0, %v2559
      %v2561 = vpop.f32.mrb[0].mxu0
      %v2562 = vpop.f32.mrb[0].mxu0
      %v2563 = vadd.f32 0.0, %v2562
      %v2564 = vpop.f32.mrb[0].mxu0
      %2565 = vmatprep.mubr.bf16.mxu0 0
      %2566 = vmatmul.mubr.bf16.gmra.mrb[0].mxu0 %v2502
      %v2567 = vpop.f32.mrb[0].mxu0
      %v2568 = vadd.f32 0.0, %v2567
      %v2569 = vpop.f32.mrb[0].mxu0
      %v2570 = vpop.f32.mrb[0].mxu0
      %v2571 = vadd.f32 0.0, %v2570
      %v2572 = vpop.f32.mrb[0].mxu0
      %2573 = vmatprep.mubr.bf16.mxu0 0
      %2574 = vmatmul.mubr.bf16.gmra.mrb[0].mxu0 %v2505
      %v2575 = vpop.f32.mrb[0].mxu0
      %v2576 = vadd.f32 0.0, %v2575
      %v2577 = vpop.f32.mrb[0].mxu0
      %v2578 = vpop.f32.mrb[0].mxu0
      %v2579 = vadd.f32 0.0, %v2578
      %v2580 = vpop.f32.mrb[0].mxu0
      %2581 = vmatprep.mubr.bf16.mxu0 0
      %2582 = vmatmul.mubr.bf16.gmra.mrb[0].mxu0 %v2508
      %v2583 = vpop.f32.mrb[0].mxu0
      %v2584 = vadd.f32 0.0, %v2583
      %v2585 = vpop.f32.mrb[0].mxu0
      %v2586 = vpop.f32.mrb[0].mxu0
      %v2587 = vadd.f32 0.0, %v2586
      %v2588 = vpop.f32.mrb[0].mxu0
      %2589 = vmatprep.mubr.bf16.mxu0 0
      %2590 = vmatmul.mubr.bf16.gmra.mrb[0].mxu0 %v2511
      %v2591 = vpop.f32.mrb[0].mxu0
      %v2592 = vadd.f32 0.0, %v2591
      %v2593 = vpop.f32.mrb[0].mxu0
      %v2594 = vpop.f32.mrb[0].mxu0
      %v2595 = vadd.f32 0.0, %v2594
      %v2596 = vpop.f32.mrb[0].mxu0
      %2597 = vmatprep.mubr.bf16.mxu0 0
      %2598 = vmatmul.mubr.bf16.gmra.mrb[0].mxu0 %v2514
      %v2599 = vpop.f32.mrb[0].mxu0
      %v2600 = vadd.f32 0.0, %v2599
      %v2601 = vpop.f32.mrb[0].mxu0
      %v2602 = vpop.f32.mrb[0].mxu0
      %v2603 = vadd.f32 0.0, %v2602
      %v2604 = vpop.f32.mrb[0].mxu0
      %2605 = vmatprep.mubr.bf16.mxu0 0
      %2606 = vmatmul.mubr.bf16.gmra.mrb[0].mxu0 %v2517
      %v2607 = vpop.f32.mrb[0].mxu0
      %v2608 = vadd.f32 0.0, %v2607
      %v2609 = vpop.f32.mrb[0].mxu0
      %v2610 = vpop.f32.mrb[0].mxu0
      %v2611 = vadd.f32 0.0, %v2610
      %v2612 = vpop.f32.mrb[0].mxu0
      %2613 = vmatprep.mubr.bf16.mxu0 0
      %2614 = vmatmul.mubr.bf16.gmra.mrb[0].mxu0 %v2520
      %v2615 = vpop.f32.mrb[0].mxu0
      %v2616 = vadd.f32 0.0, %v2615
      %v2617 = vpop.f32.mrb[0].mxu0
      %v2618 = vpop.f32.mrb[0].mxu0
      %v2619 = vadd.f32 0.0, %v2618
      %v2620 = vpop.f32.mrb[0].mxu0
      %2621 = vdwg.mxu0
      %v2622 = vadd.f32 %v2368, %v2560
      %v2623 = vadd.f32 %v2369, %v2563
      %v2624 = vadd.f32 %v2370, %v2568
      %v2625 = vadd.f32 %v2371, %v2571
      %v2626 = vadd.f32 %v2372, %v2576
      %v2627 = vadd.f32 %v2373, %v2579
      %v2628 = vadd.f32 %v2374, %v2584
      %v2629 = vadd.f32 %v2375, %v2587
      %v2630 = vadd.f32 %v2376, %v2592
      %v2631 = vadd.f32 %v2377, %v2595
      %v2632 = vadd.f32 %v2378, %v2600
      %v2633 = vadd.f32 %v2379, %v2603
      %v2634 = vadd.f32 %v2380, %v2608
      %v2635 = vadd.f32 %v2381, %v2611
      %v2636 = vadd.f32 %v2382, %v2616
      %v2637 = vadd.f32 %v2383, %v2619
      %2638 = vst [vmem:[%s177] sm:$0xff] %v2622
      %2639 = vst [vmem:[%s177 + $0x8] sm:$0xff] %v2623
      %2640 = vst [vmem:[%s177 + $0x10] sm:$0xff] %v2624
      %2641 = vst [vmem:[%s177 + $0x18] sm:$0xff] %v2625
      %2642 = vst [vmem:[%s177 + $0x20] sm:$0xff] %v2626
      %2643 = vst [vmem:[%s177 + $0x28] sm:$0xff] %v2627
      %2644 = vst [vmem:[%s177 + $0x30] sm:$0xff] %v2628
      %2645 = vst [vmem:[%s177 + $0x38] sm:$0xff] %v2629
      %2646 = vst [vmem:[%s177 + $0x40] sm:$0xff] %v2630
      %2647 = vst [vmem:[%s177 + $0x48] sm:$0xff] %v2631
      %2648 = vst [vmem:[%s177 + $0x50] sm:$0xff] %v2632
      %2649 = vst [vmem:[%s177 + $0x58] sm:$0xff] %v2633
      %2650 = vst [vmem:[%s177 + $0x60] sm:$0xff] %v2634
      %2651 = vst [vmem:[%s177 + $0x68] sm:$0xff] %v2635
      %2652 = vst [vmem:[%s177 + $0x70] sm:$0xff] %v2636
      %2653 = vst [vmem:[%s177 + $0x78] sm:$0xff] %v2637
      %v2654 = vadd.f32 %v2622, %v2623
      %v2655 = vadd.f32 %v2654, %v2624
      %v2656 = vadd.f32 %v2655, %v2625
      %v2657 = vadd.f32 %v2656, %v2626
      %v2658 = vadd.f32 %v2657, %v2627
      %v2659 = vadd.f32 %v2658, %v2628
      %v2660 = vadd.f32 %v2659, %v2629
      %v2661 = vadd.f32 %v2660, %v2630
      %v2662 = vadd.f32 %v2661, %v2631
      %v2663 = vadd.f32 %v2662, %v2632
      %v2664 = vadd.f32 %v2663, %v2633
      %v2665 = vadd.f32 %v2664, %v2634
      %v2666 = vadd.f32 %v2665, %v2635
      %v2667 = vadd.f32 %v2666, %v2636
      %v2668 = vadd.f32 %v2667, %v2637
      %v2669 = vrot.slane %v2668, 4
      %v2670 = vadd.f32 %v2668, %v2669
      %v2671 = vrot.slane %v2670, 2
      %v2672 = vadd.f32 %v2670, %v2671
      %v2673 = vrot.slane %v2672, 1
      %v2674 = vadd.f32 %v2672, %v2673
      %2675 = vst [vmem:[%s181] sm:$0x1] %v2674
      %v2676 = vmul.f32 %v2622, %v2622
      %v2677 = vmul.f32 %v2623, %v2623
      %v2678 = vmul.f32 %v2624, %v2624
      %v2679 = vmul.f32 %v2625, %v2625
      %v2680 = vmul.f32 %v2626, %v2626
      %v2681 = vmul.f32 %v2627, %v2627
      %v2682 = vmul.f32 %v2628, %v2628
      %v2683 = vmul.f32 %v2629, %v2629
      %v2684 = vmul.f32 %v2630, %v2630
      %v2685 = vmul.f32 %v2631, %v2631
      %v2686 = vmul.f32 %v2632, %v2632
      %v2687 = vmul.f32 %v2633, %v2633
      %v2688 = vmul.f32 %v2634, %v2634
      %v2689 = vmul.f32 %v2635, %v2635
      %v2690 = vmul.f32 %v2636, %v2636
      %v2691 = vmul.f32 %v2637, %v2637
      %v2692 = vadd.f32 %v2676, %v2677
      %v2693 = vadd.f32 %v2692, %v2678
      %v2694 = vadd.f32 %v2693, %v2679
      %v2695 = vadd.f32 %v2694, %v2680
      %v2696 = vadd.f32 %v2695, %v2681
      %v2697 = vadd.f32 %v2696, %v2682
      %v2698 = vadd.f32 %v2697, %v2683
      %v2699 = vadd.f32 %v2698, %v2684
      %v2700 = vadd.f32 %v2699, %v2685
      %v2701 = vadd.f32 %v2700, %v2686
      %v2702 = vadd.f32 %v2701, %v2687
      %v2703 = vadd.f32 %v2702, %v2688
      %v2704 = vadd.f32 %v2703, %v2689
      %v2705 = vadd.f32 %v2704, %v2690
      %v2706 = vadd.f32 %v2705, %v2691
      %v2707 = vrot.slane %v2706, 4
      %v2708 = vadd.f32 %v2706, %v2707
      %v2709 = vrot.slane %v2708, 2
      %v2710 = vadd.f32 %v2708, %v2709
      %v2711 = vrot.slane %v2710, 1
      %v2712 = vadd.f32 %v2710, %v2711
      %2713 = vst [vmem:[%s181 + $0x1] sm:$0x1] %v2712
      %p2714 = scmp.lt.s32.totalorder %s15, 3
      %s2715 = scalar_select %p2714, %s15, 3
      %s2716 = smul.addr %s2715, 16
      %s2717 = smul.addr %s2716, 8
      %s2718 = scalar_lea.vmem %s2, %s2717
      %p2719 = scmp.lt.s32.totalorder %s15, 3
      %s2720 = scalar_select %p2719, %s15, 3
      %s2721 = smul.addr %s2720, 2
      %s2722 = scalar_lea.vmem %s3, %s2721
      // Predicated region
      $region29: #{_lambda_.6} parent=27 // pred_check
        %p2723 = pneg %p80
      $region30: #{_lambda_.6} parent=27 // pred_check_branch
        %2725 = sbr.rel (%p2723) target = $region32
      $region31: #{_lambda_.6} parent=27 // pred_region
        _
      $region32: #{_lambda_.6} parent=27 // pred_fallthru
        _
      // Predicated region
      $region33: #{_lambda_.6} parent=27 // pred_check
        %p2726 = pneg %p106
      $region34: #{_lambda_.6} parent=27 // pred_check_branch
        %2728 = sbr.rel (%p2726) target = $region36
      $region35: #{_lambda_.6} parent=27 // pred_region
        _
      $region36: #{_lambda_.6} parent=27 // pred_fallthru
        _
    $region28: #{_lambda_.6} parent=5 // pred_fallthru
      _
    %p2729 = scmp.le.s32.totalorder 2, %s10
    // Predicated region
    $region37: #{_lambda_.6} parent=5 // pred_check
      %p2730 = pneg %p2729
    $region38: #{_lambda_.6} parent=5 // pred_check_branch
      %2732 = sbr.rel (%p2730) target = $region40
    $region39: #{_lambda_.6} parent=5 // pred_region
      %s2733 = ssub.s32 %s10, 2
      // Predicated region
      $region41: #{_lambda_.6} parent=39 // pred_check
        %p2734 = pneg %p86
      $region42: #{_lambda_.6} parent=39 // pred_check_branch
        %2736 = sbr.rel (%p2734) target = $region44
      $region43: #{_lambda_.6} parent=39 // pred_region
        %p2737 = scmp.lt.s32.totalorder %s16, 3
        %s2738 = scalar_select %p2737, %s16, 3
        %s2739 = smul.addr %s2738, 16
        %s2740 = smul.addr %s2739, 8
        %s2741 = scalar_lea.vmem %s2, %s2740
      $region44: #{_lambda_.6} parent=39 // pred_fallthru
        _
      // Predicated region
      $region45: #{_lambda_.6} parent=39 // pred_check
        %p2742 = pneg %p112
      $region46: #{_lambda_.6} parent=39 // pred_check_branch
        %2744 = sbr.rel (%p2742) target = $region48
      $region47: #{_lambda_.6} parent=39 // pred_region
        %p2745 = scmp.lt.s32.totalorder %s16, 3
        %s2746 = scalar_select %p2745, %s16, 3
        %s2747 = smul.addr %s2746, 2
        %s2748 = scalar_lea.vmem %s3, %s2747
      $region48: #{_lambda_.6} parent=39 // pred_fallthru
        _
    $region40: #{_lambda_.6} parent=5 // pred_fallthru
      _
  $region6: #{_lambda_.6} parent=0 // loop_footer
    %s14 = sadd.s32 1, %s10
  $region7: #{_lambda_.6} parent=0 // loop_footer_branch
    %9 = sbr.rel target = $region3
  $region8: #{_lambda_.6} parent=0 // loop_exit
    _

</llo_original>
